<compile_context>
chip_gen: v7x
topology: tpu7x:2x2x1
jax: 0.10.0
libtpu: 0.0.40
codegen_flags: <defaults>
</compile_context>

<pallas_src>
import math
import functools

import jax
import jax.numpy as jnp
from jax.experimental import pallas as pl
from jax.experimental.pallas import tpu as pltpu


# ------------------------------ kernel ------------------------------------


def self_attention_kernel(
    q_ref, k_ref, v_ref, mask_ref,
    wq_ref, wk_ref, wv_ref, wo_ref, bo_ref,
    out_ref,
    *, num_heads, head_dim,
):
    H, D = num_heads, head_dim

    q_in = q_ref[...]        # (Sq, E) f32 — one batch element
    k_in = k_ref[...]        # (Sk, E)
    v_in = v_ref[...]        # (Sk, E)
    mask = mask_ref[...]     # (1, Sk) f32 key-padding mask (0 = masked out)

    Sq, E = q_in.shape
    Sk = k_in.shape[0]
    inv_sqrt_d = 1.0 / math.sqrt(D)

    # bf16 MXU operands (f32 accumulation everywhere via preferred_element_type).
    q_b = jnp.broadcast_to(q_in.astype(jnp.bfloat16)[None], (H, Sq, E))
    k_b = jnp.broadcast_to(k_in.astype(jnp.bfloat16)[None], (H, Sk, E))
    v_b = jnp.broadcast_to(v_in.astype(jnp.bfloat16)[None], (H, Sk, E))

    # Projections with the head split fused in: weights are (H, E, D) bf16, so
    # the batched contraction directly yields (H, S, D) — no reshape/transpose.
    # The 1/sqrt(d) scale rides on q so it never touches the (H, Sq, Sk) scores.
    q3 = (jnp.einsum('hse,hed->hsd', q_b, wq_ref[...],
                     preferred_element_type=jnp.float32) * inv_sqrt_d
          ).astype(jnp.bfloat16)
    k3 = jnp.einsum('hse,hed->hsd', k_b, wk_ref[...],
                    preferred_element_type=jnp.float32).astype(jnp.bfloat16)
    v3 = jnp.einsum('hse,hed->hsd', v_b, wv_ref[...],
                    preferred_element_type=jnp.float32).astype(jnp.bfloat16)

    # Additive mask bias, computed once (f32) and broadcast over heads/queries.
    bias = jnp.where(mask == 0.0, jnp.float32(-1e20), jnp.float32(0.0))  # (1, Sk)

    # All heads in one batched contraction: (H, Sq, Sk) f32.
    scores = jnp.einsum('hqd,hkd->hqk', q3, k3,
                        preferred_element_type=jnp.float32)
    scores = scores + bias[None]                                         # (H, Sq, Sk)

    # Softmax over keys, entirely in f32; divide via EUP approximate reciprocal.
    m = jnp.max(scores, axis=-1, keepdims=True)
    p = jnp.exp(scores - m)
    denom = jnp.sum(p, axis=-1, keepdims=True)
    attn = (p * pl.reciprocal(denom, approx=True)).astype(jnp.bfloat16)

    # (H, Sq, Sk) x (H, Sk, D) -> (H, Sq, D).
    ctx = jnp.einsum('hqk,hkd->hqd', attn, v3,
                     preferred_element_type=jnp.float32).astype(jnp.bfloat16)

    # Output projection (fc_out) with the head merge fused in:
    # wo is (H, D, E) bf16; per-head partial projections summed over heads.
    out_h = jnp.einsum('hqd,hde->hqe', ctx, wo_ref[...],
                       preferred_element_type=jnp.float32)               # (H, Sq, E)
    out_ref[...] = jnp.sum(out_h, axis=0) + bo_ref[...]                  # (Sq, E) f32


# ------------------------------ wrapper ------------------------------------


def self_attention(values, keys, query, mask, wq, wk, wv, wo, bo, num_heads):
    """values/keys: (N, Sk, E), query: (N, Sq, E), mask: (N, 1, Sk) f32.

    Weights follow the x @ W convention (== nn.Linear applied with W.T).
    """
    N, Sq, E = query.shape
    Sk = keys.shape[1]
    H = num_heads
    D = E // H
    assert D * H == E, "embed size must be divisible by num_heads"

    # Wrapper-side (one-off) weight prep: fold head split/merge into the
    # weight layout and cast MXU operands to bf16.
    wq3 = jnp.transpose(wq.reshape(E, H, D), (1, 0, 2)).astype(jnp.bfloat16)  # (H,E,D)
    wk3 = jnp.transpose(wk.reshape(E, H, D), (1, 0, 2)).astype(jnp.bfloat16)  # (H,E,D)
    wv3 = jnp.transpose(wv.reshape(E, H, D), (1, 0, 2)).astype(jnp.bfloat16)  # (H,E,D)
    wo3 = wo.reshape(H, D, E).astype(jnp.bfloat16)                            # (H,D,E)
    bo2 = jnp.reshape(bo, (1, E)).astype(jnp.float32)                         # (1,E)

    kernel = functools.partial(self_attention_kernel, num_heads=H, head_dim=D)

    def build(single_buffer_weights):
        def wspec(shape):
            nd = len(shape)
            idx = lambda n, _nd=nd: (0,) * _nd
            if single_buffer_weights:
                # Constant index_map ⇒ one resident copy is enough.
                return pl.BlockSpec(shape, idx, pipeline_mode=pl.Buffered(1))
            return pl.BlockSpec(shape, idx)

        in_specs = [
            pl.BlockSpec((None, Sq, E), lambda n: (n, 0, 0)),   # query
            pl.BlockSpec((None, Sk, E), lambda n: (n, 0, 0)),   # keys
            pl.BlockSpec((None, Sk, E), lambda n: (n, 0, 0)),   # values
            pl.BlockSpec((None, 1, Sk), lambda n: (n, 0, 0)),   # mask
            wspec(wq3.shape), wspec(wk3.shape), wspec(wv3.shape),
            wspec(wo3.shape), wspec(bo2.shape),
        ]

        return pl.pallas_call(
            kernel,
            out_shape=jax.ShapeDtypeStruct((N, Sq, E), jnp.float32),
            grid=(N,),
            in_specs=in_specs,
            out_specs=pl.BlockSpec((None, Sq, E), lambda n: (n, 0, 0)),
            compiler_params=pltpu.CompilerParams(
                dimension_semantics=("parallel",),
                vmem_limit_bytes=32 * 1024 * 1024,
            ),
        )

    args = (query, keys, values, mask, wq3, wk3, wv3, wo3, bo2)
    try:
        return build(True)(*args)
    except Exception:
        # Fallback if this jax/Mosaic build rejects single-buffered weight
        # specs; semantics are identical, only weight VMEM residency differs.
        return build(False)(*args)


# --------------------------- pure-JAX reference -----------------------------


def self_attention_ref(values, keys, query, mask, wq, wk, wv, wo, bo, num_heads):
    N, Sq, E = query.shape
    Sk = keys.shape[1]
    D = E // num_heads
    q = (query @ wq).reshape(N, Sq, num_heads, D)
    k = (keys @ wk).reshape(N, Sk, num_heads, D)
    v = (values @ wv).reshape(N, Sk, num_heads, D)
    scores = jnp.einsum('nqhd,nkhd->nhqk', q, k)
    m4 = mask[:, :, None, :]                      # (N, 1, 1, Sk)
    scores = jnp.where(m4 == 0.0, -1e20, scores)
    attn = jax.nn.softmax(scores / math.sqrt(D), axis=-1)
    out = jnp.einsum('nhqk,nkhd->nqhd', attn, v).reshape(N, Sq, E)
    return out @ wo + bo


# -------------------------------- main --------------------------------------


if __name__ == "__main__":
    embed_size = 32
    num_heads = 4
    N, S = 2, 8

    key = jax.random.PRNGKey(0)
    key, kq, kk, kv, kwq, kwk, kwv, kwo, kbo = jax.random.split(key, 9)

    query = jax.random.normal(kq, (N, S, embed_size), dtype=jnp.float32)
    keys_in = jax.random.normal(kk, (N, S, embed_size), dtype=jnp.float32)
    values_in = jax.random.normal(kv, (N, S, embed_size), dtype=jnp.float32)

    scale = 0.05
    wq = scale * jax.random.normal(kwq, (embed_size, embed_size), dtype=jnp.float32)
    wk = scale * jax.random.normal(kwk, (embed_size, embed_size), dtype=jnp.float32)
    wv = scale * jax.random.normal(kwv, (embed_size, embed_size), dtype=jnp.float32)
    wo = scale * jax.random.normal(kwo, (embed_size, embed_size), dtype=jnp.float32)
    bo = scale * jax.random.normal(kbo, (1, embed_size), dtype=jnp.float32)

    # Key-padding mask: last two key positions of batch 0 are padding.
    mask = jnp.ones((N, 1, S), dtype=jnp.float32)
    mask = mask.at[0, 0, -2:].set(0.0)

    out = self_attention(values_in, keys_in, query, mask,
                         wq, wk, wv, wo, bo, num_heads)
    out = jax.block_until_ready(out)

    ref = self_attention_ref(values_in, keys_in, query, mask,
                             wq, wk, wv, wo, bo, num_heads)

    assert out.shape == (N, S, embed_size)
    assert bool(jnp.all(jnp.isfinite(out)))
    max_err = float(jnp.max(jnp.abs(out - ref)))
    # Tolerance sized for bf16 MXU operands (f32 accumulation) + approx reciprocal.
    assert bool(jnp.allclose(out, ref, rtol=3e-2, atol=5e-3)), max_err
    print("KERNEL_OK")
</pallas_src>

<mosaic_0001>
module attributes {stable_mosaic.version = 11 : i64} {
  func.func @self_attention_kernel(%arg0: i32, %arg1: memref<1x8x32xf32, #tpu.memory_space<vmem>>, %arg2: memref<1x8x32xf32, #tpu.memory_space<vmem>>, %arg3: memref<1x8x32xf32, #tpu.memory_space<vmem>>, %arg4: memref<1x1x8xf32, #tpu.memory_space<vmem>>, %arg5: memref<4x32x8xbf16, #tpu.memory_space<vmem>>, %arg6: memref<4x32x8xbf16, #tpu.memory_space<vmem>>, %arg7: memref<4x32x8xbf16, #tpu.memory_space<vmem>>, %arg8: memref<4x8x32xbf16, #tpu.memory_space<vmem>>, %arg9: memref<1x32xf32, #tpu.memory_space<vmem>>, %arg10: memref<1x8x32xf32, #tpu.memory_space<vmem>>) attributes {dimension_semantics = [#tpu.dimension_semantics<parallel>], iteration_bounds = array<i64: 2>, scalar_prefetch = 0 : i64, scratch_operands = 0 : i64, tpu.core_type = #tpu.core_type<tc>, window_params = [{transform_indices = @transform_0, window_bounds = array<i64: 1, 8, 32>}, {transform_indices = @transform_1, window_bounds = array<i64: 1, 8, 32>}, {transform_indices = @transform_2, window_bounds = array<i64: 1, 8, 32>}, {transform_indices = @transform_3, window_bounds = array<i64: 1, 1, 8>}, {pipeline_mode = #tpu.pipeline_mode<synchronous>, transform_indices = @transform_4, window_bounds = array<i64: 4, 32, 8>}, {pipeline_mode = #tpu.pipeline_mode<synchronous>, transform_indices = @transform_5, window_bounds = array<i64: 4, 32, 8>}, {pipeline_mode = #tpu.pipeline_mode<synchronous>, transform_indices = @transform_6, window_bounds = array<i64: 4, 32, 8>}, {pipeline_mode = #tpu.pipeline_mode<synchronous>, transform_indices = @transform_7, window_bounds = array<i64: 4, 8, 32>}, {pipeline_mode = #tpu.pipeline_mode<synchronous>, transform_indices = @transform_8, window_bounds = array<i64: 1, 32>}, {transform_indices = @transform_9, window_bounds = array<i64: 1, 8, 32>}]} {
    %c0 = arith.constant 0 : index
    %c0_0 = arith.constant 0 : index
    %c0_1 = arith.constant 0 : index
    %0 = vector.load %arg1[%c0, %c0_0, %c0_1] : memref<1x8x32xf32, #tpu.memory_space<vmem>>, vector<1x8x32xf32>
    %1 = vector.shape_cast %0 : vector<1x8x32xf32> to vector<8x32xf32>
    %c0_2 = arith.constant 0 : index
    %c0_3 = arith.constant 0 : index
    %c0_4 = arith.constant 0 : index
    %2 = vector.load %arg2[%c0_2, %c0_3, %c0_4] : memref<1x8x32xf32, #tpu.memory_space<vmem>>, vector<1x8x32xf32>
    %3 = vector.shape_cast %2 : vector<1x8x32xf32> to vector<8x32xf32>
    %c0_5 = arith.constant 0 : index
    %c0_6 = arith.constant 0 : index
    %c0_7 = arith.constant 0 : index
    %4 = vector.load %arg3[%c0_5, %c0_6, %c0_7] : memref<1x8x32xf32, #tpu.memory_space<vmem>>, vector<1x8x32xf32>
    %5 = vector.shape_cast %4 : vector<1x8x32xf32> to vector<8x32xf32>
    %c0_8 = arith.constant 0 : index
    %c0_9 = arith.constant 0 : index
    %c0_10 = arith.constant 0 : index
    %6 = vector.load %arg4[%c0_8, %c0_9, %c0_10] : memref<1x1x8xf32, #tpu.memory_space<vmem>>, vector<1x1x8xf32>
    %7 = vector.shape_cast %6 : vector<1x1x8xf32> to vector<1x8xf32>
    %8 = arith.truncf %1 : vector<8x32xf32> to vector<8x32xbf16>
    %9 = vector.shape_cast %8 : vector<8x32xbf16> to vector<1x8x32xbf16>
    %10 = vector.shape_cast %9 : vector<1x8x32xbf16> to vector<1x8x32xbf16>
    %11 = vector.broadcast %10 : vector<1x8x32xbf16> to vector<4x8x32xbf16>
    %12 = arith.truncf %3 : vector<8x32xf32> to vector<8x32xbf16>
    %13 = vector.shape_cast %12 : vector<8x32xbf16> to vector<1x8x32xbf16>
    %14 = vector.shape_cast %13 : vector<1x8x32xbf16> to vector<1x8x32xbf16>
    %15 = vector.broadcast %14 : vector<1x8x32xbf16> to vector<4x8x32xbf16>
    %16 = arith.truncf %5 : vector<8x32xf32> to vector<8x32xbf16>
    %17 = vector.shape_cast %16 : vector<8x32xbf16> to vector<1x8x32xbf16>
    %18 = vector.shape_cast %17 : vector<1x8x32xbf16> to vector<1x8x32xbf16>
    %19 = vector.broadcast %18 : vector<1x8x32xbf16> to vector<4x8x32xbf16>
    %c0_11 = arith.constant 0 : index
    %c0_12 = arith.constant 0 : index
    %c0_13 = arith.constant 0 : index
    %20 = vector.load %arg5[%c0_11, %c0_12, %c0_13] : memref<4x32x8xbf16, #tpu.memory_space<vmem>>, vector<4x32x8xbf16>
    "tpu.trace_start"() <{level = 10 : i32, message = "hse,hed->hsd"}> : () -> ()
    %cst = arith.constant dense<0.000000e+00> : vector<4x8x8xf32>
    %21 = tpu.matmul %11, %20, %cst {dimension_numbers = #tpu.dot_dimension_numbers<[2], [1], [1], [2], [0, 0, 0, 1, 1, 2], [0], [0]>} : vector<4x8x32xbf16>, vector<4x32x8xbf16>, vector<4x8x8xf32> -> vector<4x8x8xf32>
    "tpu.trace_stop"() : () -> ()
    %cst_14 = arith.constant 0.353553385 : f32
    %22 = vector.broadcast %cst_14 : f32 to vector<4x8x8xf32>
    %23 = arith.mulf %21, %22 : vector<4x8x8xf32>
    %24 = arith.truncf %23 : vector<4x8x8xf32> to vector<4x8x8xbf16>
    %c0_15 = arith.constant 0 : index
    %c0_16 = arith.constant 0 : index
    %c0_17 = arith.constant 0 : index
    %25 = vector.load %arg6[%c0_15, %c0_16, %c0_17] : memref<4x32x8xbf16, #tpu.memory_space<vmem>>, vector<4x32x8xbf16>
    "tpu.trace_start"() <{level = 10 : i32, message = "hse,hed->hsd"}> : () -> ()
    %cst_18 = arith.constant dense<0.000000e+00> : vector<4x8x8xf32>
    %26 = tpu.matmul %15, %25, %cst_18 {dimension_numbers = #tpu.dot_dimension_numbers<[2], [1], [1], [2], [0, 0, 0, 1, 1, 2], [0], [0]>} : vector<4x8x32xbf16>, vector<4x32x8xbf16>, vector<4x8x8xf32> -> vector<4x8x8xf32>
    "tpu.trace_stop"() : () -> ()
    %27 = arith.truncf %26 : vector<4x8x8xf32> to vector<4x8x8xbf16>
    %c0_19 = arith.constant 0 : index
    %c0_20 = arith.constant 0 : index
    %c0_21 = arith.constant 0 : index
    %28 = vector.load %arg7[%c0_19, %c0_20, %c0_21] : memref<4x32x8xbf16, #tpu.memory_space<vmem>>, vector<4x32x8xbf16>
    "tpu.trace_start"() <{level = 10 : i32, message = "hse,hed->hsd"}> : () -> ()
    %cst_22 = arith.constant dense<0.000000e+00> : vector<4x8x8xf32>
    %29 = tpu.matmul %19, %28, %cst_22 {dimension_numbers = #tpu.dot_dimension_numbers<[2], [1], [1], [2], [0, 0, 0, 1, 1, 2], [0], [0]>} : vector<4x8x32xbf16>, vector<4x32x8xbf16>, vector<4x8x8xf32> -> vector<4x8x8xf32>
    "tpu.trace_stop"() : () -> ()
    %30 = arith.truncf %29 : vector<4x8x8xf32> to vector<4x8x8xbf16>
    %cst_23 = arith.constant 0.000000e+00 : f32
    %31 = vector.broadcast %cst_23 : f32 to vector<1x8xf32>
    %32 = arith.cmpf oeq, %7, %31 : vector<1x8xf32>
    %cst_24 = arith.constant -1.000000e+20 : f32
    %cst_25 = arith.constant 0.000000e+00 : f32
    %33 = vector.broadcast %cst_24 : f32 to vector<1x8xf32>
    %34 = vector.broadcast %cst_25 : f32 to vector<1x8xf32>
    %35 = arith.select %32, %33, %34 : vector<1x8xi1>, vector<1x8xf32>
    "tpu.trace_start"() <{level = 10 : i32, message = "hqd,hkd->hqk"}> : () -> ()
    %cst_26 = arith.constant dense<0.000000e+00> : vector<4x8x8xf32>
    %36 = tpu.matmul %24, %27, %cst_26 {dimension_numbers = #tpu.dot_dimension_numbers<[2], [2], [1], [1], [0, 0, 0, 1, 1, 1], [0], [0]>} : vector<4x8x8xbf16>, vector<4x8x8xbf16>, vector<4x8x8xf32> -> vector<4x8x8xf32>
    "tpu.trace_stop"() : () -> ()
    %37 = vector.shape_cast %35 : vector<1x8xf32> to vector<1x1x8xf32>
    %38 = vector.broadcast %37 : vector<1x1x8xf32> to vector<4x8x8xf32>
    %39 = arith.addf %36, %38 : vector<4x8x8xf32>
    %cst_27 = arith.constant dense<0xFF800000> : vector<4x8xf32>
    %40 = vector.multi_reduction <maximumf>, %39, %cst_27 [2] : vector<4x8x8xf32> to vector<4x8xf32>
    %41 = vector.shape_cast %40 : vector<4x8xf32> to vector<4x8x1xf32>
    %42 = vector.broadcast %41 : vector<4x8x1xf32> to vector<4x8x8xf32>
    %43 = arith.subf %39, %42 : vector<4x8x8xf32>
    %44 = math.exp %43 : vector<4x8x8xf32>
    %cst_28 = arith.constant dense<0.000000e+00> : vector<4x8xf32>
    %45 = vector.multi_reduction <add>, %44, %cst_28 [2] : vector<4x8x8xf32> to vector<4x8xf32>
    %46 = vector.shape_cast %45 : vector<4x8xf32> to vector<4x8x1xf32>
    %47 = tpu.reciprocal %46 {approx = true} : vector<4x8x1xf32> -> vector<4x8x1xf32>
    %48 = vector.broadcast %47 : vector<4x8x1xf32> to vector<4x8x8xf32>
    %49 = arith.mulf %44, %48 : vector<4x8x8xf32>
    %50 = arith.truncf %49 : vector<4x8x8xf32> to vector<4x8x8xbf16>
    "tpu.trace_start"() <{level = 10 : i32, message = "hqk,hkd->hqd"}> : () -> ()
    %cst_29 = arith.constant dense<0.000000e+00> : vector<4x8x8xf32>
    %51 = tpu.matmul %50, %30, %cst_29 {dimension_numbers = #tpu.dot_dimension_numbers<[2], [1], [1], [2], [0, 0, 0, 1, 1, 2], [0], [0]>} : vector<4x8x8xbf16>, vector<4x8x8xbf16>, vector<4x8x8xf32> -> vector<4x8x8xf32>
    "tpu.trace_stop"() : () -> ()
    %52 = arith.truncf %51 : vector<4x8x8xf32> to vector<4x8x8xbf16>
    %c0_30 = arith.constant 0 : index
    %c0_31 = arith.constant 0 : index
    %c0_32 = arith.constant 0 : index
    %53 = vector.load %arg8[%c0_30, %c0_31, %c0_32] : memref<4x8x32xbf16, #tpu.memory_space<vmem>>, vector<4x8x32xbf16>
    "tpu.trace_start"() <{level = 10 : i32, message = "hqd,hde->hqe"}> : () -> ()
    %cst_33 = arith.constant dense<0.000000e+00> : vector<4x8x32xf32>
    %54 = tpu.matmul %52, %53, %cst_33 {dimension_numbers = #tpu.dot_dimension_numbers<[2], [1], [1], [2], [0, 0, 0, 1, 1, 2], [0], [0]>} : vector<4x8x8xbf16>, vector<4x8x32xbf16>, vector<4x8x32xf32> -> vector<4x8x32xf32>
    "tpu.trace_stop"() : () -> ()
    %cst_34 = arith.constant dense<0.000000e+00> : vector<8x32xf32>
    %55 = vector.multi_reduction <add>, %54, %cst_34 [0] : vector<4x8x32xf32> to vector<8x32xf32>
    %c0_35 = arith.constant 0 : index
    %c0_36 = arith.constant 0 : index
    %56 = vector.load %arg9[%c0_35, %c0_36] : memref<1x32xf32, #tpu.memory_space<vmem>>, vector<1x32xf32>
    %57 = vector.broadcast %56 : vector<1x32xf32> to vector<8x32xf32>
    %58 = arith.addf %55, %57 : vector<8x32xf32>
    %c0_37 = arith.constant 0 : index
    %c0_38 = arith.constant 0 : index
    %c0_39 = arith.constant 0 : index
    %59 = vector.load %arg10[%c0_37, %c0_38, %c0_39] : memref<1x8x32xf32, #tpu.memory_space<vmem>>, vector<1x8x32xf32>
    %60 = vector.shape_cast %59 : vector<1x8x32xf32> to vector<8x32xf32>
    %61 = vector.shape_cast %58 : vector<8x32xf32> to vector<1x8x32xf32>
    tpu.vector_store %arg10[%c0_37, %c0_38, %c0_39], %61 {strides = array<i32>} : memref<1x8x32xf32, #tpu.memory_space<vmem>>, vector<1x8x32xf32>,
    return
  }
  func.func @transform_0(%arg0: i32) -> (i32, i32, i32) {
    %c0_i32 = arith.constant 0 : i32
    %c0_i32_0 = arith.constant 0 : i32
    %c0_i32_1 = arith.constant 0 : i32
    return %arg0, %c0_i32, %c0_i32_0 : i32, i32, i32
  }
  func.func @transform_1(%arg0: i32) -> (i32, i32, i32) {
    %c0_i32 = arith.constant 0 : i32
    %c0_i32_0 = arith.constant 0 : i32
    %c0_i32_1 = arith.constant 0 : i32
    return %arg0, %c0_i32, %c0_i32_0 : i32, i32, i32
  }
  func.func @transform_2(%arg0: i32) -> (i32, i32, i32) {
    %c0_i32 = arith.constant 0 : i32
    %c0_i32_0 = arith.constant 0 : i32
    %c0_i32_1 = arith.constant 0 : i32
    return %arg0, %c0_i32, %c0_i32_0 : i32, i32, i32
  }
  func.func @transform_3(%arg0: i32) -> (i32, i32, i32) {
    %c0_i32 = arith.constant 0 : i32
    %c0_i32_0 = arith.constant 0 : i32
    %c0_i32_1 = arith.constant 0 : i32
    return %arg0, %c0_i32, %c0_i32_0 : i32, i32, i32
  }
  func.func @transform_4(%arg0: i32) -> (i32, i32, i32) {
    %c0_i32 = arith.constant 0 : i32
    %c0_i32_0 = arith.constant 0 : i32
    %c0_i32_1 = arith.constant 0 : i32
    %c0_i32_2 = arith.constant 0 : i32
    return %c0_i32, %c0_i32_0, %c0_i32_1 : i32, i32, i32
  }
  func.func @transform_5(%arg0: i32) -> (i32, i32, i32) {
    %c0_i32 = arith.constant 0 : i32
    %c0_i32_0 = arith.constant 0 : i32
    %c0_i32_1 = arith.constant 0 : i32
    %c0_i32_2 = arith.constant 0 : i32
    return %c0_i32, %c0_i32_0, %c0_i32_1 : i32, i32, i32
  }
  func.func @transform_6(%arg0: i32) -> (i32, i32, i32) {
    %c0_i32 = arith.constant 0 : i32
    %c0_i32_0 = arith.constant 0 : i32
    %c0_i32_1 = arith.constant 0 : i32
    %c0_i32_2 = arith.constant 0 : i32
    return %c0_i32, %c0_i32_0, %c0_i32_1 : i32, i32, i32
  }
  func.func @transform_7(%arg0: i32) -> (i32, i32, i32) {
    %c0_i32 = arith.constant 0 : i32
    %c0_i32_0 = arith.constant 0 : i32
    %c0_i32_1 = arith.constant 0 : i32
    %c0_i32_2 = arith.constant 0 : i32
    return %c0_i32, %c0_i32_0, %c0_i32_1 : i32, i32, i32
  }
  func.func @transform_8(%arg0: i32) -> (i32, i32) {
    %c0_i32 = arith.constant 0 : i32
    %c0_i32_0 = arith.constant 0 : i32
    %c0_i32_1 = arith.constant 0 : i32
    return %c0_i32, %c0_i32_0 : i32, i32
  }
  func.func @transform_9(%arg0: i32) -> (i32, i32, i32) {
    %c0_i32 = arith.constant 0 : i32
    %c0_i32_0 = arith.constant 0 : i32
    %c0_i32_1 = arith.constant 0 : i32
    return %arg0, %c0_i32, %c0_i32_0 : i32, i32, i32
  }
}

module attributes {stable_mosaic.version = 11 : i64} {
  func.func @self_attention_kernel(%arg0: i32, %arg1: memref<1x8x32xf32, #tpu.memory_space<vmem>>, %arg2: memref<1x8x32xf32, #tpu.memory_space<vmem>>, %arg3: memref<1x8x32xf32, #tpu.memory_space<vmem>>, %arg4: memref<1x1x8xf32, #tpu.memory_space<vmem>>, %arg5: memref<4x32x8xbf16, #tpu.memory_space<vmem>>, %arg6: memref<4x32x8xbf16, #tpu.memory_space<vmem>>, %arg7: memref<4x32x8xbf16, #tpu.memory_space<vmem>>, %arg8: memref<4x8x32xbf16, #tpu.memory_space<vmem>>, %arg9: memref<1x32xf32, #tpu.memory_space<vmem>>, %arg10: memref<1x8x32xf32, #tpu.memory_space<vmem>>) attributes {dimension_semantics = [#tpu.dimension_semantics<parallel>], iteration_bounds = array<i64: 2>, scalar_prefetch = 0 : i64, scratch_operands = 0 : i64, tpu.core_type = #tpu.core_type<tc>, window_params = [{transform_indices = @transform_0, window_bounds = array<i64: 1, 8, 32>}, {transform_indices = @transform_1, window_bounds = array<i64: 1, 8, 32>}, {transform_indices = @transform_2, window_bounds = array<i64: 1, 8, 32>}, {transform_indices = @transform_3, window_bounds = array<i64: 1, 1, 8>}, {pipeline_mode = #tpu.pipeline_mode<synchronous>, transform_indices = @transform_4, window_bounds = array<i64: 4, 32, 8>}, {pipeline_mode = #tpu.pipeline_mode<synchronous>, transform_indices = @transform_5, window_bounds = array<i64: 4, 32, 8>}, {pipeline_mode = #tpu.pipeline_mode<synchronous>, transform_indices = @transform_6, window_bounds = array<i64: 4, 32, 8>}, {pipeline_mode = #tpu.pipeline_mode<synchronous>, transform_indices = @transform_7, window_bounds = array<i64: 4, 8, 32>}, {pipeline_mode = #tpu.pipeline_mode<synchronous>, transform_indices = @transform_8, window_bounds = array<i64: 1, 32>}, {transform_indices = @transform_9, window_bounds = array<i64: 1, 8, 32>}]} {
    %c0 = arith.constant 0 : index
    %c0_0 = arith.constant 0 : index
    %c0_1 = arith.constant 0 : index
    %0 = vector.load %arg1[%c0, %c0_0, %c0_1] : memref<1x8x32xf32, #tpu.memory_space<vmem>>, vector<1x8x32xf32>
    %1 = vector.shape_cast %0 : vector<1x8x32xf32> to vector<8x32xf32>
    %c0_2 = arith.constant 0 : index
    %c0_3 = arith.constant 0 : index
    %c0_4 = arith.constant 0 : index
    %2 = vector.load %arg2[%c0_2, %c0_3, %c0_4] : memref<1x8x32xf32, #tpu.memory_space<vmem>>, vector<1x8x32xf32>
    %3 = vector.shape_cast %2 : vector<1x8x32xf32> to vector<8x32xf32>
    %c0_5 = arith.constant 0 : index
    %c0_6 = arith.constant 0 : index
    %c0_7 = arith.constant 0 : index
    %4 = vector.load %arg3[%c0_5, %c0_6, %c0_7] : memref<1x8x32xf32, #tpu.memory_space<vmem>>, vector<1x8x32xf32>
    %5 = vector.shape_cast %4 : vector<1x8x32xf32> to vector<8x32xf32>
    %c0_8 = arith.constant 0 : index
    %c0_9 = arith.constant 0 : index
    %c0_10 = arith.constant 0 : index
    %6 = vector.load %arg4[%c0_8, %c0_9, %c0_10] : memref<1x1x8xf32, #tpu.memory_space<vmem>>, vector<1x1x8xf32>
    %7 = vector.shape_cast %6 : vector<1x1x8xf32> to vector<1x8xf32>
    %8 = arith.truncf %1 : vector<8x32xf32> to vector<8x32xbf16>
    %9 = vector.shape_cast %8 : vector<8x32xbf16> to vector<1x8x32xbf16>
    %10 = vector.shape_cast %9 : vector<1x8x32xbf16> to vector<1x8x32xbf16>
    %11 = vector.broadcast %10 : vector<1x8x32xbf16> to vector<4x8x32xbf16>
    %12 = arith.truncf %3 : vector<8x32xf32> to vector<8x32xbf16>
    %13 = vector.shape_cast %12 : vector<8x32xbf16> to vector<1x8x32xbf16>
    %14 = vector.shape_cast %13 : vector<1x8x32xbf16> to vector<1x8x32xbf16>
    %15 = vector.broadcast %14 : vector<1x8x32xbf16> to vector<4x8x32xbf16>
    %16 = arith.truncf %5 : vector<8x32xf32> to vector<8x32xbf16>
    %17 = vector.shape_cast %16 : vector<8x32xbf16> to vector<1x8x32xbf16>
    %18 = vector.shape_cast %17 : vector<1x8x32xbf16> to vector<1x8x32xbf16>
    %19 = vector.broadcast %18 : vector<1x8x32xbf16> to vector<4x8x32xbf16>
    %c0_11 = arith.constant 0 : index
    %c0_12 = arith.constant 0 : index
    %c0_13 = arith.constant 0 : index
    %20 = vector.load %arg5[%c0_11, %c0_12, %c0_13] : memref<4x32x8xbf16, #tpu.memory_space<vmem>>, vector<4x32x8xbf16>
    "tpu.trace_start"() <{level = 10 : i32, message = "hse,hed->hsd"}> : () -> ()
    %cst = arith.constant dense<0.000000e+00> : vector<4x8x8xf32>
    %21 = tpu.matmul %11, %20, %cst {dimension_numbers = #tpu.dot_dimension_numbers<[2], [1], [1], [2], [0, 0, 0, 1, 1, 2], [0], [0]>} : vector<4x8x32xbf16>, vector<4x32x8xbf16>, vector<4x8x8xf32> -> vector<4x8x8xf32>
    "tpu.trace_stop"() : () -> ()
    %cst_14 = arith.constant 0.353553385 : f32
    %22 = vector.broadcast %cst_14 : f32 to vector<4x8x8xf32>
    %23 = arith.mulf %21, %22 : vector<4x8x8xf32>
    %24 = arith.truncf %23 : vector<4x8x8xf32> to vector<4x8x8xbf16>
    %c0_15 = arith.constant 0 : index
    %c0_16 = arith.constant 0 : index
    %c0_17 = arith.constant 0 : index
    %25 = vector.load %arg6[%c0_15, %c0_16, %c0_17] : memref<4x32x8xbf16, #tpu.memory_space<vmem>>, vector<4x32x8xbf16>
    "tpu.trace_start"() <{level = 10 : i32, message = "hse,hed->hsd"}> : () -> ()
    %cst_18 = arith.constant dense<0.000000e+00> : vector<4x8x8xf32>
    %26 = tpu.matmul %15, %25, %cst_18 {dimension_numbers = #tpu.dot_dimension_numbers<[2], [1], [1], [2], [0, 0, 0, 1, 1, 2], [0], [0]>} : vector<4x8x32xbf16>, vector<4x32x8xbf16>, vector<4x8x8xf32> -> vector<4x8x8xf32>
    "tpu.trace_stop"() : () -> ()
    %27 = arith.truncf %26 : vector<4x8x8xf32> to vector<4x8x8xbf16>
    %c0_19 = arith.constant 0 : index
    %c0_20 = arith.constant 0 : index
    %c0_21 = arith.constant 0 : index
    %28 = vector.load %arg7[%c0_19, %c0_20, %c0_21] : memref<4x32x8xbf16, #tpu.memory_space<vmem>>, vector<4x32x8xbf16>
    "tpu.trace_start"() <{level = 10 : i32, message = "hse,hed->hsd"}> : () -> ()
    %cst_22 = arith.constant dense<0.000000e+00> : vector<4x8x8xf32>
    %29 = tpu.matmul %19, %28, %cst_22 {dimension_numbers = #tpu.dot_dimension_numbers<[2], [1], [1], [2], [0, 0, 0, 1, 1, 2], [0], [0]>} : vector<4x8x32xbf16>, vector<4x32x8xbf16>, vector<4x8x8xf32> -> vector<4x8x8xf32>
    "tpu.trace_stop"() : () -> ()
    %30 = arith.truncf %29 : vector<4x8x8xf32> to vector<4x8x8xbf16>
    %cst_23 = arith.constant 0.000000e+00 : f32
    %31 = vector.broadcast %cst_23 : f32 to vector<1x8xf32>
    %32 = arith.cmpf oeq, %7, %31 : vector<1x8xf32>
    %cst_24 = arith.constant -1.000000e+20 : f32
    %cst_25 = arith.constant 0.000000e+00 : f32
    %33 = vector.broadcast %cst_24 : f32 to vector<1x8xf32>
    %34 = vector.broadcast %cst_25 : f32 to vector<1x8xf32>
    %35 = arith.select %32, %33, %34 : vector<1x8xi1>, vector<1x8xf32>
    "tpu.trace_start"() <{level = 10 : i32, message = "hqd,hkd->hqk"}> : () -> ()
    %cst_26 = arith.constant dense<0.000000e+00> : vector<4x8x8xf32>
    %36 = tpu.matmul %24, %27, %cst_26 {dimension_numbers = #tpu.dot_dimension_numbers<[2], [2], [1], [1], [0, 0, 0, 1, 1, 1], [0], [0]>} : vector<4x8x8xbf16>, vector<4x8x8xbf16>, vector<4x8x8xf32> -> vector<4x8x8xf32>
    "tpu.trace_stop"() : () -> ()
    %37 = vector.shape_cast %35 : vector<1x8xf32> to vector<1x1x8xf32>
    %38 = vector.broadcast %37 : vector<1x1x8xf32> to vector<4x8x8xf32>
    %39 = arith.addf %36, %38 : vector<4x8x8xf32>
    %cst_27 = arith.constant dense<0xFF800000> : vector<4x8xf32>
    %40 = vector.multi_reduction <maximumf>, %39, %cst_27 [2] : vector<4x8x8xf32> to vector<4x8xf32>
    %41 = vector.shape_cast %40 : vector<4x8xf32> to vector<4x8x1xf32>
    %42 = vector.broadcast %41 : vector<4x8x1xf32> to vector<4x8x8xf32>
    %43 = arith.subf %39, %42 : vector<4x8x8xf32>
    %44 = math.exp %43 : vector<4x8x8xf32>
    %cst_28 = arith.constant dense<0.000000e+00> : vector<4x8xf32>
    %45 = vector.multi_reduction <add>, %44, %cst_28 [2] : vector<4x8x8xf32> to vector<4x8xf32>
    %46 = vector.shape_cast %45 : vector<4x8xf32> to vector<4x8x1xf32>
    %47 = tpu.reciprocal %46 {approx = true} : vector<4x8x1xf32> -> vector<4x8x1xf32>
    %48 = vector.broadcast %47 : vector<4x8x1xf32> to vector<4x8x8xf32>
    %49 = arith.mulf %44, %48 : vector<4x8x8xf32>
    %50 = arith.truncf %49 : vector<4x8x8xf32> to vector<4x8x8xbf16>
    "tpu.trace_start"() <{level = 10 : i32, message = "hqk,hkd->hqd"}> : () -> ()
    %cst_29 = arith.constant dense<0.000000e+00> : vector<4x8x8xf32>
    %51 = tpu.matmul %50, %30, %cst_29 {dimension_numbers = #tpu.dot_dimension_numbers<[2], [1], [1], [2], [0, 0, 0, 1, 1, 2], [0], [0]>} : vector<4x8x8xbf16>, vector<4x8x8xbf16>, vector<4x8x8xf32> -> vector<4x8x8xf32>
    "tpu.trace_stop"() : () -> ()
    %52 = arith.truncf %51 : vector<4x8x8xf32> to vector<4x8x8xbf16>
    %c0_30 = arith.constant 0 : index
    %c0_31 = arith.constant 0 : index
    %c0_32 = arith.constant 0 : index
    %53 = vector.load %arg8[%c0_30, %c0_31, %c0_32] : memref<4x8x32xbf16, #tpu.memory_space<vmem>>, vector<4x8x32xbf16>
    "tpu.trace_start"() <{level = 10 : i32, message = "hqd,hde->hqe"}> : () -> ()
    %cst_33 = arith.constant dense<0.000000e+00> : vector<4x8x32xf32>
    %54 = tpu.matmul %52, %53, %cst_33 {dimension_numbers = #tpu.dot_dimension_numbers<[2], [1], [1], [2], [0, 0, 0, 1, 1, 2], [0], [0]>} : vector<4x8x8xbf16>, vector<4x8x32xbf16>, vector<4x8x32xf32> -> vector<4x8x32xf32>
    "tpu.trace_stop"() : () -> ()
    %cst_34 = arith.constant dense<0.000000e+00> : vector<8x32xf32>
    %55 = vector.multi_reduction <add>, %54, %cst_34 [0] : vector<4x8x32xf32> to vector<8x32xf32>
    %c0_35 = arith.constant 0 : index
    %c0_36 = arith.constant 0 : index
    %56 = vector.load %arg9[%c0_35, %c0_36] : memref<1x32xf32, #tpu.memory_space<vmem>>, vector<1x32xf32>
    %57 = vector.broadcast %56 : vector<1x32xf32> to vector<8x32xf32>
    %58 = arith.addf %55, %57 : vector<8x32xf32>
    %c0_37 = arith.constant 0 : index
    %c0_38 = arith.constant 0 : index
    %c0_39 = arith.constant 0 : index
    %59 = vector.load %arg10[%c0_37, %c0_38, %c0_39] : memref<1x8x32xf32, #tpu.memory_space<vmem>>, vector<1x8x32xf32>
    %60 = vector.shape_cast %59 : vector<1x8x32xf32> to vector<8x32xf32>
    %61 = vector.shape_cast %58 : vector<8x32xf32> to vector<1x8x32xf32>
    tpu.vector_store %arg10[%c0_37, %c0_38, %c0_39], %61 {strides = array<i32>} : memref<1x8x32xf32, #tpu.memory_space<vmem>>, vector<1x8x32xf32>,
    return
  }
  func.func @transform_0(%arg0: i32) -> (i32, i32, i32) {
    %c0_i32 = arith.constant 0 : i32
    %c0_i32_0 = arith.constant 0 : i32
    %c0_i32_1 = arith.constant 0 : i32
    return %arg0, %c0_i32, %c0_i32_0 : i32, i32, i32
  }
  func.func @transform_1(%arg0: i32) -> (i32, i32, i32) {
    %c0_i32 = arith.constant 0 : i32
    %c0_i32_0 = arith.constant 0 : i32
    %c0_i32_1 = arith.constant 0 : i32
    return %arg0, %c0_i32, %c0_i32_0 : i32, i32, i32
  }
  func.func @transform_2(%arg0: i32) -> (i32, i32, i32) {
    %c0_i32 = arith.constant 0 : i32
    %c0_i32_0 = arith.constant 0 : i32
    %c0_i32_1 = arith.constant 0 : i32
    return %arg0, %c0_i32, %c0_i32_0 : i32, i32, i32
  }
  func.func @transform_3(%arg0: i32) -> (i32, i32, i32) {
    %c0_i32 = arith.constant 0 : i32
    %c0_i32_0 = arith.constant 0 : i32
    %c0_i32_1 = arith.constant 0 : i32
    return %arg0, %c0_i32, %c0_i32_0 : i32, i32, i32
  }
  func.func @transform_4(%arg0: i32) -> (i32, i32, i32) {
    %c0_i32 = arith.constant 0 : i32
    %c0_i32_0 = arith.constant 0 : i32
    %c0_i32_1 = arith.constant 0 : i32
    %c0_i32_2 = arith.constant 0 : i32
    return %c0_i32, %c0_i32_0, %c0_i32_1 : i32, i32, i32
  }
  func.func @transform_5(%arg0: i32) -> (i32, i32, i32) {
    %c0_i32 = arith.constant 0 : i32
    %c0_i32_0 = arith.constant 0 : i32
    %c0_i32_1 = arith.constant 0 : i32
    %c0_i32_2 = arith.constant 0 : i32
    return %c0_i32, %c0_i32_0, %c0_i32_1 : i32, i32, i32
  }
  func.func @transform_6(%arg0: i32) -> (i32, i32, i32) {
    %c0_i32 = arith.constant 0 : i32
    %c0_i32_0 = arith.constant 0 : i32
    %c0_i32_1 = arith.constant 0 : i32
    %c0_i32_2 = arith.constant 0 : i32
    return %c0_i32, %c0_i32_0, %c0_i32_1 : i32, i32, i32
  }
  func.func @transform_7(%arg0: i32) -> (i32, i32, i32) {
    %c0_i32 = arith.constant 0 : i32
    %c0_i32_0 = arith.constant 0 : i32
    %c0_i32_1 = arith.constant 0 : i32
    %c0_i32_2 = arith.constant 0 : i32
    return %c0_i32, %c0_i32_0, %c0_i32_1 : i32, i32, i32
  }
  func.func @transform_8(%arg0: i32) -> (i32, i32) {
    %c0_i32 = arith.constant 0 : i32
    %c0_i32_0 = arith.constant 0 : i32
    %c0_i32_1 = arith.constant 0 : i32
    return %c0_i32, %c0_i32_0 : i32, i32
  }
  func.func @transform_9(%arg0: i32) -> (i32, i32, i32) {
    %c0_i32 = arith.constant 0 : i32
    %c0_i32_0 = arith.constant 0 : i32
    %c0_i32_1 = arith.constant 0 : i32
    return %arg0, %c0_i32, %c0_i32_0 : i32, i32, i32
  }
}

</mosaic_0001>

<llo_original>
// kernel: tpu_custom_call.1
$region0: #{tpu_custom_call.1}
  #allocation0 [shape = 'u32[]', space=smem, size = 0x4, offset = 0x4, fixed_abs, tag = 'smem constant byte address 0x4 - core index']
  #allocation1 [shape = 'u32[144,128]{1,0:T(1,128)}', space=vmem, size = 0x12000, scoped, tag = 'internal scratch']
  %s0 = inlined_call_operand.vmem [shape: f32[2,8,32], index: 0, kind: input, shape index: {}]
  %s1 = inlined_call_operand.vmem [shape: f32[2,8,32], index: 1, kind: input, shape index: {}]
  %s2 = inlined_call_operand.vmem [shape: f32[2,8,32], index: 2, kind: input, shape index: {}]
  %s3 = inlined_call_operand.vmem [shape: f32[2,1,8], index: 3, kind: input, shape index: {}]
  %s4 = inlined_call_operand.vmem [shape: bf16[4,32,8], index: 4, kind: input, shape index: {}]
  %s5 = inlined_call_operand.vmem [shape: bf16[4,32,8], index: 5, kind: input, shape index: {}]
  %s6 = inlined_call_operand.vmem [shape: bf16[4,32,8], index: 6, kind: input, shape index: {}]
  %s7 = inlined_call_operand.vmem [shape: bf16[4,8,32], index: 7, kind: input, shape index: {}]
  %s8 = inlined_call_operand.vmem [shape: f32[1,32], index: 8, kind: input, shape index: {}]
  %s9 = inlined_call_operand.hbm [shape: f32[2,8,32], index: 9, kind: output, shape index: {}]
  %s10 = sld [smem:[#allocation0]]
  $region69: #{tpu_custom_call.1} parent=0
    _
  %s12 = ssub.s32 1, %s10
  %s13 = scalar_select 0, %s12, %s10
  $region1: #{tpu_custom_call.1} parent=0
    #allocation2 [shape = 'u8[8192]{0}', space=vmem, size = 0x2000, scoped, tag = 'output window, operand 0']
    #allocation3 [shape = 's32[2]{0}', space=sflag, size = 0x8, scoped, tag = 'scoped memory for tpu_custom_call.1']
    %14 = vsyncpa [#allocation3], 0
    %s15 = scalar_lea.sflag [#allocation3], 1
    %16 = vsyncpa %s15, 0
    loop: start=0, step=1, limit=4
    $region2: #{tpu_custom_call.1} parent=1 // loop_pre_header
      _
    $region3: #{tpu_custom_call.1} parent=1 // loop_header
      %s18 = sphi 0, %s22
      %p19 = scmp.ge.s32.totalorder %s18, 4
      %s28 = sphi 0, %s30
      %s31 = sphi 0, %s28
      %s32 = sphi 0, %s31
      %s48 = sphi 0, %s32
      %s54 = sphi 0, %s56
      %s57 = sphi 0, %s54
      %s58 = sphi 0, %s57
      %s74 = sphi 0, %s58
      %s80 = sphi 0, %s82
      %s83 = sphi 0, %s80
      %s84 = sphi 0, %s83
      %s100 = sphi 0, %s84
      %s106 = sphi 0, %s108
      %s109 = sphi 0, %s106
      %s110 = sphi 0, %s109
      %s126 = sphi 0, %s110
      %s130 = sphi 0, %s130
      %s132 = sphi 0, %s130
      %s133 = sphi 0, %s132
      %s147 = sphi 0, %s133
      %s151 = sphi 0, %s151
      %s153 = sphi 0, %s151
      %s154 = sphi 0, %s153
      %s168 = sphi 0, %s154
      %s172 = sphi 0, %s172
      %s174 = sphi 0, %s172
      %s175 = sphi 0, %s174
      %s189 = sphi 0, %s175
      %s193 = sphi 0, %s193
      %s195 = sphi 0, %s193
      %s196 = sphi 0, %s195
      %s210 = sphi 0, %s196
      %s214 = sphi 0, %s214
      %s216 = sphi 0, %s214
      %s217 = sphi 0, %s216
      %s231 = sphi 0, %s217
      %s237 = sphi 0, %s239
      %s240 = sphi 0, %s237
      %s241 = sphi 0, %s240
      %s257 = sphi 0, %s241
    $region4: #{tpu_custom_call.1} parent=1 // loop_header_branch
      %21 = sbr.rel (%p19) target = $region8
    $region5: #{tpu_custom_call.1} parent=1 // loop_body
      %s23 = ssub.s32 %s18, 1
      %s24 = ssub.s32 %s18, 2
      %s25 = sadd.s32 %s18, 1
      %s26 = ssub.s32 %s18, %s25
      %p27 = scmp.eq.s32.totalorder %s26, 0
      %s29 = sadd.s32 %s28, 1
      %s30 = scalar_select %p27, %s28, %s29
      %p33 = pneg %p27
      %p34 = scmp.eq.s32.totalorder %s18, 1
      %p35 = por %p33, %p34
      %p36 = scmp.ne.s32.totalorder %s28, %s31
      %p37 = scmp.eq.s32.totalorder %s18, 0
      %p38 = por %p36, %p37
      %p39 = scmp.ne.s32.totalorder %s28, %s31
      %p40 = scmp.eq.s32.totalorder %s23, 1
      %p41 = por %p39, %p40
      %p42 = scmp.ne.s32.totalorder %s31, %s32
      %p43 = scmp.eq.s32.totalorder %s23, 0
      %p44 = por %p42, %p43
      %p45 = scmp.ne.s32.totalorder %s31, %s32
      %p46 = scmp.eq.s32.totalorder %s24, 1
      %p47 = por %p45, %p46
      %p49 = scmp.ne.s32.totalorder %s32, %s48
      %p50 = scmp.eq.s32.totalorder %s24, 0
      %p51 = por %p49, %p50
      %s52 = ssub.s32 %s18, %s25
      %p53 = scmp.eq.s32.totalorder %s52, 0
      %s55 = sadd.s32 %s54, 1
      %s56 = scalar_select %p53, %s54, %s55
      %p59 = pneg %p53
      %p60 = scmp.eq.s32.totalorder %s18, 1
      %p61 = por %p59, %p60
      %p62 = scmp.ne.s32.totalorder %s54, %s57
      %p63 = scmp.eq.s32.totalorder %s18, 0
      %p64 = por %p62, %p63
      %p65 = scmp.ne.s32.totalorder %s54, %s57
      %p66 = scmp.eq.s32.totalorder %s23, 1
      %p67 = por %p65, %p66
      %p68 = scmp.ne.s32.totalorder %s57, %s58
      %p69 = scmp.eq.s32.totalorder %s23, 0
      %p70 = por %p68, %p69
      %p71 = scmp.ne.s32.totalorder %s57, %s58
      %p72 = scmp.eq.s32.totalorder %s24, 1
      %p73 = por %p71, %p72
      %p75 = scmp.ne.s32.totalorder %s58, %s74
      %p76 = scmp.eq.s32.totalorder %s24, 0
      %p77 = por %p75, %p76
      %s78 = ssub.s32 %s18, %s25
      %p79 = scmp.eq.s32.totalorder %s78, 0
      %s81 = sadd.s32 %s80, 1
      %s82 = scalar_select %p79, %s80, %s81
      %p85 = pneg %p79
      %p86 = scmp.eq.s32.totalorder %s18, 1
      %p87 = por %p85, %p86
      %p88 = scmp.ne.s32.totalorder %s80, %s83
      %p89 = scmp.eq.s32.totalorder %s18, 0
      %p90 = por %p88, %p89
      %p91 = scmp.ne.s32.totalorder %s80, %s83
      %p92 = scmp.eq.s32.totalorder %s23, 1
      %p93 = por %p91, %p92
      %p94 = scmp.ne.s32.totalorder %s83, %s84
      %p95 = scmp.eq.s32.totalorder %s23, 0
      %p96 = por %p94, %p95
      %p97 = scmp.ne.s32.totalorder %s83, %s84
      %p98 = scmp.eq.s32.totalorder %s24, 1
      %p99 = por %p97, %p98
      %p101 = scmp.ne.s32.totalorder %s84, %s100
      %p102 = scmp.eq.s32.totalorder %s24, 0
      %p103 = por %p101, %p102
      %s104 = ssub.s32 %s18, %s25
      %p105 = scmp.eq.s32.totalorder %s104, 0
      %s107 = sadd.s32 %s106, 1
      %s108 = scalar_select %p105, %s106, %s107
      %p111 = pneg %p105
      %p112 = scmp.eq.s32.totalorder %s18, 1
      %p113 = por %p111, %p112
      %p114 = scmp.ne.s32.totalorder %s106, %s109
      %p115 = scmp.eq.s32.totalorder %s18, 0
      %p116 = por %p114, %p115
      %p117 = scmp.ne.s32.totalorder %s106, %s109
      %p118 = scmp.eq.s32.totalorder %s23, 1
      %p119 = por %p117, %p118
      %p120 = scmp.ne.s32.totalorder %s109, %s110
      %p121 = scmp.eq.s32.totalorder %s23, 0
      %p122 = por %p120, %p121
      %p123 = scmp.ne.s32.totalorder %s109, %s110
      %p124 = scmp.eq.s32.totalorder %s24, 1
      %p125 = por %p123, %p124
      %p127 = scmp.ne.s32.totalorder %s110, %s126
      %p128 = scmp.eq.s32.totalorder %s24, 0
      %p129 = por %p127, %p128
      %s131 = sadd.s32 %s130, 1
      %p134 = scmp.eq.s32.totalorder %s18, 1
      %p135 = scmp.ne.s32.totalorder %s130, %s132
      %p136 = scmp.eq.s32.totalorder %s18, 0
      %p137 = por %p135, %p136
      %p138 = scmp.ne.s32.totalorder %s130, %s132
      %p139 = scmp.eq.s32.totalorder %s23, 1
      %p140 = por %p138, %p139
      %p141 = scmp.ne.s32.totalorder %s132, %s133
      %p142 = scmp.eq.s32.totalorder %s23, 0
      %p143 = por %p141, %p142
      %p144 = scmp.ne.s32.totalorder %s132, %s133
      %p145 = scmp.eq.s32.totalorder %s24, 1
      %p146 = por %p144, %p145
      %p148 = scmp.ne.s32.totalorder %s133, %s147
      %p149 = scmp.eq.s32.totalorder %s24, 0
      %p150 = por %p148, %p149
      %s152 = sadd.s32 %s151, 1
      %p155 = scmp.eq.s32.totalorder %s18, 1
      %p156 = scmp.ne.s32.totalorder %s151, %s153
      %p157 = scmp.eq.s32.totalorder %s18, 0
      %p158 = por %p156, %p157
      %p159 = scmp.ne.s32.totalorder %s151, %s153
      %p160 = scmp.eq.s32.totalorder %s23, 1
      %p161 = por %p159, %p160
      %p162 = scmp.ne.s32.totalorder %s153, %s154
      %p163 = scmp.eq.s32.totalorder %s23, 0
      %p164 = por %p162, %p163
      %p165 = scmp.ne.s32.totalorder %s153, %s154
      %p166 = scmp.eq.s32.totalorder %s24, 1
      %p167 = por %p165, %p166
      %p169 = scmp.ne.s32.totalorder %s154, %s168
      %p170 = scmp.eq.s32.totalorder %s24, 0
      %p171 = por %p169, %p170
      %s173 = sadd.s32 %s172, 1
      %p176 = scmp.eq.s32.totalorder %s18, 1
      %p177 = scmp.ne.s32.totalorder %s172, %s174
      %p178 = scmp.eq.s32.totalorder %s18, 0
      %p179 = por %p177, %p178
      %p180 = scmp.ne.s32.totalorder %s172, %s174
      %p181 = scmp.eq.s32.totalorder %s23, 1
      %p182 = por %p180, %p181
      %p183 = scmp.ne.s32.totalorder %s174, %s175
      %p184 = scmp.eq.s32.totalorder %s23, 0
      %p185 = por %p183, %p184
      %p186 = scmp.ne.s32.totalorder %s174, %s175
      %p187 = scmp.eq.s32.totalorder %s24, 1
      %p188 = por %p186, %p187
      %p190 = scmp.ne.s32.totalorder %s175, %s189
      %p191 = scmp.eq.s32.totalorder %s24, 0
      %p192 = por %p190, %p191
      %s194 = sadd.s32 %s193, 1
      %p197 = scmp.eq.s32.totalorder %s18, 1
      %p198 = scmp.ne.s32.totalorder %s193, %s195
      %p199 = scmp.eq.s32.totalorder %s18, 0
      %p200 = por %p198, %p199
      %p201 = scmp.ne.s32.totalorder %s193, %s195
      %p202 = scmp.eq.s32.totalorder %s23, 1
      %p203 = por %p201, %p202
      %p204 = scmp.ne.s32.totalorder %s195, %s196
      %p205 = scmp.eq.s32.totalorder %s23, 0
      %p206 = por %p204, %p205
      %p207 = scmp.ne.s32.totalorder %s195, %s196
      %p208 = scmp.eq.s32.totalorder %s24, 1
      %p209 = por %p207, %p208
      %p211 = scmp.ne.s32.totalorder %s196, %s210
      %p212 = scmp.eq.s32.totalorder %s24, 0
      %p213 = por %p211, %p212
      %s215 = sadd.s32 %s214, 1
      %p218 = scmp.eq.s32.totalorder %s18, 1
      %p219 = scmp.ne.s32.totalorder %s214, %s216
      %p220 = scmp.eq.s32.totalorder %s18, 0
      %p221 = por %p219, %p220
      %p222 = scmp.ne.s32.totalorder %s214, %s216
      %p223 = scmp.eq.s32.totalorder %s23, 1
      %p224 = por %p222, %p223
      %p225 = scmp.ne.s32.totalorder %s216, %s217
      %p226 = scmp.eq.s32.totalorder %s23, 0
      %p227 = por %p225, %p226
      %p228 = scmp.ne.s32.totalorder %s216, %s217
      %p229 = scmp.eq.s32.totalorder %s24, 1
      %p230 = por %p228, %p229
      %p232 = scmp.ne.s32.totalorder %s217, %s231
      %p233 = scmp.eq.s32.totalorder %s24, 0
      %p234 = por %p232, %p233
      %s235 = ssub.s32 %s18, %s25
      %p236 = scmp.eq.s32.totalorder %s235, 0
      %s238 = sadd.s32 %s237, 1
      %s239 = scalar_select %p236, %s237, %s238
      %p242 = pneg %p236
      %p243 = scmp.eq.s32.totalorder %s18, 1
      %p244 = por %p242, %p243
      %p245 = scmp.ne.s32.totalorder %s237, %s240
      %p246 = scmp.eq.s32.totalorder %s18, 0
      %p247 = por %p245, %p246
      %p248 = scmp.ne.s32.totalorder %s237, %s240
      %p249 = scmp.eq.s32.totalorder %s23, 1
      %p250 = por %p248, %p249
      %p251 = scmp.ne.s32.totalorder %s240, %s241
      %p252 = scmp.eq.s32.totalorder %s23, 0
      %p253 = por %p251, %p252
      %p254 = scmp.ne.s32.totalorder %s240, %s241
      %p255 = scmp.eq.s32.totalorder %s24, 1
      %p256 = por %p254, %p255
      %p258 = scmp.ne.s32.totalorder %s241, %s257
      %p259 = scmp.eq.s32.totalorder %s24, 0
      %p260 = por %p258, %p259
      %p261 = scmp.le.s32.totalorder 1, %s18
      %p262 = scmp.lt.s32.totalorder %s18, 3
      %p263 = pnand %p261, %p262
      %p264 = pneg %p263
      // Predicated region
      $region9: #{tpu_custom_call.1} parent=5 // pred_check
        _
      $region10: #{tpu_custom_call.1} parent=5 // pred_check_branch
        %266 = sbr.rel (%p263) target = $region12
      $region11: #{tpu_custom_call.1} parent=5 // pred_region
        %s267 = ssub.s32 %s18, 1
        // Predicated region
        $region13: #{tpu_custom_call.1} parent=11 // pred_check
          %p268 = pneg %p143
        $region14: #{tpu_custom_call.1} parent=11 // pred_check_branch
          %270 = sbr.rel (%p268) target = $region16
        $region15: #{tpu_custom_call.1} parent=11 // pred_region
          _
        $region16: #{tpu_custom_call.1} parent=11 // pred_fallthru
          _
        // Predicated region
        $region17: #{tpu_custom_call.1} parent=11 // pred_check
          %p271 = pneg %p164
        $region18: #{tpu_custom_call.1} parent=11 // pred_check_branch
          %273 = sbr.rel (%p271) target = $region20
        $region19: #{tpu_custom_call.1} parent=11 // pred_region
          _
        $region20: #{tpu_custom_call.1} parent=11 // pred_fallthru
          _
        // Predicated region
        $region21: #{tpu_custom_call.1} parent=11 // pred_check
          %p274 = pneg %p185
        $region22: #{tpu_custom_call.1} parent=11 // pred_check_branch
          %276 = sbr.rel (%p274) target = $region24
        $region23: #{tpu_custom_call.1} parent=11 // pred_region
          _
        $region24: #{tpu_custom_call.1} parent=11 // pred_fallthru
          _
        // Predicated region
        $region25: #{tpu_custom_call.1} parent=11 // pred_check
          %p277 = pneg %p206
        $region26: #{tpu_custom_call.1} parent=11 // pred_check_branch
          %279 = sbr.rel (%p277) target = $region28
        $region27: #{tpu_custom_call.1} parent=11 // pred_region
          _
        $region28: #{tpu_custom_call.1} parent=11 // pred_fallthru
          _
        // Predicated region
        $region29: #{tpu_custom_call.1} parent=11 // pred_check
          %p280 = pneg %p227
        $region30: #{tpu_custom_call.1} parent=11 // pred_check_branch
          %282 = sbr.rel (%p280) target = $region32
        $region31: #{tpu_custom_call.1} parent=11 // pred_region
          _
        $region32: #{tpu_custom_call.1} parent=11 // pred_fallthru
          _
      $region12: #{tpu_custom_call.1} parent=5 // pred_fallthru
        _
      %p283 = scmp.lt.s32.totalorder %s18, 2
      // Predicated region
      $region33: #{tpu_custom_call.1} parent=5 // pred_check
        %p284 = pneg %p283
      $region34: #{tpu_custom_call.1} parent=5 // pred_check_branch
        %286 = sbr.rel (%p284) target = $region36
      $region35: #{tpu_custom_call.1} parent=5 // pred_region
        // Predicated region
        $region37: #{tpu_custom_call.1} parent=35 // pred_check
          %p287 = pneg %p38
        $region38: #{tpu_custom_call.1} parent=35 // pred_check_branch
          %289 = sbr.rel (%p287) target = $region40
        $region39: #{tpu_custom_call.1} parent=35 // pred_region
          %p290 = scmp.lt.s32.totalorder %s18, 1
          %s291 = scalar_select %p290, %s18, 1
          %s292 = smul.addr %s291, 8
          %s293 = scalar_lea.vmem %s0, %s292
        $region40: #{tpu_custom_call.1} parent=35 // pred_fallthru
          _
        // Predicated region
        $region41: #{tpu_custom_call.1} parent=35 // pred_check
          %p294 = pneg %p64
        $region42: #{tpu_custom_call.1} parent=35 // pred_check_branch
          %296 = sbr.rel (%p294) target = $region44
        $region43: #{tpu_custom_call.1} parent=35 // pred_region
          %p297 = scmp.lt.s32.totalorder %s18, 1
          %s298 = scalar_select %p297, %s18, 1
          %s299 = smul.addr %s298, 8
          %s300 = scalar_lea.vmem %s1, %s299
        $region44: #{tpu_custom_call.1} parent=35 // pred_fallthru
          _
        // Predicated region
        $region45: #{tpu_custom_call.1} parent=35 // pred_check
          %p301 = pneg %p90
        $region46: #{tpu_custom_call.1} parent=35 // pred_check_branch
          %303 = sbr.rel (%p301) target = $region48
        $region47: #{tpu_custom_call.1} parent=35 // pred_region
          %p304 = scmp.lt.s32.totalorder %s18, 1
          %s305 = scalar_select %p304, %s18, 1
          %s306 = smul.addr %s305, 8
          %s307 = scalar_lea.vmem %s2, %s306
        $region48: #{tpu_custom_call.1} parent=35 // pred_fallthru
          _
        // Predicated region
        $region49: #{tpu_custom_call.1} parent=35 // pred_check
          %p308 = pneg %p116
        $region50: #{tpu_custom_call.1} parent=35 // pred_check_branch
          %310 = sbr.rel (%p308) target = $region52
        $region51: #{tpu_custom_call.1} parent=35 // pred_region
          %p311 = scmp.lt.s32.totalorder %s18, 1
          %s312 = scalar_select %p311, %s18, 1
          %s313 = scalar_lea.vmem %s3, %s312
        $region52: #{tpu_custom_call.1} parent=35 // pred_fallthru
          _
      $region36: #{tpu_custom_call.1} parent=5 // pred_fallthru
        _
      %p314 = scmp.le.s32.totalorder 1, %s18
      %p315 = scmp.lt.s32.totalorder %s18, 3
      %p316 = pnand %p314, %p315
      %p317 = pneg %p316
      // Predicated region
      $region53: #{tpu_custom_call.1} parent=5 // pred_check
        _
      $region54: #{tpu_custom_call.1} parent=5 // pred_check_branch
        %319 = sbr.rel (%p316) target = $region56
      $region55: #{tpu_custom_call.1} parent=5 // pred_region
        %s320 = ssub.s32 %s18, 1
        %p321 = scmp.lt.s32.totalorder %s23, 1
        %s322 = scalar_select %p321, %s23, 1
        %s323 = smul.addr %s322, 8
        %s324 = scalar_lea.vmem %s0, %s323
        %p325 = pneg %p44
        %p326 = pneg %p41
        %p327 = scmp.lt.s32.totalorder %s23, 1
        %s328 = scalar_select %p327, %s23, 1
        %s329 = smul.addr %s328, 8
        %s330 = scalar_lea.vmem %s1, %s329
        %p331 = pneg %p70
        %p332 = pneg %p67
        %p333 = scmp.lt.s32.totalorder %s23, 1
        %s334 = scalar_select %p333, %s23, 1
        %s335 = smul.addr %s334, 8
        %s336 = scalar_lea.vmem %s2, %s335
        %p337 = pneg %p96
        %p338 = pneg %p93
        %p339 = scmp.lt.s32.totalorder %s23, 1
        %s340 = scalar_select %p339, %s23, 1
        %s341 = scalar_lea.vmem %s3, %s340
        %p342 = pneg %p122
        %p343 = pneg %p119
        %p344 = pneg %p143
        %p345 = pneg %p140
        %p346 = pneg %p164
        %p347 = pneg %p161
        %p348 = pneg %p185
        %p349 = pneg %p182
        %p350 = pneg %p206
        %p351 = pneg %p203
        %p352 = pneg %p227
        %p353 = pneg %p224
        %p354 = pneg %p253
        %p355 = pneg %p250
        %s356 = sand.u32 %s240, 1
        %s357 = scalar_lea.sflag [#allocation3], %s356
        %s358 = sand.u32 %s240, 1
        %s359 = smul.addr %s358, 8
        %s360 = scalar_lea.vmem [#allocation2], %s359
        %p361 = scmp.lt.s32.totalorder %s23, 1
        %s362 = scalar_select %p361, %s23, 1
        %s363 = smul.addr %s362, 8
        %s364 = scalar_lea.vmem %s0, %s363
        %p365 = scmp.lt.s32.totalorder %s23, 1
        %s366 = scalar_select %p365, %s23, 1
        %s367 = smul.addr %s366, 8
        %s368 = scalar_lea.vmem %s1, %s367
        %p369 = scmp.lt.s32.totalorder %s23, 1
        %s370 = scalar_select %p369, %s23, 1
        %s371 = smul.addr %s370, 8
        %s372 = scalar_lea.vmem %s2, %s371
        %p373 = scmp.lt.s32.totalorder %s23, 1
        %s374 = scalar_select %p373, %s23, 1
        %s375 = scalar_lea.vmem %s3, %s374
        %v377 = vld [vmem:[%s364] sm:$0xff]
        %v378 = vld [vmem:[%s368] sm:$0xff]
        %v379 = vld [vmem:[%s372] sm:$0xff]
        %v380 = vld [vmem:[%s375] sm:$0x1]
        %v381 = vpack.c.bf16 %v377, %v377
        %v382 = vpack.c.bf16 %v378, %v378
        %v383 = vpack.c.bf16 %v379, %v379
        %v384 = vld [vmem:[%s4] sm:$0xf]
        %v385 = vld [vmem:[%s4 + $0x4] sm:$0xf]
        %v386 = vld [vmem:[%s4 + $0x8] sm:$0xf]
        %v387 = vld [vmem:[%s4 + $0xc] sm:$0xf]
        %v388 = vld [vmem:[%s4 + $0x10] sm:$0xf]
        %v389 = vld [vmem:[%s4 + $0x14] sm:$0xf]
        %v390 = vld [vmem:[%s4 + $0x18] sm:$0xf]
        %v391 = vld [vmem:[%s4 + $0x1c] sm:$0xf]
        %v392 = vld [vmem:[%s4 + $0x20] sm:$0xf]
        %v393 = vld [vmem:[%s4 + $0x24] sm:$0xf]
        %v394 = vld [vmem:[%s4 + $0x28] sm:$0xf]
        %v395 = vld [vmem:[%s4 + $0x2c] sm:$0xf]
        %v396 = vld [vmem:[%s4 + $0x30] sm:$0xf]
        %v397 = vld [vmem:[%s4 + $0x34] sm:$0xf]
        %v398 = vld [vmem:[%s4 + $0x38] sm:$0xf]
        %v399 = vld [vmem:[%s4 + $0x3c] sm:$0xf]
        %v404 = vunpack.c.l.b16 %v384
        %v405 = vunpack.c.l.b16 %v385
        %v406 = vunpack.c.l.b16 %v386
        %v407 = vunpack.c.l.b16 %v387
        %v408 = vpack.c.b16 %v405, %v404
        %v409 = vpack.c.b16 %v407, %v406
        %vm412 = vcmask 261120
        %v414 = vsel %vm412, %v381, 0
        %416 = vmatprep.subr.bf16.mxu0 0
        %417 = vmatpush1.bf16.msra.mxu0 %v408
        %418 = vmatprep.subr.bf16.mxu0 0
        %419 = vmatpush1.bf16.msra.mxu0 %v409
        %420 = vmatprep.subr.bf16.mxu0 0
        %421 = vmatpush1.bf16.msra.mxu0 0
        %422 = vmatprep.subr.bf16.mxu0 0
        %423 = vmatpush1.bf16.msra.mxu0 0
        %424 = vmatprep.subr.bf16.mxu0 0
        %425 = vmatpush1.bf16.msra.mxu0 0
        %426 = vmatprep.subr.bf16.mxu0 0
        %427 = vmatpush1.bf16.msra.mxu0 0
        %428 = vmatprep.subr.bf16.mxu0 0
        %429 = vmatpush1.bf16.msra.mxu0 0
        %430 = vmatprep.subr.bf16.mxu0 0
        %431 = vmatpush1.bf16.msra.mxu0 0
        %432 = vmatprep.subr.bf16.mxu0 0
        %433 = vmatpush1.bf16.msra.mxu0 0
        %434 = vmatprep.subr.bf16.mxu0 0
        %435 = vmatpush1.bf16.msra.mxu0 0
        %436 = vmatprep.subr.bf16.mxu0 0
        %437 = vmatpush1.bf16.msra.mxu0 0
        %438 = vmatprep.subr.bf16.mxu0 0
        %439 = vmatpush1.bf16.msra.mxu0 0
        %440 = vmatprep.subr.bf16.mxu0 0
        %441 = vmatpush1.bf16.msra.mxu0 0
        %442 = vmatprep.subr.bf16.mxu0 0
        %443 = vmatpush1.bf16.msra.mxu0 0
        %444 = vmatprep.subr.bf16.mxu0 0
        %445 = vmatpush1.bf16.msra.mxu0 0
        %446 = vmatprep.subr.bf16.mxu0 0
        %447 = vmatpush1.bf16.msra.mxu0 0
        %448 = vmatprep.mubr.bf16.mxu0 0
        %449 = vmatmul.mubr.bf16.gmra.mrb[0].mxu0 %v414
        %v450 = vpop.f32.mrb[0].mxu0
        %v451 = vadd.f32 0.0, %v450
        %v452 = vpop.f32.mrb[0].mxu0
        %v453 = vpop.f32.mrb[0].mxu0
        %v454 = vpop.f32.mrb[0].mxu0
        %455 = vdwg.mxu0
        %v460 = vunpack.c.l.b16 %v388
        %v461 = vunpack.c.l.b16 %v389
        %v462 = vunpack.c.l.b16 %v390
        %v463 = vunpack.c.l.b16 %v391
        %v464 = vpack.c.b16 %v461, %v460
        %v465 = vpack.c.b16 %v463, %v462
        %468 = vmatprep.subr.bf16.mxu0 0
        %469 = vmatpush1.bf16.msra.mxu0 %v464
        %470 = vmatprep.subr.bf16.mxu0 0
        %471 = vmatpush1.bf16.msra.mxu0 %v465
        %472 = vmatprep.subr.bf16.mxu0 0
        %473 = vmatpush1.bf16.msra.mxu0 0
        %474 = vmatprep.subr.bf16.mxu0 0
        %475 = vmatpush1.bf16.msra.mxu0 0
        %476 = vmatprep.subr.bf16.mxu0 0
        %477 = vmatpush1.bf16.msra.mxu0 0
        %478 = vmatprep.subr.bf16.mxu0 0
        %479 = vmatpush1.bf16.msra.mxu0 0
        %480 = vmatprep.subr.bf16.mxu0 0
        %481 = vmatpush1.bf16.msra.mxu0 0
        %482 = vmatprep.subr.bf16.mxu0 0
        %483 = vmatpush1.bf16.msra.mxu0 0
        %484 = vmatprep.subr.bf16.mxu0 0
        %485 = vmatpush1.bf16.msra.mxu0 0
        %486 = vmatprep.subr.bf16.mxu0 0
        %487 = vmatpush1.bf16.msra.mxu0 0
        %488 = vmatprep.subr.bf16.mxu0 0
        %489 = vmatpush1.bf16.msra.mxu0 0
        %490 = vmatprep.subr.bf16.mxu0 0
        %491 = vmatpush1.bf16.msra.mxu0 0
        %492 = vmatprep.subr.bf16.mxu0 0
        %493 = vmatpush1.bf16.msra.mxu0 0
        %494 = vmatprep.subr.bf16.mxu0 0
        %495 = vmatpush1.bf16.msra.mxu0 0
        %496 = vmatprep.subr.bf16.mxu0 0
        %497 = vmatpush1.bf16.msra.mxu0 0
        %498 = vmatprep.subr.bf16.mxu0 0
        %499 = vmatpush1.bf16.msra.mxu0 0
        %500 = vmatprep.mubr.bf16.mxu0 0
        %501 = vmatmul.mubr.bf16.gmra.mrb[0].mxu0 %v414
        %v502 = vpop.f32.mrb[0].mxu0
        %v503 = vadd.f32 0.0, %v502
        %v504 = vpop.f32.mrb[0].mxu0
        %v505 = vpop.f32.mrb[0].mxu0
        %v506 = vpop.f32.mrb[0].mxu0
        %507 = vdwg.mxu0
        %v512 = vunpack.c.l.b16 %v392
        %v513 = vunpack.c.l.b16 %v393
        %v514 = vunpack.c.l.b16 %v394
        %v515 = vunpack.c.l.b16 %v395
        %v516 = vpack.c.b16 %v513, %v512
        %v517 = vpack.c.b16 %v515, %v514
        %520 = vmatprep.subr.bf16.mxu0 0
        %521 = vmatpush1.bf16.msra.mxu0 %v516
        %522 = vmatprep.subr.bf16.mxu0 0
        %523 = vmatpush1.bf16.msra.mxu0 %v517
        %524 = vmatprep.subr.bf16.mxu0 0
        %525 = vmatpush1.bf16.msra.mxu0 0
        %526 = vmatprep.subr.bf16.mxu0 0
        %527 = vmatpush1.bf16.msra.mxu0 0
        %528 = vmatprep.subr.bf16.mxu0 0
        %529 = vmatpush1.bf16.msra.mxu0 0
        %530 = vmatprep.subr.bf16.mxu0 0
        %531 = vmatpush1.bf16.msra.mxu0 0
        %532 = vmatprep.subr.bf16.mxu0 0
        %533 = vmatpush1.bf16.msra.mxu0 0
        %534 = vmatprep.subr.bf16.mxu0 0
        %535 = vmatpush1.bf16.msra.mxu0 0
        %536 = vmatprep.subr.bf16.mxu0 0
        %537 = vmatpush1.bf16.msra.mxu0 0
        %538 = vmatprep.subr.bf16.mxu0 0
        %539 = vmatpush1.bf16.msra.mxu0 0
        %540 = vmatprep.subr.bf16.mxu0 0
        %541 = vmatpush1.bf16.msra.mxu0 0
        %542 = vmatprep.subr.bf16.mxu0 0
        %543 = vmatpush1.bf16.msra.mxu0 0
        %544 = vmatprep.subr.bf16.mxu0 0
        %545 = vmatpush1.bf16.msra.mxu0 0
        %546 = vmatprep.subr.bf16.mxu0 0
        %547 = vmatpush1.bf16.msra.mxu0 0
        %548 = vmatprep.subr.bf16.mxu0 0
        %549 = vmatpush1.bf16.msra.mxu0 0
        %550 = vmatprep.subr.bf16.mxu0 0
        %551 = vmatpush1.bf16.msra.mxu0 0
        %552 = vmatprep.mubr.bf16.mxu0 0
        %553 = vmatmul.mubr.bf16.gmra.mrb[0].mxu0 %v414
        %v554 = vpop.f32.mrb[0].mxu0
        %v555 = vadd.f32 0.0, %v554
        %v556 = vpop.f32.mrb[0].mxu0
        %v557 = vpop.f32.mrb[0].mxu0
        %v558 = vpop.f32.mrb[0].mxu0
        %559 = vdwg.mxu0
        %v564 = vunpack.c.l.b16 %v396
        %v565 = vunpack.c.l.b16 %v397
        %v566 = vunpack.c.l.b16 %v398
        %v567 = vunpack.c.l.b16 %v399
        %v568 = vpack.c.b16 %v565, %v564
        %v569 = vpack.c.b16 %v567, %v566
        %572 = vmatprep.subr.bf16.mxu0 0
        %573 = vmatpush1.bf16.msra.mxu0 %v568
        %574 = vmatprep.subr.bf16.mxu0 0
        %575 = vmatpush1.bf16.msra.mxu0 %v569
        %576 = vmatprep.subr.bf16.mxu0 0
        %577 = vmatpush1.bf16.msra.mxu0 0
        %578 = vmatprep.subr.bf16.mxu0 0
        %579 = vmatpush1.bf16.msra.mxu0 0
        %580 = vmatprep.subr.bf16.mxu0 0
        %581 = vmatpush1.bf16.msra.mxu0 0
        %582 = vmatprep.subr.bf16.mxu0 0
        %583 = vmatpush1.bf16.msra.mxu0 0
        %584 = vmatprep.subr.bf16.mxu0 0
        %585 = vmatpush1.bf16.msra.mxu0 0
        %586 = vmatprep.subr.bf16.mxu0 0
        %587 = vmatpush1.bf16.msra.mxu0 0
        %588 = vmatprep.subr.bf16.mxu0 0
        %589 = vmatpush1.bf16.msra.mxu0 0
        %590 = vmatprep.subr.bf16.mxu0 0
        %591 = vmatpush1.bf16.msra.mxu0 0
        %592 = vmatprep.subr.bf16.mxu0 0
        %593 = vmatpush1.bf16.msra.mxu0 0
        %594 = vmatprep.subr.bf16.mxu0 0
        %595 = vmatpush1.bf16.msra.mxu0 0
        %596 = vmatprep.subr.bf16.mxu0 0
        %597 = vmatpush1.bf16.msra.mxu0 0
        %598 = vmatprep.subr.bf16.mxu0 0
        %599 = vmatpush1.bf16.msra.mxu0 0
        %600 = vmatprep.subr.bf16.mxu0 0
        %601 = vmatpush1.bf16.msra.mxu0 0
        %602 = vmatprep.subr.bf16.mxu0 0
        %603 = vmatpush1.bf16.msra.mxu0 0
        %604 = vmatprep.mubr.bf16.mxu0 0
        %605 = vmatmul.mubr.bf16.gmra.mrb[0].mxu0 %v414
        %v606 = vpop.f32.mrb[0].mxu0
        %v607 = vadd.f32 0.0, %v606
        %v608 = vpop.f32.mrb[0].mxu0
        %v609 = vpop.f32.mrb[0].mxu0
        %v610 = vpop.f32.mrb[0].mxu0
        %611 = vdwg.mxu0
        %v612 = vmul.f32 %v451, 0.35355338
        %v613 = vmul.f32 %v503, 0.35355338
        %v614 = vmul.f32 %v555, 0.35355338
        %v615 = vmul.f32 %v607, 0.35355338
        %v616 = vpack.c.bf16 %v612, %v612
        %v617 = vpack.c.bf16 %v613, %v613
        %v618 = vpack.c.bf16 %v614, %v614
        %v619 = vpack.c.bf16 %v615, %v615
        %v620 = vld [vmem:[%s5] sm:$0xf]
        %v621 = vld [vmem:[%s5 + $0x4] sm:$0xf]
        %v622 = vld [vmem:[%s5 + $0x8] sm:$0xf]
        %v623 = vld [vmem:[%s5 + $0xc] sm:$0xf]
        %v624 = vld [vmem:[%s5 + $0x10] sm:$0xf]
        %v625 = vld [vmem:[%s5 + $0x14] sm:$0xf]
        %v626 = vld [vmem:[%s5 + $0x18] sm:$0xf]
        %v627 = vld [vmem:[%s5 + $0x1c] sm:$0xf]
        %v628 = vld [vmem:[%s5 + $0x20] sm:$0xf]
        %v629 = vld [vmem:[%s5 + $0x24] sm:$0xf]
        %v630 = vld [vmem:[%s5 + $0x28] sm:$0xf]
        %v631 = vld [vmem:[%s5 + $0x2c] sm:$0xf]
        %v632 = vld [vmem:[%s5 + $0x30] sm:$0xf]
        %v633 = vld [vmem:[%s5 + $0x34] sm:$0xf]
        %v634 = vld [vmem:[%s5 + $0x38] sm:$0xf]
        %v635 = vld [vmem:[%s5 + $0x3c] sm:$0xf]
        %v640 = vunpack.c.l.b16 %v620
        %v641 = vunpack.c.l.b16 %v621
        %v642 = vunpack.c.l.b16 %v622
        %v643 = vunpack.c.l.b16 %v623
        %v644 = vpack.c.b16 %v641, %v640
        %v645 = vpack.c.b16 %v643, %v642
        %v649 = vsel %vm412, %v382, 0
        %651 = vmatprep.subr.bf16.mxu0 0
        %652 = vmatpush1.bf16.msra.mxu0 %v644
        %653 = vmatprep.subr.bf16.mxu0 0
        %654 = vmatpush1.bf16.msra.mxu0 %v645
        %655 = vmatprep.subr.bf16.mxu0 0
        %656 = vmatpush1.bf16.msra.mxu0 0
        %657 = vmatprep.subr.bf16.mxu0 0
        %658 = vmatpush1.bf16.msra.mxu0 0
        %659 = vmatprep.subr.bf16.mxu0 0
        %660 = vmatpush1.bf16.msra.mxu0 0
        %661 = vmatprep.subr.bf16.mxu0 0
        %662 = vmatpush1.bf16.msra.mxu0 0
        %663 = vmatprep.subr.bf16.mxu0 0
        %664 = vmatpush1.bf16.msra.mxu0 0
        %665 = vmatprep.subr.bf16.mxu0 0
        %666 = vmatpush1.bf16.msra.mxu0 0
        %667 = vmatprep.subr.bf16.mxu0 0
        %668 = vmatpush1.bf16.msra.mxu0 0
        %669 = vmatprep.subr.bf16.mxu0 0
        %670 = vmatpush1.bf16.msra.mxu0 0
        %671 = vmatprep.subr.bf16.mxu0 0
        %672 = vmatpush1.bf16.msra.mxu0 0
        %673 = vmatprep.subr.bf16.mxu0 0
        %674 = vmatpush1.bf16.msra.mxu0 0
        %675 = vmatprep.subr.bf16.mxu0 0
        %676 = vmatpush1.bf16.msra.mxu0 0
        %677 = vmatprep.subr.bf16.mxu0 0
        %678 = vmatpush1.bf16.msra.mxu0 0
        %679 = vmatprep.subr.bf16.mxu0 0
        %680 = vmatpush1.bf16.msra.mxu0 0
        %681 = vmatprep.subr.bf16.mxu0 0
        %682 = vmatpush1.bf16.msra.mxu0 0
        %683 = vmatprep.mubr.bf16.mxu0 0
        %684 = vmatmul.mubr.bf16.gmra.mrb[0].mxu0 %v649
        %v685 = vpop.f32.mrb[0].mxu0
        %v686 = vadd.f32 0.0, %v685
        %v687 = vpop.f32.mrb[0].mxu0
        %v688 = vpop.f32.mrb[0].mxu0
        %v689 = vpop.f32.mrb[0].mxu0
        %690 = vdwg.mxu0
        %v695 = vunpack.c.l.b16 %v624
        %v696 = vunpack.c.l.b16 %v625
        %v697 = vunpack.c.l.b16 %v626
        %v698 = vunpack.c.l.b16 %v627
        %v699 = vpack.c.b16 %v696, %v695
        %v700 = vpack.c.b16 %v698, %v697
        %703 = vmatprep.subr.bf16.mxu0 0
        %704 = vmatpush1.bf16.msra.mxu0 %v699
        %705 = vmatprep.subr.bf16.mxu0 0
        %706 = vmatpush1.bf16.msra.mxu0 %v700
        %707 = vmatprep.subr.bf16.mxu0 0
        %708 = vmatpush1.bf16.msra.mxu0 0
        %709 = vmatprep.subr.bf16.mxu0 0
        %710 = vmatpush1.bf16.msra.mxu0 0
        %711 = vmatprep.subr.bf16.mxu0 0
        %712 = vmatpush1.bf16.msra.mxu0 0
        %713 = vmatprep.subr.bf16.mxu0 0
        %714 = vmatpush1.bf16.msra.mxu0 0
        %715 = vmatprep.subr.bf16.mxu0 0
        %716 = vmatpush1.bf16.msra.mxu0 0
        %717 = vmatprep.subr.bf16.mxu0 0
        %718 = vmatpush1.bf16.msra.mxu0 0
        %719 = vmatprep.subr.bf16.mxu0 0
        %720 = vmatpush1.bf16.msra.mxu0 0
        %721 = vmatprep.subr.bf16.mxu0 0
        %722 = vmatpush1.bf16.msra.mxu0 0
        %723 = vmatprep.subr.bf16.mxu0 0
        %724 = vmatpush1.bf16.msra.mxu0 0
        %725 = vmatprep.subr.bf16.mxu0 0
        %726 = vmatpush1.bf16.msra.mxu0 0
        %727 = vmatprep.subr.bf16.mxu0 0
        %728 = vmatpush1.bf16.msra.mxu0 0
        %729 = vmatprep.subr.bf16.mxu0 0
        %730 = vmatpush1.bf16.msra.mxu0 0
        %731 = vmatprep.subr.bf16.mxu0 0
        %732 = vmatpush1.bf16.msra.mxu0 0
        %733 = vmatprep.subr.bf16.mxu0 0
        %734 = vmatpush1.bf16.msra.mxu0 0
        %735 = vmatprep.mubr.bf16.mxu0 0
        %736 = vmatmul.mubr.bf16.gmra.mrb[0].mxu0 %v649
        %v737 = vpop.f32.mrb[0].mxu0
        %v738 = vadd.f32 0.0, %v737
        %v739 = vpop.f32.mrb[0].mxu0
        %v740 = vpop.f32.mrb[0].mxu0
        %v741 = vpop.f32.mrb[0].mxu0
        %742 = vdwg.mxu0
        %v747 = vunpack.c.l.b16 %v628
        %v748 = vunpack.c.l.b16 %v629
        %v749 = vunpack.c.l.b16 %v630
        %v750 = vunpack.c.l.b16 %v631
        %v751 = vpack.c.b16 %v748, %v747
        %v752 = vpack.c.b16 %v750, %v749
        %755 = vmatprep.subr.bf16.mxu0 0
        %756 = vmatpush1.bf16.msra.mxu0 %v751
        %757 = vmatprep.subr.bf16.mxu0 0
        %758 = vmatpush1.bf16.msra.mxu0 %v752
        %759 = vmatprep.subr.bf16.mxu0 0
        %760 = vmatpush1.bf16.msra.mxu0 0
        %761 = vmatprep.subr.bf16.mxu0 0
        %762 = vmatpush1.bf16.msra.mxu0 0
        %763 = vmatprep.subr.bf16.mxu0 0
        %764 = vmatpush1.bf16.msra.mxu0 0
        %765 = vmatprep.subr.bf16.mxu0 0
        %766 = vmatpush1.bf16.msra.mxu0 0
        %767 = vmatprep.subr.bf16.mxu0 0
        %768 = vmatpush1.bf16.msra.mxu0 0
        %769 = vmatprep.subr.bf16.mxu0 0
        %770 = vmatpush1.bf16.msra.mxu0 0
        %771 = vmatprep.subr.bf16.mxu0 0
        %772 = vmatpush1.bf16.msra.mxu0 0
        %773 = vmatprep.subr.bf16.mxu0 0
        %774 = vmatpush1.bf16.msra.mxu0 0
        %775 = vmatprep.subr.bf16.mxu0 0
        %776 = vmatpush1.bf16.msra.mxu0 0
        %777 = vmatprep.subr.bf16.mxu0 0
        %778 = vmatpush1.bf16.msra.mxu0 0
        %779 = vmatprep.subr.bf16.mxu0 0
        %780 = vmatpush1.bf16.msra.mxu0 0
        %781 = vmatprep.subr.bf16.mxu0 0
        %782 = vmatpush1.bf16.msra.mxu0 0
        %783 = vmatprep.subr.bf16.mxu0 0
        %784 = vmatpush1.bf16.msra.mxu0 0
        %785 = vmatprep.subr.bf16.mxu0 0
        %786 = vmatpush1.bf16.msra.mxu0 0
        %787 = vmatprep.mubr.bf16.mxu0 0
        %788 = vmatmul.mubr.bf16.gmra.mrb[0].mxu0 %v649
        %v789 = vpop.f32.mrb[0].mxu0
        %v790 = vadd.f32 0.0, %v789
        %v791 = vpop.f32.mrb[0].mxu0
        %v792 = vpop.f32.mrb[0].mxu0
        %v793 = vpop.f32.mrb[0].mxu0
        %794 = vdwg.mxu0
        %v799 = vunpack.c.l.b16 %v632
        %v800 = vunpack.c.l.b16 %v633
        %v801 = vunpack.c.l.b16 %v634
        %v802 = vunpack.c.l.b16 %v635
        %v803 = vpack.c.b16 %v800, %v799
        %v804 = vpack.c.b16 %v802, %v801
        %807 = vmatprep.subr.bf16.mxu0 0
        %808 = vmatpush1.bf16.msra.mxu0 %v803
        %809 = vmatprep.subr.bf16.mxu0 0
        %810 = vmatpush1.bf16.msra.mxu0 %v804
        %811 = vmatprep.subr.bf16.mxu0 0
        %812 = vmatpush1.bf16.msra.mxu0 0
        %813 = vmatprep.subr.bf16.mxu0 0
        %814 = vmatpush1.bf16.msra.mxu0 0
        %815 = vmatprep.subr.bf16.mxu0 0
        %816 = vmatpush1.bf16.msra.mxu0 0
        %817 = vmatprep.subr.bf16.mxu0 0
        %818 = vmatpush1.bf16.msra.mxu0 0
        %819 = vmatprep.subr.bf16.mxu0 0
        %820 = vmatpush1.bf16.msra.mxu0 0
        %821 = vmatprep.subr.bf16.mxu0 0
        %822 = vmatpush1.bf16.msra.mxu0 0
        %823 = vmatprep.subr.bf16.mxu0 0
        %824 = vmatpush1.bf16.msra.mxu0 0
        %825 = vmatprep.subr.bf16.mxu0 0
        %826 = vmatpush1.bf16.msra.mxu0 0
        %827 = vmatprep.subr.bf16.mxu0 0
        %828 = vmatpush1.bf16.msra.mxu0 0
        %829 = vmatprep.subr.bf16.mxu0 0
        %830 = vmatpush1.bf16.msra.mxu0 0
        %831 = vmatprep.subr.bf16.mxu0 0
        %832 = vmatpush1.bf16.msra.mxu0 0
        %833 = vmatprep.subr.bf16.mxu0 0
        %834 = vmatpush1.bf16.msra.mxu0 0
        %835 = vmatprep.subr.bf16.mxu0 0
        %836 = vmatpush1.bf16.msra.mxu0 0
        %837 = vmatprep.subr.bf16.mxu0 0
        %838 = vmatpush1.bf16.msra.mxu0 0
        %839 = vmatprep.mubr.bf16.mxu0 0
        %840 = vmatmul.mubr.bf16.gmra.mrb[0].mxu0 %v649
        %v841 = vpop.f32.mrb[0].mxu0
        %v842 = vadd.f32 0.0, %v841
        %v843 = vpop.f32.mrb[0].mxu0
        %v844 = vpop.f32.mrb[0].mxu0
        %v845 = vpop.f32.mrb[0].mxu0
        %846 = vdwg.mxu0
        %v847 = vpack.c.bf16 %v686, %v686
        %v848 = vpack.c.bf16 %v738, %v738
        %v849 = vpack.c.bf16 %v790, %v790
        %v850 = vpack.c.bf16 %v842, %v842
        %v851 = vld [vmem:[%s6] sm:$0xf]
        %v852 = vld [vmem:[%s6 + $0x4] sm:$0xf]
        %v853 = vld [vmem:[%s6 + $0x8] sm:$0xf]
        %v854 = vld [vmem:[%s6 + $0xc] sm:$0xf]
        %v855 = vld [vmem:[%s6 + $0x10] sm:$0xf]
        %v856 = vld [vmem:[%s6 + $0x14] sm:$0xf]
        %v857 = vld [vmem:[%s6 + $0x18] sm:$0xf]
        %v858 = vld [vmem:[%s6 + $0x1c] sm:$0xf]
        %v859 = vld [vmem:[%s6 + $0x20] sm:$0xf]
        %v860 = vld [vmem:[%s6 + $0x24] sm:$0xf]
        %v861 = vld [vmem:[%s6 + $0x28] sm:$0xf]
        %v862 = vld [vmem:[%s6 + $0x2c] sm:$0xf]
        %v863 = vld [vmem:[%s6 + $0x30] sm:$0xf]
        %v864 = vld [vmem:[%s6 + $0x34] sm:$0xf]
        %v865 = vld [vmem:[%s6 + $0x38] sm:$0xf]
        %v866 = vld [vmem:[%s6 + $0x3c] sm:$0xf]
        %v871 = vunpack.c.l.b16 %v851
        %v872 = vunpack.c.l.b16 %v852
        %v873 = vunpack.c.l.b16 %v853
        %v874 = vunpack.c.l.b16 %v854
        %v875 = vpack.c.b16 %v872, %v871
        %v876 = vpack.c.b16 %v874, %v873
        %v880 = vsel %vm412, %v383, 0
        %882 = vmatprep.subr.bf16.mxu0 0
        %883 = vmatpush1.bf16.msra.mxu0 %v875
        %884 = vmatprep.subr.bf16.mxu0 0
        %885 = vmatpush1.bf16.msra.mxu0 %v876
        %886 = vmatprep.subr.bf16.mxu0 0
        %887 = vmatpush1.bf16.msra.mxu0 0
        %888 = vmatprep.subr.bf16.mxu0 0
        %889 = vmatpush1.bf16.msra.mxu0 0
        %890 = vmatprep.subr.bf16.mxu0 0
        %891 = vmatpush1.bf16.msra.mxu0 0
        %892 = vmatprep.subr.bf16.mxu0 0
        %893 = vmatpush1.bf16.msra.mxu0 0
        %894 = vmatprep.subr.bf16.mxu0 0
        %895 = vmatpush1.bf16.msra.mxu0 0
        %896 = vmatprep.subr.bf16.mxu0 0
        %897 = vmatpush1.bf16.msra.mxu0 0
        %898 = vmatprep.subr.bf16.mxu0 0
        %899 = vmatpush1.bf16.msra.mxu0 0
        %900 = vmatprep.subr.bf16.mxu0 0
        %901 = vmatpush1.bf16.msra.mxu0 0
        %902 = vmatprep.subr.bf16.mxu0 0
        %903 = vmatpush1.bf16.msra.mxu0 0
        %904 = vmatprep.subr.bf16.mxu0 0
        %905 = vmatpush1.bf16.msra.mxu0 0
        %906 = vmatprep.subr.bf16.mxu0 0
        %907 = vmatpush1.bf16.msra.mxu0 0
        %908 = vmatprep.subr.bf16.mxu0 0
        %909 = vmatpush1.bf16.msra.mxu0 0
        %910 = vmatprep.subr.bf16.mxu0 0
        %911 = vmatpush1.bf16.msra.mxu0 0
        %912 = vmatprep.subr.bf16.mxu0 0
        %913 = vmatpush1.bf16.msra.mxu0 0
        %914 = vmatprep.mubr.bf16.mxu0 0
        %915 = vmatmul.mubr.bf16.gmra.mrb[0].mxu0 %v880
        %v916 = vpop.f32.mrb[0].mxu0
        %v917 = vadd.f32 0.0, %v916
        %v918 = vpop.f32.mrb[0].mxu0
        %v919 = vpop.f32.mrb[0].mxu0
        %v920 = vpop.f32.mrb[0].mxu0
        %921 = vdwg.mxu0
        %v926 = vunpack.c.l.b16 %v855
        %v927 = vunpack.c.l.b16 %v856
        %v928 = vunpack.c.l.b16 %v857
        %v929 = vunpack.c.l.b16 %v858
        %v930 = vpack.c.b16 %v927, %v926
        %v931 = vpack.c.b16 %v929, %v928
        %934 = vmatprep.subr.bf16.mxu0 0
        %935 = vmatpush1.bf16.msra.mxu0 %v930
        %936 = vmatprep.subr.bf16.mxu0 0
        %937 = vmatpush1.bf16.msra.mxu0 %v931
        %938 = vmatprep.subr.bf16.mxu0 0
        %939 = vmatpush1.bf16.msra.mxu0 0
        %940 = vmatprep.subr.bf16.mxu0 0
        %941 = vmatpush1.bf16.msra.mxu0 0
        %942 = vmatprep.subr.bf16.mxu0 0
        %943 = vmatpush1.bf16.msra.mxu0 0
        %944 = vmatprep.subr.bf16.mxu0 0
        %945 = vmatpush1.bf16.msra.mxu0 0
        %946 = vmatprep.subr.bf16.mxu0 0
        %947 = vmatpush1.bf16.msra.mxu0 0
        %948 = vmatprep.subr.bf16.mxu0 0
        %949 = vmatpush1.bf16.msra.mxu0 0
        %950 = vmatprep.subr.bf16.mxu0 0
        %951 = vmatpush1.bf16.msra.mxu0 0
        %952 = vmatprep.subr.bf16.mxu0 0
        %953 = vmatpush1.bf16.msra.mxu0 0
        %954 = vmatprep.subr.bf16.mxu0 0
        %955 = vmatpush1.bf16.msra.mxu0 0
        %956 = vmatprep.subr.bf16.mxu0 0
        %957 = vmatpush1.bf16.msra.mxu0 0
        %958 = vmatprep.subr.bf16.mxu0 0
        %959 = vmatpush1.bf16.msra.mxu0 0
        %960 = vmatprep.subr.bf16.mxu0 0
        %961 = vmatpush1.bf16.msra.mxu0 0
        %962 = vmatprep.subr.bf16.mxu0 0
        %963 = vmatpush1.bf16.msra.mxu0 0
        %964 = vmatprep.subr.bf16.mxu0 0
        %965 = vmatpush1.bf16.msra.mxu0 0
        %966 = vmatprep.mubr.bf16.mxu0 0
        %967 = vmatmul.mubr.bf16.gmra.mrb[0].mxu0 %v880
        %v968 = vpop.f32.mrb[0].mxu0
        %v969 = vadd.f32 0.0, %v968
        %v970 = vpop.f32.mrb[0].mxu0
        %v971 = vpop.f32.mrb[0].mxu0
        %v972 = vpop.f32.mrb[0].mxu0
        %973 = vdwg.mxu0
        %v978 = vunpack.c.l.b16 %v859
        %v979 = vunpack.c.l.b16 %v860
        %v980 = vunpack.c.l.b16 %v861
        %v981 = vunpack.c.l.b16 %v862
        %v982 = vpack.c.b16 %v979, %v978
        %v983 = vpack.c.b16 %v981, %v980
        %986 = vmatprep.subr.bf16.mxu0 0
        %987 = vmatpush1.bf16.msra.mxu0 %v982
        %988 = vmatprep.subr.bf16.mxu0 0
        %989 = vmatpush1.bf16.msra.mxu0 %v983
        %990 = vmatprep.subr.bf16.mxu0 0
        %991 = vmatpush1.bf16.msra.mxu0 0
        %992 = vmatprep.subr.bf16.mxu0 0
        %993 = vmatpush1.bf16.msra.mxu0 0
        %994 = vmatprep.subr.bf16.mxu0 0
        %995 = vmatpush1.bf16.msra.mxu0 0
        %996 = vmatprep.subr.bf16.mxu0 0
        %997 = vmatpush1.bf16.msra.mxu0 0
        %998 = vmatprep.subr.bf16.mxu0 0
        %999 = vmatpush1.bf16.msra.mxu0 0
        %1000 = vmatprep.subr.bf16.mxu0 0
        %1001 = vmatpush1.bf16.msra.mxu0 0
        %1002 = vmatprep.subr.bf16.mxu0 0
        %1003 = vmatpush1.bf16.msra.mxu0 0
        %1004 = vmatprep.subr.bf16.mxu0 0
        %1005 = vmatpush1.bf16.msra.mxu0 0
        %1006 = vmatprep.subr.bf16.mxu0 0
        %1007 = vmatpush1.bf16.msra.mxu0 0
        %1008 = vmatprep.subr.bf16.mxu0 0
        %1009 = vmatpush1.bf16.msra.mxu0 0
        %1010 = vmatprep.subr.bf16.mxu0 0
        %1011 = vmatpush1.bf16.msra.mxu0 0
        %1012 = vmatprep.subr.bf16.mxu0 0
        %1013 = vmatpush1.bf16.msra.mxu0 0
        %1014 = vmatprep.subr.bf16.mxu0 0
        %1015 = vmatpush1.bf16.msra.mxu0 0
        %1016 = vmatprep.subr.bf16.mxu0 0
        %1017 = vmatpush1.bf16.msra.mxu0 0
        %1018 = vmatprep.mubr.bf16.mxu0 0
        %1019 = vmatmul.mubr.bf16.gmra.mrb[0].mxu0 %v880
        %v1020 = vpop.f32.mrb[0].mxu0
        %v1021 = vadd.f32 0.0, %v1020
        %v1022 = vpop.f32.mrb[0].mxu0
        %v1023 = vpop.f32.mrb[0].mxu0
        %v1024 = vpop.f32.mrb[0].mxu0
        %1025 = vdwg.mxu0
        %v1030 = vunpack.c.l.b16 %v863
        %v1031 = vunpack.c.l.b16 %v864
        %v1032 = vunpack.c.l.b16 %v865
        %v1033 = vunpack.c.l.b16 %v866
        %v1034 = vpack.c.b16 %v1031, %v1030
        %v1035 = vpack.c.b16 %v1033, %v1032
        %1038 = vmatprep.subr.bf16.mxu0 0
        %1039 = vmatpush1.bf16.msra.mxu0 %v1034
        %1040 = vmatprep.subr.bf16.mxu0 0
        %1041 = vmatpush1.bf16.msra.mxu0 %v1035
        %1042 = vmatprep.subr.bf16.mxu0 0
        %1043 = vmatpush1.bf16.msra.mxu0 0
        %1044 = vmatprep.subr.bf16.mxu0 0
        %1045 = vmatpush1.bf16.msra.mxu0 0
        %1046 = vmatprep.subr.bf16.mxu0 0
        %1047 = vmatpush1.bf16.msra.mxu0 0
        %1048 = vmatprep.subr.bf16.mxu0 0
        %1049 = vmatpush1.bf16.msra.mxu0 0
        %1050 = vmatprep.subr.bf16.mxu0 0
        %1051 = vmatpush1.bf16.msra.mxu0 0
        %1052 = vmatprep.subr.bf16.mxu0 0
        %1053 = vmatpush1.bf16.msra.mxu0 0
        %1054 = vmatprep.subr.bf16.mxu0 0
        %1055 = vmatpush1.bf16.msra.mxu0 0
        %1056 = vmatprep.subr.bf16.mxu0 0
        %1057 = vmatpush1.bf16.msra.mxu0 0
        %1058 = vmatprep.subr.bf16.mxu0 0
        %1059 = vmatpush1.bf16.msra.mxu0 0
        %1060 = vmatprep.subr.bf16.mxu0 0
        %1061 = vmatpush1.bf16.msra.mxu0 0
        %1062 = vmatprep.subr.bf16.mxu0 0
        %1063 = vmatpush1.bf16.msra.mxu0 0
        %1064 = vmatprep.subr.bf16.mxu0 0
        %1065 = vmatpush1.bf16.msra.mxu0 0
        %1066 = vmatprep.subr.bf16.mxu0 0
        %1067 = vmatpush1.bf16.msra.mxu0 0
        %1068 = vmatprep.subr.bf16.mxu0 0
        %1069 = vmatpush1.bf16.msra.mxu0 0
        %1070 = vmatprep.mubr.bf16.mxu0 0
        %1071 = vmatmul.mubr.bf16.gmra.mrb[0].mxu0 %v880
        %v1072 = vpop.f32.mrb[0].mxu0
        %v1073 = vadd.f32 0.0, %v1072
        %v1074 = vpop.f32.mrb[0].mxu0
        %v1075 = vpop.f32.mrb[0].mxu0
        %v1076 = vpop.f32.mrb[0].mxu0
        %1077 = vdwg.mxu0
        %v1078 = vpack.c.bf16 %v917, %v917
        %v1079 = vpack.c.bf16 %v969, %v969
        %v1080 = vpack.c.bf16 %v1021, %v1021
        %v1081 = vpack.c.bf16 %v1073, %v1073
        %vm1082 = vcmp.eq.f32.partialorder %v380, 0.0
        %v1083 = vsel %vm1082, -1e+20, 0.0
        %v1085 = vlaneseq
        %v1086 = vshrl.u32 %v1085, 7
        %v1087 = vsub.s32 0, %v1086
        %v1088 = vrot.slane %v1083, %v1087
        %vm1090 = vcmask 64512
        %v1092 = vsel %vm1090, %v616, 0
        %v1095 = vsel %vm1090, %v847, 0
        %1097 = vmatprep.subr.bf16.mxu0 0
        %1098 = vmatpush1.bf16.xpose.msra.mxu0 %v1095
        %1099 = vmatprep.subr.bf16.mxu0 0
        %1100 = vmatpush1.bf16.xpose.msra.mxu0 0
        %1101 = vmatprep.subr.bf16.mxu0 0
        %1102 = vmatpush1.bf16.xpose.msra.mxu0 0
        %1103 = vmatprep.subr.bf16.mxu0 0
        %1104 = vmatpush1.bf16.xpose.msra.mxu0 0
        %1105 = vmatprep.subr.bf16.mxu0 0
        %1106 = vmatpush1.bf16.xpose.msra.mxu0 0
        %1107 = vmatprep.subr.bf16.mxu0 0
        %1108 = vmatpush1.bf16.xpose.msra.mxu0 0
        %1109 = vmatprep.subr.bf16.mxu0 0
        %1110 = vmatpush1.bf16.xpose.msra.mxu0 0
        %1111 = vmatprep.subr.bf16.mxu0 0
        %1112 = vmatpush1.bf16.xpose.msra.mxu0 0
        %1113 = vmatprep.subr.bf16.mxu0 0
        %1114 = vmatpush1.bf16.xpose.msra.mxu0 0
        %1115 = vmatprep.subr.bf16.mxu0 0
        %1116 = vmatpush1.bf16.xpose.msra.mxu0 0
        %1117 = vmatprep.subr.bf16.mxu0 0
        %1118 = vmatpush1.bf16.xpose.msra.mxu0 0
        %1119 = vmatprep.subr.bf16.mxu0 0
        %1120 = vmatpush1.bf16.xpose.msra.mxu0 0
        %1121 = vmatprep.subr.bf16.mxu0 0
        %1122 = vmatpush1.bf16.xpose.msra.mxu0 0
        %1123 = vmatprep.subr.bf16.mxu0 0
        %1124 = vmatpush1.bf16.xpose.msra.mxu0 0
        %1125 = vmatprep.subr.bf16.mxu0 0
        %1126 = vmatpush1.bf16.xpose.msra.mxu0 0
        %1127 = vmatprep.subr.bf16.mxu0 0
        %1128 = vmatpush1.bf16.xpose.msra.mxu0 0
        %1129 = vmatprep.mubr.bf16.mxu0 0
        %1130 = vmatmul.mubr.bf16.gmra.mrb[0].mxu0 %v1092
        %v1131 = vpop.f32.mrb[0].mxu0
        %v1132 = vadd.f32 %v1088, %v1131
        %v1133 = vpop.f32.mrb[0].mxu0
        %v1134 = vpop.f32.mrb[0].mxu0
        %v1135 = vpop.f32.mrb[0].mxu0
        %1136 = vdwg.mxu0
        %v1138 = vsel %vm1090, %v617, 0
        %v1141 = vsel %vm1090, %v848, 0
        %1143 = vmatprep.subr.bf16.mxu0 0
        %1144 = vmatpush1.bf16.xpose.msra.mxu0 %v1141
        %1145 = vmatprep.subr.bf16.mxu0 0
        %1146 = vmatpush1.bf16.xpose.msra.mxu0 0
        %1147 = vmatprep.subr.bf16.mxu0 0
        %1148 = vmatpush1.bf16.xpose.msra.mxu0 0
        %1149 = vmatprep.subr.bf16.mxu0 0
        %1150 = vmatpush1.bf16.xpose.msra.mxu0 0
        %1151 = vmatprep.subr.bf16.mxu0 0
        %1152 = vmatpush1.bf16.xpose.msra.mxu0 0
        %1153 = vmatprep.subr.bf16.mxu0 0
        %1154 = vmatpush1.bf16.xpose.msra.mxu0 0
        %1155 = vmatprep.subr.bf16.mxu0 0
        %1156 = vmatpush1.bf16.xpose.msra.mxu0 0
        %1157 = vmatprep.subr.bf16.mxu0 0
        %1158 = vmatpush1.bf16.xpose.msra.mxu0 0
        %1159 = vmatprep.subr.bf16.mxu0 0
        %1160 = vmatpush1.bf16.xpose.msra.mxu0 0
        %1161 = vmatprep.subr.bf16.mxu0 0
        %1162 = vmatpush1.bf16.xpose.msra.mxu0 0
        %1163 = vmatprep.subr.bf16.mxu0 0
        %1164 = vmatpush1.bf16.xpose.msra.mxu0 0
        %1165 = vmatprep.subr.bf16.mxu0 0
        %1166 = vmatpush1.bf16.xpose.msra.mxu0 0
        %1167 = vmatprep.subr.bf16.mxu0 0
        %1168 = vmatpush1.bf16.xpose.msra.mxu0 0
        %1169 = vmatprep.subr.bf16.mxu0 0
        %1170 = vmatpush1.bf16.xpose.msra.mxu0 0
        %1171 = vmatprep.subr.bf16.mxu0 0
        %1172 = vmatpush1.bf16.xpose.msra.mxu0 0
        %1173 = vmatprep.subr.bf16.mxu0 0
        %1174 = vmatpush1.bf16.xpose.msra.mxu0 0
        %1175 = vmatprep.mubr.bf16.mxu0 0
        %1176 = vmatmul.mubr.bf16.gmra.mrb[0].mxu0 %v1138
        %v1177 = vpop.f32.mrb[0].mxu0
        %v1178 = vadd.f32 %v1088, %v1177
        %v1179 = vpop.f32.mrb[0].mxu0
        %v1180 = vpop.f32.mrb[0].mxu0
        %v1181 = vpop.f32.mrb[0].mxu0
        %1182 = vdwg.mxu0
        %v1184 = vsel %vm1090, %v618, 0
        %v1187 = vsel %vm1090, %v849, 0
        %1189 = vmatprep.subr.bf16.mxu0 0
        %1190 = vmatpush1.bf16.xpose.msra.mxu0 %v1187
        %1191 = vmatprep.subr.bf16.mxu0 0
        %1192 = vmatpush1.bf16.xpose.msra.mxu0 0
        %1193 = vmatprep.subr.bf16.mxu0 0
        %1194 = vmatpush1.bf16.xpose.msra.mxu0 0
        %1195 = vmatprep.subr.bf16.mxu0 0
        %1196 = vmatpush1.bf16.xpose.msra.mxu0 0
        %1197 = vmatprep.subr.bf16.mxu0 0
        %1198 = vmatpush1.bf16.xpose.msra.mxu0 0
        %1199 = vmatprep.subr.bf16.mxu0 0
        %1200 = vmatpush1.bf16.xpose.msra.mxu0 0
        %1201 = vmatprep.subr.bf16.mxu0 0
        %1202 = vmatpush1.bf16.xpose.msra.mxu0 0
        %1203 = vmatprep.subr.bf16.mxu0 0
        %1204 = vmatpush1.bf16.xpose.msra.mxu0 0
        %1205 = vmatprep.subr.bf16.mxu0 0
        %1206 = vmatpush1.bf16.xpose.msra.mxu0 0
        %1207 = vmatprep.subr.bf16.mxu0 0
        %1208 = vmatpush1.bf16.xpose.msra.mxu0 0
        %1209 = vmatprep.subr.bf16.mxu0 0
        %1210 = vmatpush1.bf16.xpose.msra.mxu0 0
        %1211 = vmatprep.subr.bf16.mxu0 0
        %1212 = vmatpush1.bf16.xpose.msra.mxu0 0
        %1213 = vmatprep.subr.bf16.mxu0 0
        %1214 = vmatpush1.bf16.xpose.msra.mxu0 0
        %1215 = vmatprep.subr.bf16.mxu0 0
        %1216 = vmatpush1.bf16.xpose.msra.mxu0 0
        %1217 = vmatprep.subr.bf16.mxu0 0
        %1218 = vmatpush1.bf16.xpose.msra.mxu0 0
        %1219 = vmatprep.subr.bf16.mxu0 0
        %1220 = vmatpush1.bf16.xpose.msra.mxu0 0
        %1221 = vmatprep.mubr.bf16.mxu0 0
        %1222 = vmatmul.mubr.bf16.gmra.mrb[0].mxu0 %v1184
        %v1223 = vpop.f32.mrb[0].mxu0
        %v1224 = vadd.f32 %v1088, %v1223
        %v1225 = vpop.f32.mrb[0].mxu0
        %v1226 = vpop.f32.mrb[0].mxu0
        %v1227 = vpop.f32.mrb[0].mxu0
        %1228 = vdwg.mxu0
        %v1230 = vsel %vm1090, %v619, 0
        %v1233 = vsel %vm1090, %v850, 0
        %1235 = vmatprep.subr.bf16.mxu0 0
        %1236 = vmatpush1.bf16.xpose.msra.mxu0 %v1233
        %1237 = vmatprep.subr.bf16.mxu0 0
        %1238 = vmatpush1.bf16.xpose.msra.mxu0 0
        %1239 = vmatprep.subr.bf16.mxu0 0
        %1240 = vmatpush1.bf16.xpose.msra.mxu0 0
        %1241 = vmatprep.subr.bf16.mxu0 0
        %1242 = vmatpush1.bf16.xpose.msra.mxu0 0
        %1243 = vmatprep.subr.bf16.mxu0 0
        %1244 = vmatpush1.bf16.xpose.msra.mxu0 0
        %1245 = vmatprep.subr.bf16.mxu0 0
        %1246 = vmatpush1.bf16.xpose.msra.mxu0 0
        %1247 = vmatprep.subr.bf16.mxu0 0
        %1248 = vmatpush1.bf16.xpose.msra.mxu0 0
        %1249 = vmatprep.subr.bf16.mxu0 0
        %1250 = vmatpush1.bf16.xpose.msra.mxu0 0
        %1251 = vmatprep.subr.bf16.mxu0 0
        %1252 = vmatpush1.bf16.xpose.msra.mxu0 0
        %1253 = vmatprep.subr.bf16.mxu0 0
        %1254 = vmatpush1.bf16.xpose.msra.mxu0 0
        %1255 = vmatprep.subr.bf16.mxu0 0
        %1256 = vmatpush1.bf16.xpose.msra.mxu0 0
        %1257 = vmatprep.subr.bf16.mxu0 0
        %1258 = vmatpush1.bf16.xpose.msra.mxu0 0
        %1259 = vmatprep.subr.bf16.mxu0 0
        %1260 = vmatpush1.bf16.xpose.msra.mxu0 0
        %1261 = vmatprep.subr.bf16.mxu0 0
        %1262 = vmatpush1.bf16.xpose.msra.mxu0 0
        %1263 = vmatprep.subr.bf16.mxu0 0
        %1264 = vmatpush1.bf16.xpose.msra.mxu0 0
        %1265 = vmatprep.subr.bf16.mxu0 0
        %1266 = vmatpush1.bf16.xpose.msra.mxu0 0
        %1267 = vmatprep.mubr.bf16.mxu0 0
        %1268 = vmatmul.mubr.bf16.gmra.mrb[0].mxu0 %v1230
        %v1269 = vpop.f32.mrb[0].mxu0
        %v1270 = vadd.f32 %v1088, %v1269
        %v1271 = vpop.f32.mrb[0].mxu0
        %v1272 = vpop.f32.mrb[0].mxu0
        %v1273 = vpop.f32.mrb[0].mxu0
        %1274 = vdwg.mxu0
        %v1275 = vsel %vm1090, %v1132, -inf
        %1276 = vmax.xlane.f32.xlu0 %v1275
        %v1277 = vpop.xlane.xlu0 %1276
        %v1278 = vsel %vm1090, %v1178, -inf
        %1279 = vmax.xlane.f32.xlu0 %v1278
        %v1280 = vpop.xlane.xlu0 %1279
        %v1281 = vsel %vm1090, %v1224, -inf
        %1282 = vmax.xlane.f32.xlu0 %v1281
        %v1283 = vpop.xlane.xlu0 %1282
        %v1284 = vsel %vm1090, %v1270, -inf
        %1285 = vmax.xlane.f32.xlu0 %v1284
        %v1286 = vpop.xlane.xlu0 %1285
        %v1287 = vsub.f32 %v1132, %v1277
        %v1288 = vsub.f32 %v1178, %v1280
        %v1289 = vsub.f32 %v1224, %v1283
        %v1290 = vsub.f32 %v1270, %v1286
        %v1291 = vmul.f32 %v1287, 1.442695
        %v1292 = vpow.pop %v1291
        %v1293 = vmul.f32 %v1288, 1.442695
        %v1294 = vpow.pop %v1293
        %v1295 = vmul.f32 %v1289, 1.442695
        %v1296 = vpow.pop %v1295
        %v1297 = vmul.f32 %v1290, 1.442695
        %v1298 = vpow.pop %v1297
        %v1299 = vsel %vm1090, %v1292, 0.0
        %1300 = vadd.xlane.f32.xlu0 %v1299
        %v1301 = vpop.xlane.xlu0 %1300
        %v1302 = vsel %vm1090, %v1294, 0.0
        %1303 = vadd.xlane.f32.xlu0 %v1302
        %v1304 = vpop.xlane.xlu0 %1303
        %v1305 = vsel %vm1090, %v1296, 0.0
        %1306 = vadd.xlane.f32.xlu0 %v1305
        %v1307 = vpop.xlane.xlu0 %1306
        %v1308 = vsel %vm1090, %v1298, 0.0
        %1309 = vadd.xlane.f32.xlu0 %v1308
        %v1310 = vpop.xlane.xlu0 %1309
        %v1311 = vrcp.pop %v1301
        %v1312 = vrcp.pop %v1304
        %v1313 = vrcp.pop %v1307
        %v1314 = vrcp.pop %v1310
        %v1315 = vmul.f32 %v1292, %v1311
        %v1316 = vmul.f32 %v1294, %v1312
        %v1317 = vmul.f32 %v1296, %v1313
        %v1318 = vmul.f32 %v1298, %v1314
        %v1319 = vpack.c.bf16 %v1315, %v1315
        %v1320 = vpack.c.bf16 %v1316, %v1316
        %v1321 = vpack.c.bf16 %v1317, %v1317
        %v1322 = vpack.c.bf16 %v1318, %v1318
        %v1324 = vsel %vm1090, %v1319, 0
        %vm1326 = vcmask 1043456
        %v1328 = vsel %vm1326, %v1078, 0
        %1330 = vmatprep.subr.bf16.mxu0 0
        %1331 = vmatpush1.bf16.msra.mxu0 %v1328
        %1332 = vmatprep.subr.bf16.mxu0 0
        %1333 = vmatpush1.bf16.msra.mxu0 0
        %1334 = vmatprep.subr.bf16.mxu0 0
        %1335 = vmatpush1.bf16.msra.mxu0 0
        %1336 = vmatprep.subr.bf16.mxu0 0
        %1337 = vmatpush1.bf16.msra.mxu0 0
        %1338 = vmatprep.subr.bf16.mxu0 0
        %1339 = vmatpush1.bf16.msra.mxu0 0
        %1340 = vmatprep.subr.bf16.mxu0 0
        %1341 = vmatpush1.bf16.msra.mxu0 0
        %1342 = vmatprep.subr.bf16.mxu0 0
        %1343 = vmatpush1.bf16.msra.mxu0 0
        %1344 = vmatprep.subr.bf16.mxu0 0
        %1345 = vmatpush1.bf16.msra.mxu0 0
        %1346 = vmatprep.subr.bf16.mxu0 0
        %1347 = vmatpush1.bf16.msra.mxu0 0
        %1348 = vmatprep.subr.bf16.mxu0 0
        %1349 = vmatpush1.bf16.msra.mxu0 0
        %1350 = vmatprep.subr.bf16.mxu0 0
        %1351 = vmatpush1.bf16.msra.mxu0 0
        %1352 = vmatprep.subr.bf16.mxu0 0
        %1353 = vmatpush1.bf16.msra.mxu0 0
        %1354 = vmatprep.subr.bf16.mxu0 0
        %1355 = vmatpush1.bf16.msra.mxu0 0
        %1356 = vmatprep.subr.bf16.mxu0 0
        %1357 = vmatpush1.bf16.msra.mxu0 0
        %1358 = vmatprep.subr.bf16.mxu0 0
        %1359 = vmatpush1.bf16.msra.mxu0 0
        %1360 = vmatprep.subr.bf16.mxu0 0
        %1361 = vmatpush1.bf16.msra.mxu0 0
        %1362 = vmatprep.mubr.bf16.mxu0 0
        %1363 = vmatmul.mubr.bf16.gmra.mrb[0].mxu0 %v1324
        %v1364 = vpop.f32.mrb[0].mxu0
        %v1365 = vadd.f32 0.0, %v1364
        %v1366 = vpop.f32.mrb[0].mxu0
        %v1367 = vpop.f32.mrb[0].mxu0
        %v1368 = vpop.f32.mrb[0].mxu0
        %1369 = vdwg.mxu0
        %v1371 = vsel %vm1090, %v1320, 0
        %v1374 = vsel %vm1326, %v1079, 0
        %1376 = vmatprep.subr.bf16.mxu0 0
        %1377 = vmatpush1.bf16.msra.mxu0 %v1374
        %1378 = vmatprep.subr.bf16.mxu0 0
        %1379 = vmatpush1.bf16.msra.mxu0 0
        %1380 = vmatprep.subr.bf16.mxu0 0
        %1381 = vmatpush1.bf16.msra.mxu0 0
        %1382 = vmatprep.subr.bf16.mxu0 0
        %1383 = vmatpush1.bf16.msra.mxu0 0
        %1384 = vmatprep.subr.bf16.mxu0 0
        %1385 = vmatpush1.bf16.msra.mxu0 0
        %1386 = vmatprep.subr.bf16.mxu0 0
        %1387 = vmatpush1.bf16.msra.mxu0 0
        %1388 = vmatprep.subr.bf16.mxu0 0
        %1389 = vmatpush1.bf16.msra.mxu0 0
        %1390 = vmatprep.subr.bf16.mxu0 0
        %1391 = vmatpush1.bf16.msra.mxu0 0
        %1392 = vmatprep.subr.bf16.mxu0 0
        %1393 = vmatpush1.bf16.msra.mxu0 0
        %1394 = vmatprep.subr.bf16.mxu0 0
        %1395 = vmatpush1.bf16.msra.mxu0 0
        %1396 = vmatprep.subr.bf16.mxu0 0
        %1397 = vmatpush1.bf16.msra.mxu0 0
        %1398 = vmatprep.subr.bf16.mxu0 0
        %1399 = vmatpush1.bf16.msra.mxu0 0
        %1400 = vmatprep.subr.bf16.mxu0 0
        %1401 = vmatpush1.bf16.msra.mxu0 0
        %1402 = vmatprep.subr.bf16.mxu0 0
        %1403 = vmatpush1.bf16.msra.mxu0 0
        %1404 = vmatprep.subr.bf16.mxu0 0
        %1405 = vmatpush1.bf16.msra.mxu0 0
        %1406 = vmatprep.subr.bf16.mxu0 0
        %1407 = vmatpush1.bf16.msra.mxu0 0
        %1408 = vmatprep.mubr.bf16.mxu0 0
        %1409 = vmatmul.mubr.bf16.gmra.mrb[0].mxu0 %v1371
        %v1410 = vpop.f32.mrb[0].mxu0
        %v1411 = vadd.f32 0.0, %v1410
        %v1412 = vpop.f32.mrb[0].mxu0
        %v1413 = vpop.f32.mrb[0].mxu0
        %v1414 = vpop.f32.mrb[0].mxu0
        %1415 = vdwg.mxu0
        %v1417 = vsel %vm1090, %v1321, 0
        %v1420 = vsel %vm1326, %v1080, 0
        %1422 = vmatprep.subr.bf16.mxu0 0
        %1423 = vmatpush1.bf16.msra.mxu0 %v1420
        %1424 = vmatprep.subr.bf16.mxu0 0
        %1425 = vmatpush1.bf16.msra.mxu0 0
        %1426 = vmatprep.subr.bf16.mxu0 0
        %1427 = vmatpush1.bf16.msra.mxu0 0
        %1428 = vmatprep.subr.bf16.mxu0 0
        %1429 = vmatpush1.bf16.msra.mxu0 0
        %1430 = vmatprep.subr.bf16.mxu0 0
        %1431 = vmatpush1.bf16.msra.mxu0 0
        %1432 = vmatprep.subr.bf16.mxu0 0
        %1433 = vmatpush1.bf16.msra.mxu0 0
        %1434 = vmatprep.subr.bf16.mxu0 0
        %1435 = vmatpush1.bf16.msra.mxu0 0
        %1436 = vmatprep.subr.bf16.mxu0 0
        %1437 = vmatpush1.bf16.msra.mxu0 0
        %1438 = vmatprep.subr.bf16.mxu0 0
        %1439 = vmatpush1.bf16.msra.mxu0 0
        %1440 = vmatprep.subr.bf16.mxu0 0
        %1441 = vmatpush1.bf16.msra.mxu0 0
        %1442 = vmatprep.subr.bf16.mxu0 0
        %1443 = vmatpush1.bf16.msra.mxu0 0
        %1444 = vmatprep.subr.bf16.mxu0 0
        %1445 = vmatpush1.bf16.msra.mxu0 0
        %1446 = vmatprep.subr.bf16.mxu0 0
        %1447 = vmatpush1.bf16.msra.mxu0 0
        %1448 = vmatprep.subr.bf16.mxu0 0
        %1449 = vmatpush1.bf16.msra.mxu0 0
        %1450 = vmatprep.subr.bf16.mxu0 0
        %1451 = vmatpush1.bf16.msra.mxu0 0
        %1452 = vmatprep.subr.bf16.mxu0 0
        %1453 = vmatpush1.bf16.msra.mxu0 0
        %1454 = vmatprep.mubr.bf16.mxu0 0
        %1455 = vmatmul.mubr.bf16.gmra.mrb[0].mxu0 %v1417
        %v1456 = vpop.f32.mrb[0].mxu0
        %v1457 = vadd.f32 0.0, %v1456
        %v1458 = vpop.f32.mrb[0].mxu0
        %v1459 = vpop.f32.mrb[0].mxu0
        %v1460 = vpop.f32.mrb[0].mxu0
        %1461 = vdwg.mxu0
        %v1463 = vsel %vm1090, %v1322, 0
        %v1466 = vsel %vm1326, %v1081, 0
        %1468 = vmatprep.subr.bf16.mxu0 0
        %1469 = vmatpush1.bf16.msra.mxu0 %v1466
        %1470 = vmatprep.subr.bf16.mxu0 0
        %1471 = vmatpush1.bf16.msra.mxu0 0
        %1472 = vmatprep.subr.bf16.mxu0 0
        %1473 = vmatpush1.bf16.msra.mxu0 0
        %1474 = vmatprep.subr.bf16.mxu0 0
        %1475 = vmatpush1.bf16.msra.mxu0 0
        %1476 = vmatprep.subr.bf16.mxu0 0
        %1477 = vmatpush1.bf16.msra.mxu0 0
        %1478 = vmatprep.subr.bf16.mxu0 0
        %1479 = vmatpush1.bf16.msra.mxu0 0
        %1480 = vmatprep.subr.bf16.mxu0 0
        %1481 = vmatpush1.bf16.msra.mxu0 0
        %1482 = vmatprep.subr.bf16.mxu0 0
        %1483 = vmatpush1.bf16.msra.mxu0 0
        %1484 = vmatprep.subr.bf16.mxu0 0
        %1485 = vmatpush1.bf16.msra.mxu0 0
        %1486 = vmatprep.subr.bf16.mxu0 0
        %1487 = vmatpush1.bf16.msra.mxu0 0
        %1488 = vmatprep.subr.bf16.mxu0 0
        %1489 = vmatpush1.bf16.msra.mxu0 0
        %1490 = vmatprep.subr.bf16.mxu0 0
        %1491 = vmatpush1.bf16.msra.mxu0 0
        %1492 = vmatprep.subr.bf16.mxu0 0
        %1493 = vmatpush1.bf16.msra.mxu0 0
        %1494 = vmatprep.subr.bf16.mxu0 0
        %1495 = vmatpush1.bf16.msra.mxu0 0
        %1496 = vmatprep.subr.bf16.mxu0 0
        %1497 = vmatpush1.bf16.msra.mxu0 0
        %1498 = vmatprep.subr.bf16.mxu0 0
        %1499 = vmatpush1.bf16.msra.mxu0 0
        %1500 = vmatprep.mubr.bf16.mxu0 0
        %1501 = vmatmul.mubr.bf16.gmra.mrb[0].mxu0 %v1463
        %v1502 = vpop.f32.mrb[0].mxu0
        %v1503 = vadd.f32 0.0, %v1502
        %v1504 = vpop.f32.mrb[0].mxu0
        %v1505 = vpop.f32.mrb[0].mxu0
        %v1506 = vpop.f32.mrb[0].mxu0
        %1507 = vdwg.mxu0
        %v1508 = vpack.c.bf16 %v1365, %v1365
        %v1509 = vpack.c.bf16 %v1411, %v1411
        %v1510 = vpack.c.bf16 %v1457, %v1457
        %v1511 = vpack.c.bf16 %v1503, %v1503
        %v1512 = vld [vmem:[%s7] sm:$0xf]
        %v1513 = vld [vmem:[%s7 + $0x4] sm:$0xf]
        %v1514 = vld [vmem:[%s7 + $0x8] sm:$0xf]
        %v1515 = vld [vmem:[%s7 + $0xc] sm:$0xf]
        %v1517 = vsel %vm1090, %v1508, 0
        %v1520 = vsel %vm1326, %v1512, 0
        %1522 = vmatprep.subr.bf16.mxu0 0
        %1523 = vmatpush1.bf16.msra.mxu0 %v1520
        %1524 = vmatprep.subr.bf16.mxu0 0
        %1525 = vmatpush1.bf16.msra.mxu0 0
        %1526 = vmatprep.subr.bf16.mxu0 0
        %1527 = vmatpush1.bf16.msra.mxu0 0
        %1528 = vmatprep.subr.bf16.mxu0 0
        %1529 = vmatpush1.bf16.msra.mxu0 0
        %1530 = vmatprep.subr.bf16.mxu0 0
        %1531 = vmatpush1.bf16.msra.mxu0 0
        %1532 = vmatprep.subr.bf16.mxu0 0
        %1533 = vmatpush1.bf16.msra.mxu0 0
        %1534 = vmatprep.subr.bf16.mxu0 0
        %1535 = vmatpush1.bf16.msra.mxu0 0
        %1536 = vmatprep.subr.bf16.mxu0 0
        %1537 = vmatpush1.bf16.msra.mxu0 0
        %1538 = vmatprep.subr.bf16.mxu0 0
        %1539 = vmatpush1.bf16.msra.mxu0 0
        %1540 = vmatprep.subr.bf16.mxu0 0
        %1541 = vmatpush1.bf16.msra.mxu0 0
        %1542 = vmatprep.subr.bf16.mxu0 0
        %1543 = vmatpush1.bf16.msra.mxu0 0
        %1544 = vmatprep.subr.bf16.mxu0 0
        %1545 = vmatpush1.bf16.msra.mxu0 0
        %1546 = vmatprep.subr.bf16.mxu0 0
        %1547 = vmatpush1.bf16.msra.mxu0 0
        %1548 = vmatprep.subr.bf16.mxu0 0
        %1549 = vmatpush1.bf16.msra.mxu0 0
        %1550 = vmatprep.subr.bf16.mxu0 0
        %1551 = vmatpush1.bf16.msra.mxu0 0
        %1552 = vmatprep.subr.bf16.mxu0 0
        %1553 = vmatpush1.bf16.msra.mxu0 0
        %1554 = vmatprep.mubr.bf16.mxu0 0
        %1555 = vmatmul.mubr.bf16.gmra.mrb[0].mxu0 %v1517
        %v1556 = vpop.f32.mrb[0].mxu0
        %v1557 = vadd.f32 0.0, %v1556
        %v1558 = vpop.f32.mrb[0].mxu0
        %v1559 = vpop.f32.mrb[0].mxu0
        %v1560 = vpop.f32.mrb[0].mxu0
        %1561 = vdwg.mxu0
        %v1563 = vsel %vm1090, %v1509, 0
        %v1566 = vsel %vm1326, %v1513, 0
        %1568 = vmatprep.subr.bf16.mxu0 0
        %1569 = vmatpush1.bf16.msra.mxu0 %v1566
        %1570 = vmatprep.subr.bf16.mxu0 0
        %1571 = vmatpush1.bf16.msra.mxu0 0
        %1572 = vmatprep.subr.bf16.mxu0 0
        %1573 = vmatpush1.bf16.msra.mxu0 0
        %1574 = vmatprep.subr.bf16.mxu0 0
        %1575 = vmatpush1.bf16.msra.mxu0 0
        %1576 = vmatprep.subr.bf16.mxu0 0
        %1577 = vmatpush1.bf16.msra.mxu0 0
        %1578 = vmatprep.subr.bf16.mxu0 0
        %1579 = vmatpush1.bf16.msra.mxu0 0
        %1580 = vmatprep.subr.bf16.mxu0 0
        %1581 = vmatpush1.bf16.msra.mxu0 0
        %1582 = vmatprep.subr.bf16.mxu0 0
        %1583 = vmatpush1.bf16.msra.mxu0 0
        %1584 = vmatprep.subr.bf16.mxu0 0
        %1585 = vmatpush1.bf16.msra.mxu0 0
        %1586 = vmatprep.subr.bf16.mxu0 0
        %1587 = vmatpush1.bf16.msra.mxu0 0
        %1588 = vmatprep.subr.bf16.mxu0 0
        %1589 = vmatpush1.bf16.msra.mxu0 0
        %1590 = vmatprep.subr.bf16.mxu0 0
        %1591 = vmatpush1.bf16.msra.mxu0 0
        %1592 = vmatprep.subr.bf16.mxu0 0
        %1593 = vmatpush1.bf16.msra.mxu0 0
        %1594 = vmatprep.subr.bf16.mxu0 0
        %1595 = vmatpush1.bf16.msra.mxu0 0
        %1596 = vmatprep.subr.bf16.mxu0 0
        %1597 = vmatpush1.bf16.msra.mxu0 0
        %1598 = vmatprep.subr.bf16.mxu0 0
        %1599 = vmatpush1.bf16.msra.mxu0 0
        %1600 = vmatprep.mubr.bf16.mxu0 0
        %1601 = vmatmul.mubr.bf16.gmra.mrb[0].mxu0 %v1563
        %v1602 = vpop.f32.mrb[0].mxu0
        %v1603 = vadd.f32 0.0, %v1602
        %v1604 = vpop.f32.mrb[0].mxu0
        %v1605 = vpop.f32.mrb[0].mxu0
        %v1606 = vpop.f32.mrb[0].mxu0
        %1607 = vdwg.mxu0
        %v1609 = vsel %vm1090, %v1510, 0
        %v1612 = vsel %vm1326, %v1514, 0
        %1614 = vmatprep.subr.bf16.mxu0 0
        %1615 = vmatpush1.bf16.msra.mxu0 %v1612
        %1616 = vmatprep.subr.bf16.mxu0 0
        %1617 = vmatpush1.bf16.msra.mxu0 0
        %1618 = vmatprep.subr.bf16.mxu0 0
        %1619 = vmatpush1.bf16.msra.mxu0 0
        %1620 = vmatprep.subr.bf16.mxu0 0
        %1621 = vmatpush1.bf16.msra.mxu0 0
        %1622 = vmatprep.subr.bf16.mxu0 0
        %1623 = vmatpush1.bf16.msra.mxu0 0
        %1624 = vmatprep.subr.bf16.mxu0 0
        %1625 = vmatpush1.bf16.msra.mxu0 0
        %1626 = vmatprep.subr.bf16.mxu0 0
        %1627 = vmatpush1.bf16.msra.mxu0 0
        %1628 = vmatprep.subr.bf16.mxu0 0
        %1629 = vmatpush1.bf16.msra.mxu0 0
        %1630 = vmatprep.subr.bf16.mxu0 0
        %1631 = vmatpush1.bf16.msra.mxu0 0
        %1632 = vmatprep.subr.bf16.mxu0 0
        %1633 = vmatpush1.bf16.msra.mxu0 0
        %1634 = vmatprep.subr.bf16.mxu0 0
        %1635 = vmatpush1.bf16.msra.mxu0 0
        %1636 = vmatprep.subr.bf16.mxu0 0
        %1637 = vmatpush1.bf16.msra.mxu0 0
        %1638 = vmatprep.subr.bf16.mxu0 0
        %1639 = vmatpush1.bf16.msra.mxu0 0
        %1640 = vmatprep.subr.bf16.mxu0 0
        %1641 = vmatpush1.bf16.msra.mxu0 0
        %1642 = vmatprep.subr.bf16.mxu0 0
        %1643 = vmatpush1.bf16.msra.mxu0 0
        %1644 = vmatprep.subr.bf16.mxu0 0
        %1645 = vmatpush1.bf16.msra.mxu0 0
        %1646 = vmatprep.mubr.bf16.mxu0 0
        %1647 = vmatmul.mubr.bf16.gmra.mrb[0].mxu0 %v1609
        %v1648 = vpop.f32.mrb[0].mxu0
        %v1649 = vadd.f32 0.0, %v1648
        %v1650 = vpop.f32.mrb[0].mxu0
        %v1651 = vpop.f32.mrb[0].mxu0
        %v1652 = vpop.f32.mrb[0].mxu0
        %1653 = vdwg.mxu0
        %v1655 = vsel %vm1090, %v1511, 0
        %v1658 = vsel %vm1326, %v1515, 0
        %1660 = vmatprep.subr.bf16.mxu0 0
        %1661 = vmatpush1.bf16.msra.mxu0 %v1658
        %1662 = vmatprep.subr.bf16.mxu0 0
        %1663 = vmatpush1.bf16.msra.mxu0 0
        %1664 = vmatprep.subr.bf16.mxu0 0
        %1665 = vmatpush1.bf16.msra.mxu0 0
        %1666 = vmatprep.subr.bf16.mxu0 0
        %1667 = vmatpush1.bf16.msra.mxu0 0
        %1668 = vmatprep.subr.bf16.mxu0 0
        %1669 = vmatpush1.bf16.msra.mxu0 0
        %1670 = vmatprep.subr.bf16.mxu0 0
        %1671 = vmatpush1.bf16.msra.mxu0 0
        %1672 = vmatprep.subr.bf16.mxu0 0
        %1673 = vmatpush1.bf16.msra.mxu0 0
        %1674 = vmatprep.subr.bf16.mxu0 0
        %1675 = vmatpush1.bf16.msra.mxu0 0
        %1676 = vmatprep.subr.bf16.mxu0 0
        %1677 = vmatpush1.bf16.msra.mxu0 0
        %1678 = vmatprep.subr.bf16.mxu0 0
        %1679 = vmatpush1.bf16.msra.mxu0 0
        %1680 = vmatprep.subr.bf16.mxu0 0
        %1681 = vmatpush1.bf16.msra.mxu0 0
        %1682 = vmatprep.subr.bf16.mxu0 0
        %1683 = vmatpush1.bf16.msra.mxu0 0
        %1684 = vmatprep.subr.bf16.mxu0 0
        %1685 = vmatpush1.bf16.msra.mxu0 0
        %1686 = vmatprep.subr.bf16.mxu0 0
        %1687 = vmatpush1.bf16.msra.mxu0 0
        %1688 = vmatprep.subr.bf16.mxu0 0
        %1689 = vmatpush1.bf16.msra.mxu0 0
        %1690 = vmatprep.subr.bf16.mxu0 0
        %1691 = vmatpush1.bf16.msra.mxu0 0
        %1692 = vmatprep.mubr.bf16.mxu0 0
        %1693 = vmatmul.mubr.bf16.gmra.mrb[0].mxu0 %v1655
        %v1694 = vpop.f32.mrb[0].mxu0
        %v1695 = vadd.f32 0.0, %v1694
        %v1696 = vpop.f32.mrb[0].mxu0
        %v1697 = vpop.f32.mrb[0].mxu0
        %v1698 = vpop.f32.mrb[0].mxu0
        %1699 = vdwg.mxu0
        %v1700 = vsel %vm412, %v1557, 0.0
        %v1701 = vsel %vm412, %v1603, 0.0
        %v1702 = vadd.f32 %v1700, %v1701
        %v1703 = vsel %vm412, %v1649, 0.0
        %v1704 = vadd.f32 %v1702, %v1703
        %v1705 = vsel %vm412, %v1695, 0.0
        %v1706 = vadd.f32 %v1704, %v1705
        %v1707 = vld [vmem:[%s8] sm:$0x1]
        %v1709 = vlaneseq
        %v1710 = vshrl.u32 %v1709, 7
        %v1711 = vsub.s32 0, %v1710
        %v1712 = vrot.slane %v1707, %v1711
        %v1714 = vadd.f32 %v1706, %v1712
        %1715 = vst.msk [vmem:[%s360] sm:$0xff] %vm412, %v1714
        %s1716 = sand.u32 %s240, 1
        %s1717 = scalar_lea.sflag [#allocation3], %s1716
        %s1718 = sand.u32 %s240, 1
        %s1719 = smul.addr %s1718, 8
        %s1720 = scalar_lea.vmem [#allocation2], %s1719
        // Predicated region
        $region57: #{tpu_custom_call.1} parent=55 // pred_check
          %p1721 = pneg %p250
        $region58: #{tpu_custom_call.1} parent=55 // pred_check_branch
          %1723 = sbr.rel (%p1721) target = $region60
        $region59: #{tpu_custom_call.1} parent=55 // pred_region
          %s1725 = ssub.s32 128, 128
          %1726 = vsyncadd %s1717, %s1725
          %s1727 = smul.addr %s23, 128
          %s1728 = scalar_lea.hbm %s9, %s1727
          %s1730 = sshll.u32 %s1720, 4
          %s1731 = int_to_ptr.vmem [resolvable:$true] %s1730
          %1733 = dma.vmem_to_hbm [thread:$0]  %s1731, 128, %s1728, %s1717
        $region60: #{tpu_custom_call.1} parent=55 // pred_fallthru
          _
      $region56: #{tpu_custom_call.1} parent=5 // pred_fallthru
        _
      %p1734 = scmp.le.s32.totalorder 2, %s18
      // Predicated region
      $region61: #{tpu_custom_call.1} parent=5 // pred_check
        %p1735 = pneg %p1734
      $region62: #{tpu_custom_call.1} parent=5 // pred_check_branch
        %1737 = sbr.rel (%p1735) target = $region64
      $region63: #{tpu_custom_call.1} parent=5 // pred_region
        %s1738 = ssub.s32 %s18, 2
        // Predicated region
        $region65: #{tpu_custom_call.1} parent=63 // pred_check
          %p1739 = pneg %p256
        $region66: #{tpu_custom_call.1} parent=63 // pred_check_branch
          %1741 = sbr.rel (%p1739) target = $region68
        $region67: #{tpu_custom_call.1} parent=63 // pred_region
          %s1742 = sand.u32 %s241, 1
          %s1743 = scalar_lea.sflag [#allocation3], %s1742
          %s1744 = sand.u32 %s241, 1
          %s1745 = smul.addr %s1744, 8
          %s1746 = scalar_lea.vmem [#allocation2], %s1745
          %1747 = dma.done %s1743, 128
        $region68: #{tpu_custom_call.1} parent=63 // pred_fallthru
          _
      $region64: #{tpu_custom_call.1} parent=5 // pred_fallthru
        _
    $region6: #{tpu_custom_call.1} parent=1 // loop_footer
      %s22 = sadd.s32 1, %s18
    $region7: #{tpu_custom_call.1} parent=1 // loop_footer_branch
      %17 = sbr.rel target = $region3
    $region8: #{tpu_custom_call.1} parent=1 // loop_exit
      _
    %1748 = vsyncpa [#allocation3], 1
    %s1749 = scalar_lea.sflag [#allocation3], 1
    %1750 = vsyncpa %s1749, 1

// kernel: tpu_custom_call.1
$region0: #{tpu_custom_call.1}
  #allocation0 [shape = 'u32[]', space=smem, size = 0x4, offset = 0x4, fixed_abs, tag = 'smem constant byte address 0x4 - core index']
  #allocation1 [shape = 'u32[144,128]{1,0:T(1,128)}', space=vmem, size = 0x12000, scoped, tag = 'internal scratch']
  %s0 = inlined_call_operand.vmem [shape: f32[2,8,32], index: 0, kind: input, shape index: {}]
  %s1 = inlined_call_operand.vmem [shape: f32[2,8,32], index: 1, kind: input, shape index: {}]
  %s2 = inlined_call_operand.vmem [shape: f32[2,8,32], index: 2, kind: input, shape index: {}]
  %s3 = inlined_call_operand.vmem [shape: f32[2,1,8], index: 3, kind: input, shape index: {}]
  %s4 = inlined_call_operand.vmem [shape: bf16[4,32,8], index: 4, kind: input, shape index: {}]
  %s5 = inlined_call_operand.vmem [shape: bf16[4,32,8], index: 5, kind: input, shape index: {}]
  %s6 = inlined_call_operand.vmem [shape: bf16[4,32,8], index: 6, kind: input, shape index: {}]
  %s7 = inlined_call_operand.vmem [shape: bf16[4,8,32], index: 7, kind: input, shape index: {}]
  %s8 = inlined_call_operand.vmem [shape: f32[1,32], index: 8, kind: input, shape index: {}]
  %s9 = inlined_call_operand.hbm [shape: f32[2,8,32], index: 9, kind: output, shape index: {}]
  %s10 = sld [smem:[#allocation0]]
  $region69: #{tpu_custom_call.1} parent=0
    _
  %s12 = ssub.s32 1, %s10
  %s13 = scalar_select 0, %s12, %s10
  $region1: #{tpu_custom_call.1} parent=0
    #allocation2 [shape = 'u8[8192]{0}', space=vmem, size = 0x2000, scoped, tag = 'output window, operand 0']
    #allocation3 [shape = 's32[2]{0}', space=sflag, size = 0x8, scoped, tag = 'scoped memory for tpu_custom_call.1']
    %14 = vsyncpa [#allocation3], 0
    %s15 = scalar_lea.sflag [#allocation3], 1
    %16 = vsyncpa %s15, 0
    loop: start=0, step=1, limit=4
    $region2: #{tpu_custom_call.1} parent=1 // loop_pre_header
      _
    $region3: #{tpu_custom_call.1} parent=1 // loop_header
      %s18 = sphi 0, %s22
      %p19 = scmp.ge.s32.totalorder %s18, 4
      %s28 = sphi 0, %s30
      %s31 = sphi 0, %s28
      %s32 = sphi 0, %s31
      %s48 = sphi 0, %s32
      %s54 = sphi 0, %s56
      %s57 = sphi 0, %s54
      %s58 = sphi 0, %s57
      %s74 = sphi 0, %s58
      %s80 = sphi 0, %s82
      %s83 = sphi 0, %s80
      %s84 = sphi 0, %s83
      %s100 = sphi 0, %s84
      %s106 = sphi 0, %s108
      %s109 = sphi 0, %s106
      %s110 = sphi 0, %s109
      %s126 = sphi 0, %s110
      %s130 = sphi 0, %s130
      %s132 = sphi 0, %s130
      %s133 = sphi 0, %s132
      %s147 = sphi 0, %s133
      %s151 = sphi 0, %s151
      %s153 = sphi 0, %s151
      %s154 = sphi 0, %s153
      %s168 = sphi 0, %s154
      %s172 = sphi 0, %s172
      %s174 = sphi 0, %s172
      %s175 = sphi 0, %s174
      %s189 = sphi 0, %s175
      %s193 = sphi 0, %s193
      %s195 = sphi 0, %s193
      %s196 = sphi 0, %s195
      %s210 = sphi 0, %s196
      %s214 = sphi 0, %s214
      %s216 = sphi 0, %s214
      %s217 = sphi 0, %s216
      %s231 = sphi 0, %s217
      %s237 = sphi 0, %s239
      %s240 = sphi 0, %s237
      %s241 = sphi 0, %s240
      %s257 = sphi 0, %s241
    $region4: #{tpu_custom_call.1} parent=1 // loop_header_branch
      %21 = sbr.rel (%p19) target = $region8
    $region5: #{tpu_custom_call.1} parent=1 // loop_body
      %s23 = ssub.s32 %s18, 1
      %s24 = ssub.s32 %s18, 2
      %s25 = sadd.s32 %s18, 1
      %s26 = ssub.s32 %s18, %s25
      %p27 = scmp.eq.s32.totalorder %s26, 0
      %s29 = sadd.s32 %s28, 1
      %s30 = scalar_select %p27, %s28, %s29
      %p33 = pneg %p27
      %p34 = scmp.eq.s32.totalorder %s18, 1
      %p35 = por %p33, %p34
      %p36 = scmp.ne.s32.totalorder %s28, %s31
      %p37 = scmp.eq.s32.totalorder %s18, 0
      %p38 = por %p36, %p37
      %p39 = scmp.ne.s32.totalorder %s28, %s31
      %p40 = scmp.eq.s32.totalorder %s23, 1
      %p41 = por %p39, %p40
      %p42 = scmp.ne.s32.totalorder %s31, %s32
      %p43 = scmp.eq.s32.totalorder %s23, 0
      %p44 = por %p42, %p43
      %p45 = scmp.ne.s32.totalorder %s31, %s32
      %p46 = scmp.eq.s32.totalorder %s24, 1
      %p47 = por %p45, %p46
      %p49 = scmp.ne.s32.totalorder %s32, %s48
      %p50 = scmp.eq.s32.totalorder %s24, 0
      %p51 = por %p49, %p50
      %s52 = ssub.s32 %s18, %s25
      %p53 = scmp.eq.s32.totalorder %s52, 0
      %s55 = sadd.s32 %s54, 1
      %s56 = scalar_select %p53, %s54, %s55
      %p59 = pneg %p53
      %p60 = scmp.eq.s32.totalorder %s18, 1
      %p61 = por %p59, %p60
      %p62 = scmp.ne.s32.totalorder %s54, %s57
      %p63 = scmp.eq.s32.totalorder %s18, 0
      %p64 = por %p62, %p63
      %p65 = scmp.ne.s32.totalorder %s54, %s57
      %p66 = scmp.eq.s32.totalorder %s23, 1
      %p67 = por %p65, %p66
      %p68 = scmp.ne.s32.totalorder %s57, %s58
      %p69 = scmp.eq.s32.totalorder %s23, 0
      %p70 = por %p68, %p69
      %p71 = scmp.ne.s32.totalorder %s57, %s58
      %p72 = scmp.eq.s32.totalorder %s24, 1
      %p73 = por %p71, %p72
      %p75 = scmp.ne.s32.totalorder %s58, %s74
      %p76 = scmp.eq.s32.totalorder %s24, 0
      %p77 = por %p75, %p76
      %s78 = ssub.s32 %s18, %s25
      %p79 = scmp.eq.s32.totalorder %s78, 0
      %s81 = sadd.s32 %s80, 1
      %s82 = scalar_select %p79, %s80, %s81
      %p85 = pneg %p79
      %p86 = scmp.eq.s32.totalorder %s18, 1
      %p87 = por %p85, %p86
      %p88 = scmp.ne.s32.totalorder %s80, %s83
      %p89 = scmp.eq.s32.totalorder %s18, 0
      %p90 = por %p88, %p89
      %p91 = scmp.ne.s32.totalorder %s80, %s83
      %p92 = scmp.eq.s32.totalorder %s23, 1
      %p93 = por %p91, %p92
      %p94 = scmp.ne.s32.totalorder %s83, %s84
      %p95 = scmp.eq.s32.totalorder %s23, 0
      %p96 = por %p94, %p95
      %p97 = scmp.ne.s32.totalorder %s83, %s84
      %p98 = scmp.eq.s32.totalorder %s24, 1
      %p99 = por %p97, %p98
      %p101 = scmp.ne.s32.totalorder %s84, %s100
      %p102 = scmp.eq.s32.totalorder %s24, 0
      %p103 = por %p101, %p102
      %s104 = ssub.s32 %s18, %s25
      %p105 = scmp.eq.s32.totalorder %s104, 0
      %s107 = sadd.s32 %s106, 1
      %s108 = scalar_select %p105, %s106, %s107
      %p111 = pneg %p105
      %p112 = scmp.eq.s32.totalorder %s18, 1
      %p113 = por %p111, %p112
      %p114 = scmp.ne.s32.totalorder %s106, %s109
      %p115 = scmp.eq.s32.totalorder %s18, 0
      %p116 = por %p114, %p115
      %p117 = scmp.ne.s32.totalorder %s106, %s109
      %p118 = scmp.eq.s32.totalorder %s23, 1
      %p119 = por %p117, %p118
      %p120 = scmp.ne.s32.totalorder %s109, %s110
      %p121 = scmp.eq.s32.totalorder %s23, 0
      %p122 = por %p120, %p121
      %p123 = scmp.ne.s32.totalorder %s109, %s110
      %p124 = scmp.eq.s32.totalorder %s24, 1
      %p125 = por %p123, %p124
      %p127 = scmp.ne.s32.totalorder %s110, %s126
      %p128 = scmp.eq.s32.totalorder %s24, 0
      %p129 = por %p127, %p128
      %s131 = sadd.s32 %s130, 1
      %p134 = scmp.eq.s32.totalorder %s18, 1
      %p135 = scmp.ne.s32.totalorder %s130, %s132
      %p136 = scmp.eq.s32.totalorder %s18, 0
      %p137 = por %p135, %p136
      %p138 = scmp.ne.s32.totalorder %s130, %s132
      %p139 = scmp.eq.s32.totalorder %s23, 1
      %p140 = por %p138, %p139
      %p141 = scmp.ne.s32.totalorder %s132, %s133
      %p142 = scmp.eq.s32.totalorder %s23, 0
      %p143 = por %p141, %p142
      %p144 = scmp.ne.s32.totalorder %s132, %s133
      %p145 = scmp.eq.s32.totalorder %s24, 1
      %p146 = por %p144, %p145
      %p148 = scmp.ne.s32.totalorder %s133, %s147
      %p149 = scmp.eq.s32.totalorder %s24, 0
      %p150 = por %p148, %p149
      %s152 = sadd.s32 %s151, 1
      %p155 = scmp.eq.s32.totalorder %s18, 1
      %p156 = scmp.ne.s32.totalorder %s151, %s153
      %p157 = scmp.eq.s32.totalorder %s18, 0
      %p158 = por %p156, %p157
      %p159 = scmp.ne.s32.totalorder %s151, %s153
      %p160 = scmp.eq.s32.totalorder %s23, 1
      %p161 = por %p159, %p160
      %p162 = scmp.ne.s32.totalorder %s153, %s154
      %p163 = scmp.eq.s32.totalorder %s23, 0
      %p164 = por %p162, %p163
      %p165 = scmp.ne.s32.totalorder %s153, %s154
      %p166 = scmp.eq.s32.totalorder %s24, 1
      %p167 = por %p165, %p166
      %p169 = scmp.ne.s32.totalorder %s154, %s168
      %p170 = scmp.eq.s32.totalorder %s24, 0
      %p171 = por %p169, %p170
      %s173 = sadd.s32 %s172, 1
      %p176 = scmp.eq.s32.totalorder %s18, 1
      %p177 = scmp.ne.s32.totalorder %s172, %s174
      %p178 = scmp.eq.s32.totalorder %s18, 0
      %p179 = por %p177, %p178
      %p180 = scmp.ne.s32.totalorder %s172, %s174
      %p181 = scmp.eq.s32.totalorder %s23, 1
      %p182 = por %p180, %p181
      %p183 = scmp.ne.s32.totalorder %s174, %s175
      %p184 = scmp.eq.s32.totalorder %s23, 0
      %p185 = por %p183, %p184
      %p186 = scmp.ne.s32.totalorder %s174, %s175
      %p187 = scmp.eq.s32.totalorder %s24, 1
      %p188 = por %p186, %p187
      %p190 = scmp.ne.s32.totalorder %s175, %s189
      %p191 = scmp.eq.s32.totalorder %s24, 0
      %p192 = por %p190, %p191
      %s194 = sadd.s32 %s193, 1
      %p197 = scmp.eq.s32.totalorder %s18, 1
      %p198 = scmp.ne.s32.totalorder %s193, %s195
      %p199 = scmp.eq.s32.totalorder %s18, 0
      %p200 = por %p198, %p199
      %p201 = scmp.ne.s32.totalorder %s193, %s195
      %p202 = scmp.eq.s32.totalorder %s23, 1
      %p203 = por %p201, %p202
      %p204 = scmp.ne.s32.totalorder %s195, %s196
      %p205 = scmp.eq.s32.totalorder %s23, 0
      %p206 = por %p204, %p205
      %p207 = scmp.ne.s32.totalorder %s195, %s196
      %p208 = scmp.eq.s32.totalorder %s24, 1
      %p209 = por %p207, %p208
      %p211 = scmp.ne.s32.totalorder %s196, %s210
      %p212 = scmp.eq.s32.totalorder %s24, 0
      %p213 = por %p211, %p212
      %s215 = sadd.s32 %s214, 1
      %p218 = scmp.eq.s32.totalorder %s18, 1
      %p219 = scmp.ne.s32.totalorder %s214, %s216
      %p220 = scmp.eq.s32.totalorder %s18, 0
      %p221 = por %p219, %p220
      %p222 = scmp.ne.s32.totalorder %s214, %s216
      %p223 = scmp.eq.s32.totalorder %s23, 1
      %p224 = por %p222, %p223
      %p225 = scmp.ne.s32.totalorder %s216, %s217
      %p226 = scmp.eq.s32.totalorder %s23, 0
      %p227 = por %p225, %p226
      %p228 = scmp.ne.s32.totalorder %s216, %s217
      %p229 = scmp.eq.s32.totalorder %s24, 1
      %p230 = por %p228, %p229
      %p232 = scmp.ne.s32.totalorder %s217, %s231
      %p233 = scmp.eq.s32.totalorder %s24, 0
      %p234 = por %p232, %p233
      %s235 = ssub.s32 %s18, %s25
      %p236 = scmp.eq.s32.totalorder %s235, 0
      %s238 = sadd.s32 %s237, 1
      %s239 = scalar_select %p236, %s237, %s238
      %p242 = pneg %p236
      %p243 = scmp.eq.s32.totalorder %s18, 1
      %p244 = por %p242, %p243
      %p245 = scmp.ne.s32.totalorder %s237, %s240
      %p246 = scmp.eq.s32.totalorder %s18, 0
      %p247 = por %p245, %p246
      %p248 = scmp.ne.s32.totalorder %s237, %s240
      %p249 = scmp.eq.s32.totalorder %s23, 1
      %p250 = por %p248, %p249
      %p251 = scmp.ne.s32.totalorder %s240, %s241
      %p252 = scmp.eq.s32.totalorder %s23, 0
      %p253 = por %p251, %p252
      %p254 = scmp.ne.s32.totalorder %s240, %s241
      %p255 = scmp.eq.s32.totalorder %s24, 1
      %p256 = por %p254, %p255
      %p258 = scmp.ne.s32.totalorder %s241, %s257
      %p259 = scmp.eq.s32.totalorder %s24, 0
      %p260 = por %p258, %p259
      %p261 = scmp.le.s32.totalorder 1, %s18
      %p262 = scmp.lt.s32.totalorder %s18, 3
      %p263 = pnand %p261, %p262
      %p264 = pneg %p263
      // Predicated region
      $region9: #{tpu_custom_call.1} parent=5 // pred_check
        _
      $region10: #{tpu_custom_call.1} parent=5 // pred_check_branch
        %266 = sbr.rel (%p263) target = $region12
      $region11: #{tpu_custom_call.1} parent=5 // pred_region
        %s267 = ssub.s32 %s18, 1
        // Predicated region
        $region13: #{tpu_custom_call.1} parent=11 // pred_check
          %p268 = pneg %p143
        $region14: #{tpu_custom_call.1} parent=11 // pred_check_branch
          %270 = sbr.rel (%p268) target = $region16
        $region15: #{tpu_custom_call.1} parent=11 // pred_region
          _
        $region16: #{tpu_custom_call.1} parent=11 // pred_fallthru
          _
        // Predicated region
        $region17: #{tpu_custom_call.1} parent=11 // pred_check
          %p271 = pneg %p164
        $region18: #{tpu_custom_call.1} parent=11 // pred_check_branch
          %273 = sbr.rel (%p271) target = $region20
        $region19: #{tpu_custom_call.1} parent=11 // pred_region
          _
        $region20: #{tpu_custom_call.1} parent=11 // pred_fallthru
          _
        // Predicated region
        $region21: #{tpu_custom_call.1} parent=11 // pred_check
          %p274 = pneg %p185
        $region22: #{tpu_custom_call.1} parent=11 // pred_check_branch
          %276 = sbr.rel (%p274) target = $region24
        $region23: #{tpu_custom_call.1} parent=11 // pred_region
          _
        $region24: #{tpu_custom_call.1} parent=11 // pred_fallthru
          _
        // Predicated region
        $region25: #{tpu_custom_call.1} parent=11 // pred_check
          %p277 = pneg %p206
        $region26: #{tpu_custom_call.1} parent=11 // pred_check_branch
          %279 = sbr.rel (%p277) target = $region28
        $region27: #{tpu_custom_call.1} parent=11 // pred_region
          _
        $region28: #{tpu_custom_call.1} parent=11 // pred_fallthru
          _
        // Predicated region
        $region29: #{tpu_custom_call.1} parent=11 // pred_check
          %p280 = pneg %p227
        $region30: #{tpu_custom_call.1} parent=11 // pred_check_branch
          %282 = sbr.rel (%p280) target = $region32
        $region31: #{tpu_custom_call.1} parent=11 // pred_region
          _
        $region32: #{tpu_custom_call.1} parent=11 // pred_fallthru
          _
      $region12: #{tpu_custom_call.1} parent=5 // pred_fallthru
        _
      %p283 = scmp.lt.s32.totalorder %s18, 2
      // Predicated region
      $region33: #{tpu_custom_call.1} parent=5 // pred_check
        %p284 = pneg %p283
      $region34: #{tpu_custom_call.1} parent=5 // pred_check_branch
        %286 = sbr.rel (%p284) target = $region36
      $region35: #{tpu_custom_call.1} parent=5 // pred_region
        // Predicated region
        $region37: #{tpu_custom_call.1} parent=35 // pred_check
          %p287 = pneg %p38
        $region38: #{tpu_custom_call.1} parent=35 // pred_check_branch
          %289 = sbr.rel (%p287) target = $region40
        $region39: #{tpu_custom_call.1} parent=35 // pred_region
          %p290 = scmp.lt.s32.totalorder %s18, 1
          %s291 = scalar_select %p290, %s18, 1
          %s292 = smul.addr %s291, 8
          %s293 = scalar_lea.vmem %s0, %s292
        $region40: #{tpu_custom_call.1} parent=35 // pred_fallthru
          _
        // Predicated region
        $region41: #{tpu_custom_call.1} parent=35 // pred_check
          %p294 = pneg %p64
        $region42: #{tpu_custom_call.1} parent=35 // pred_check_branch
          %296 = sbr.rel (%p294) target = $region44
        $region43: #{tpu_custom_call.1} parent=35 // pred_region
          %p297 = scmp.lt.s32.totalorder %s18, 1
          %s298 = scalar_select %p297, %s18, 1
          %s299 = smul.addr %s298, 8
          %s300 = scalar_lea.vmem %s1, %s299
        $region44: #{tpu_custom_call.1} parent=35 // pred_fallthru
          _
        // Predicated region
        $region45: #{tpu_custom_call.1} parent=35 // pred_check
          %p301 = pneg %p90
        $region46: #{tpu_custom_call.1} parent=35 // pred_check_branch
          %303 = sbr.rel (%p301) target = $region48
        $region47: #{tpu_custom_call.1} parent=35 // pred_region
          %p304 = scmp.lt.s32.totalorder %s18, 1
          %s305 = scalar_select %p304, %s18, 1
          %s306 = smul.addr %s305, 8
          %s307 = scalar_lea.vmem %s2, %s306
        $region48: #{tpu_custom_call.1} parent=35 // pred_fallthru
          _
        // Predicated region
        $region49: #{tpu_custom_call.1} parent=35 // pred_check
          %p308 = pneg %p116
        $region50: #{tpu_custom_call.1} parent=35 // pred_check_branch
          %310 = sbr.rel (%p308) target = $region52
        $region51: #{tpu_custom_call.1} parent=35 // pred_region
          %p311 = scmp.lt.s32.totalorder %s18, 1
          %s312 = scalar_select %p311, %s18, 1
          %s313 = scalar_lea.vmem %s3, %s312
        $region52: #{tpu_custom_call.1} parent=35 // pred_fallthru
          _
      $region36: #{tpu_custom_call.1} parent=5 // pred_fallthru
        _
      %p314 = scmp.le.s32.totalorder 1, %s18
      %p315 = scmp.lt.s32.totalorder %s18, 3
      %p316 = pnand %p314, %p315
      %p317 = pneg %p316
      // Predicated region
      $region53: #{tpu_custom_call.1} parent=5 // pred_check
        _
      $region54: #{tpu_custom_call.1} parent=5 // pred_check_branch
        %319 = sbr.rel (%p316) target = $region56
      $region55: #{tpu_custom_call.1} parent=5 // pred_region
        %s320 = ssub.s32 %s18, 1
        %p321 = scmp.lt.s32.totalorder %s23, 1
        %s322 = scalar_select %p321, %s23, 1
        %s323 = smul.addr %s322, 8
        %s324 = scalar_lea.vmem %s0, %s323
        %p325 = pneg %p44
        %p326 = pneg %p41
        %p327 = scmp.lt.s32.totalorder %s23, 1
        %s328 = scalar_select %p327, %s23, 1
        %s329 = smul.addr %s328, 8
        %s330 = scalar_lea.vmem %s1, %s329
        %p331 = pneg %p70
        %p332 = pneg %p67
        %p333 = scmp.lt.s32.totalorder %s23, 1
        %s334 = scalar_select %p333, %s23, 1
        %s335 = smul.addr %s334, 8
        %s336 = scalar_lea.vmem %s2, %s335
        %p337 = pneg %p96
        %p338 = pneg %p93
        %p339 = scmp.lt.s32.totalorder %s23, 1
        %s340 = scalar_select %p339, %s23, 1
        %s341 = scalar_lea.vmem %s3, %s340
        %p342 = pneg %p122
        %p343 = pneg %p119
        %p344 = pneg %p143
        %p345 = pneg %p140
        %p346 = pneg %p164
        %p347 = pneg %p161
        %p348 = pneg %p185
        %p349 = pneg %p182
        %p350 = pneg %p206
        %p351 = pneg %p203
        %p352 = pneg %p227
        %p353 = pneg %p224
        %p354 = pneg %p253
        %p355 = pneg %p250
        %s356 = sand.u32 %s240, 1
        %s357 = scalar_lea.sflag [#allocation3], %s356
        %s358 = sand.u32 %s240, 1
        %s359 = smul.addr %s358, 8
        %s360 = scalar_lea.vmem [#allocation2], %s359
        %p361 = scmp.lt.s32.totalorder %s23, 1
        %s362 = scalar_select %p361, %s23, 1
        %s363 = smul.addr %s362, 8
        %s364 = scalar_lea.vmem %s0, %s363
        %p365 = scmp.lt.s32.totalorder %s23, 1
        %s366 = scalar_select %p365, %s23, 1
        %s367 = smul.addr %s366, 8
        %s368 = scalar_lea.vmem %s1, %s367
        %p369 = scmp.lt.s32.totalorder %s23, 1
        %s370 = scalar_select %p369, %s23, 1
        %s371 = smul.addr %s370, 8
        %s372 = scalar_lea.vmem %s2, %s371
        %p373 = scmp.lt.s32.totalorder %s23, 1
        %s374 = scalar_select %p373, %s23, 1
        %s375 = scalar_lea.vmem %s3, %s374
        %v377 = vld [vmem:[%s364] sm:$0xff]
        %v378 = vld [vmem:[%s368] sm:$0xff]
        %v379 = vld [vmem:[%s372] sm:$0xff]
        %v380 = vld [vmem:[%s375] sm:$0x1]
        %v381 = vpack.c.bf16 %v377, %v377
        %v382 = vpack.c.bf16 %v378, %v378
        %v383 = vpack.c.bf16 %v379, %v379
        %v384 = vld [vmem:[%s4] sm:$0xf]
        %v385 = vld [vmem:[%s4 + $0x4] sm:$0xf]
        %v386 = vld [vmem:[%s4 + $0x8] sm:$0xf]
        %v387 = vld [vmem:[%s4 + $0xc] sm:$0xf]
        %v388 = vld [vmem:[%s4 + $0x10] sm:$0xf]
        %v389 = vld [vmem:[%s4 + $0x14] sm:$0xf]
        %v390 = vld [vmem:[%s4 + $0x18] sm:$0xf]
        %v391 = vld [vmem:[%s4 + $0x1c] sm:$0xf]
        %v392 = vld [vmem:[%s4 + $0x20] sm:$0xf]
        %v393 = vld [vmem:[%s4 + $0x24] sm:$0xf]
        %v394 = vld [vmem:[%s4 + $0x28] sm:$0xf]
        %v395 = vld [vmem:[%s4 + $0x2c] sm:$0xf]
        %v396 = vld [vmem:[%s4 + $0x30] sm:$0xf]
        %v397 = vld [vmem:[%s4 + $0x34] sm:$0xf]
        %v398 = vld [vmem:[%s4 + $0x38] sm:$0xf]
        %v399 = vld [vmem:[%s4 + $0x3c] sm:$0xf]
        %v404 = vunpack.c.l.b16 %v384
        %v405 = vunpack.c.l.b16 %v385
        %v406 = vunpack.c.l.b16 %v386
        %v407 = vunpack.c.l.b16 %v387
        %v408 = vpack.c.b16 %v405, %v404
        %v409 = vpack.c.b16 %v407, %v406
        %vm412 = vcmask 261120
        %v414 = vsel %vm412, %v381, 0
        %416 = vmatprep.subr.bf16.mxu0 0
        %417 = vmatpush1.bf16.msra.mxu0 %v408
        %418 = vmatprep.subr.bf16.mxu0 0
        %419 = vmatpush1.bf16.msra.mxu0 %v409
        %420 = vmatprep.subr.bf16.mxu0 0
        %421 = vmatpush1.bf16.msra.mxu0 0
        %422 = vmatprep.subr.bf16.mxu0 0
        %423 = vmatpush1.bf16.msra.mxu0 0
        %424 = vmatprep.subr.bf16.mxu0 0
        %425 = vmatpush1.bf16.msra.mxu0 0
        %426 = vmatprep.subr.bf16.mxu0 0
        %427 = vmatpush1.bf16.msra.mxu0 0
        %428 = vmatprep.subr.bf16.mxu0 0
        %429 = vmatpush1.bf16.msra.mxu0 0
        %430 = vmatprep.subr.bf16.mxu0 0
        %431 = vmatpush1.bf16.msra.mxu0 0
        %432 = vmatprep.subr.bf16.mxu0 0
        %433 = vmatpush1.bf16.msra.mxu0 0
        %434 = vmatprep.subr.bf16.mxu0 0
        %435 = vmatpush1.bf16.msra.mxu0 0
        %436 = vmatprep.subr.bf16.mxu0 0
        %437 = vmatpush1.bf16.msra.mxu0 0
        %438 = vmatprep.subr.bf16.mxu0 0
        %439 = vmatpush1.bf16.msra.mxu0 0
        %440 = vmatprep.subr.bf16.mxu0 0
        %441 = vmatpush1.bf16.msra.mxu0 0
        %442 = vmatprep.subr.bf16.mxu0 0
        %443 = vmatpush1.bf16.msra.mxu0 0
        %444 = vmatprep.subr.bf16.mxu0 0
        %445 = vmatpush1.bf16.msra.mxu0 0
        %446 = vmatprep.subr.bf16.mxu0 0
        %447 = vmatpush1.bf16.msra.mxu0 0
        %448 = vmatprep.mubr.bf16.mxu0 0
        %449 = vmatmul.mubr.bf16.gmra.mrb[0].mxu0 %v414
        %v450 = vpop.f32.mrb[0].mxu0
        %v451 = vadd.f32 0.0, %v450
        %v452 = vpop.f32.mrb[0].mxu0
        %v453 = vpop.f32.mrb[0].mxu0
        %v454 = vpop.f32.mrb[0].mxu0
        %455 = vdwg.mxu0
        %v460 = vunpack.c.l.b16 %v388
        %v461 = vunpack.c.l.b16 %v389
        %v462 = vunpack.c.l.b16 %v390
        %v463 = vunpack.c.l.b16 %v391
        %v464 = vpack.c.b16 %v461, %v460
        %v465 = vpack.c.b16 %v463, %v462
        %468 = vmatprep.subr.bf16.mxu0 0
        %469 = vmatpush1.bf16.msra.mxu0 %v464
        %470 = vmatprep.subr.bf16.mxu0 0
        %471 = vmatpush1.bf16.msra.mxu0 %v465
        %472 = vmatprep.subr.bf16.mxu0 0
        %473 = vmatpush1.bf16.msra.mxu0 0
        %474 = vmatprep.subr.bf16.mxu0 0
        %475 = vmatpush1.bf16.msra.mxu0 0
        %476 = vmatprep.subr.bf16.mxu0 0
        %477 = vmatpush1.bf16.msra.mxu0 0
        %478 = vmatprep.subr.bf16.mxu0 0
        %479 = vmatpush1.bf16.msra.mxu0 0
        %480 = vmatprep.subr.bf16.mxu0 0
        %481 = vmatpush1.bf16.msra.mxu0 0
        %482 = vmatprep.subr.bf16.mxu0 0
        %483 = vmatpush1.bf16.msra.mxu0 0
        %484 = vmatprep.subr.bf16.mxu0 0
        %485 = vmatpush1.bf16.msra.mxu0 0
        %486 = vmatprep.subr.bf16.mxu0 0
        %487 = vmatpush1.bf16.msra.mxu0 0
        %488 = vmatprep.subr.bf16.mxu0 0
        %489 = vmatpush1.bf16.msra.mxu0 0
        %490 = vmatprep.subr.bf16.mxu0 0
        %491 = vmatpush1.bf16.msra.mxu0 0
        %492 = vmatprep.subr.bf16.mxu0 0
        %493 = vmatpush1.bf16.msra.mxu0 0
        %494 = vmatprep.subr.bf16.mxu0 0
        %495 = vmatpush1.bf16.msra.mxu0 0
        %496 = vmatprep.subr.bf16.mxu0 0
        %497 = vmatpush1.bf16.msra.mxu0 0
        %498 = vmatprep.subr.bf16.mxu0 0
        %499 = vmatpush1.bf16.msra.mxu0 0
        %500 = vmatprep.mubr.bf16.mxu0 0
        %501 = vmatmul.mubr.bf16.gmra.mrb[0].mxu0 %v414
        %v502 = vpop.f32.mrb[0].mxu0
        %v503 = vadd.f32 0.0, %v502
        %v504 = vpop.f32.mrb[0].mxu0
        %v505 = vpop.f32.mrb[0].mxu0
        %v506 = vpop.f32.mrb[0].mxu0
        %507 = vdwg.mxu0
        %v512 = vunpack.c.l.b16 %v392
        %v513 = vunpack.c.l.b16 %v393
        %v514 = vunpack.c.l.b16 %v394
        %v515 = vunpack.c.l.b16 %v395
        %v516 = vpack.c.b16 %v513, %v512
        %v517 = vpack.c.b16 %v515, %v514
        %520 = vmatprep.subr.bf16.mxu0 0
        %521 = vmatpush1.bf16.msra.mxu0 %v516
        %522 = vmatprep.subr.bf16.mxu0 0
        %523 = vmatpush1.bf16.msra.mxu0 %v517
        %524 = vmatprep.subr.bf16.mxu0 0
        %525 = vmatpush1.bf16.msra.mxu0 0
        %526 = vmatprep.subr.bf16.mxu0 0
        %527 = vmatpush1.bf16.msra.mxu0 0
        %528 = vmatprep.subr.bf16.mxu0 0
        %529 = vmatpush1.bf16.msra.mxu0 0
        %530 = vmatprep.subr.bf16.mxu0 0
        %531 = vmatpush1.bf16.msra.mxu0 0
        %532 = vmatprep.subr.bf16.mxu0 0
        %533 = vmatpush1.bf16.msra.mxu0 0
        %534 = vmatprep.subr.bf16.mxu0 0
        %535 = vmatpush1.bf16.msra.mxu0 0
        %536 = vmatprep.subr.bf16.mxu0 0
        %537 = vmatpush1.bf16.msra.mxu0 0
        %538 = vmatprep.subr.bf16.mxu0 0
        %539 = vmatpush1.bf16.msra.mxu0 0
        %540 = vmatprep.subr.bf16.mxu0 0
        %541 = vmatpush1.bf16.msra.mxu0 0
        %542 = vmatprep.subr.bf16.mxu0 0
        %543 = vmatpush1.bf16.msra.mxu0 0
        %544 = vmatprep.subr.bf16.mxu0 0
        %545 = vmatpush1.bf16.msra.mxu0 0
        %546 = vmatprep.subr.bf16.mxu0 0
        %547 = vmatpush1.bf16.msra.mxu0 0
        %548 = vmatprep.subr.bf16.mxu0 0
        %549 = vmatpush1.bf16.msra.mxu0 0
        %550 = vmatprep.subr.bf16.mxu0 0
        %551 = vmatpush1.bf16.msra.mxu0 0
        %552 = vmatprep.mubr.bf16.mxu0 0
        %553 = vmatmul.mubr.bf16.gmra.mrb[0].mxu0 %v414
        %v554 = vpop.f32.mrb[0].mxu0
        %v555 = vadd.f32 0.0, %v554
        %v556 = vpop.f32.mrb[0].mxu0
        %v557 = vpop.f32.mrb[0].mxu0
        %v558 = vpop.f32.mrb[0].mxu0
        %559 = vdwg.mxu0
        %v564 = vunpack.c.l.b16 %v396
        %v565 = vunpack.c.l.b16 %v397
        %v566 = vunpack.c.l.b16 %v398
        %v567 = vunpack.c.l.b16 %v399
        %v568 = vpack.c.b16 %v565, %v564
        %v569 = vpack.c.b16 %v567, %v566
        %572 = vmatprep.subr.bf16.mxu0 0
        %573 = vmatpush1.bf16.msra.mxu0 %v568
        %574 = vmatprep.subr.bf16.mxu0 0
        %575 = vmatpush1.bf16.msra.mxu0 %v569
        %576 = vmatprep.subr.bf16.mxu0 0
        %577 = vmatpush1.bf16.msra.mxu0 0
        %578 = vmatprep.subr.bf16.mxu0 0
        %579 = vmatpush1.bf16.msra.mxu0 0
        %580 = vmatprep.subr.bf16.mxu0 0
        %581 = vmatpush1.bf16.msra.mxu0 0
        %582 = vmatprep.subr.bf16.mxu0 0
        %583 = vmatpush1.bf16.msra.mxu0 0
        %584 = vmatprep.subr.bf16.mxu0 0
        %585 = vmatpush1.bf16.msra.mxu0 0
        %586 = vmatprep.subr.bf16.mxu0 0
        %587 = vmatpush1.bf16.msra.mxu0 0
        %588 = vmatprep.subr.bf16.mxu0 0
        %589 = vmatpush1.bf16.msra.mxu0 0
        %590 = vmatprep.subr.bf16.mxu0 0
        %591 = vmatpush1.bf16.msra.mxu0 0
        %592 = vmatprep.subr.bf16.mxu0 0
        %593 = vmatpush1.bf16.msra.mxu0 0
        %594 = vmatprep.subr.bf16.mxu0 0
        %595 = vmatpush1.bf16.msra.mxu0 0
        %596 = vmatprep.subr.bf16.mxu0 0
        %597 = vmatpush1.bf16.msra.mxu0 0
        %598 = vmatprep.subr.bf16.mxu0 0
        %599 = vmatpush1.bf16.msra.mxu0 0
        %600 = vmatprep.subr.bf16.mxu0 0
        %601 = vmatpush1.bf16.msra.mxu0 0
        %602 = vmatprep.subr.bf16.mxu0 0
        %603 = vmatpush1.bf16.msra.mxu0 0
        %604 = vmatprep.mubr.bf16.mxu0 0
        %605 = vmatmul.mubr.bf16.gmra.mrb[0].mxu0 %v414
        %v606 = vpop.f32.mrb[0].mxu0
        %v607 = vadd.f32 0.0, %v606
        %v608 = vpop.f32.mrb[0].mxu0
        %v609 = vpop.f32.mrb[0].mxu0
        %v610 = vpop.f32.mrb[0].mxu0
        %611 = vdwg.mxu0
        %v612 = vmul.f32 %v451, 0.35355338
        %v613 = vmul.f32 %v503, 0.35355338
        %v614 = vmul.f32 %v555, 0.35355338
        %v615 = vmul.f32 %v607, 0.35355338
        %v616 = vpack.c.bf16 %v612, %v612
        %v617 = vpack.c.bf16 %v613, %v613
        %v618 = vpack.c.bf16 %v614, %v614
        %v619 = vpack.c.bf16 %v615, %v615
        %v620 = vld [vmem:[%s5] sm:$0xf]
        %v621 = vld [vmem:[%s5 + $0x4] sm:$0xf]
        %v622 = vld [vmem:[%s5 + $0x8] sm:$0xf]
        %v623 = vld [vmem:[%s5 + $0xc] sm:$0xf]
        %v624 = vld [vmem:[%s5 + $0x10] sm:$0xf]
        %v625 = vld [vmem:[%s5 + $0x14] sm:$0xf]
        %v626 = vld [vmem:[%s5 + $0x18] sm:$0xf]
        %v627 = vld [vmem:[%s5 + $0x1c] sm:$0xf]
        %v628 = vld [vmem:[%s5 + $0x20] sm:$0xf]
        %v629 = vld [vmem:[%s5 + $0x24] sm:$0xf]
        %v630 = vld [vmem:[%s5 + $0x28] sm:$0xf]
        %v631 = vld [vmem:[%s5 + $0x2c] sm:$0xf]
        %v632 = vld [vmem:[%s5 + $0x30] sm:$0xf]
        %v633 = vld [vmem:[%s5 + $0x34] sm:$0xf]
        %v634 = vld [vmem:[%s5 + $0x38] sm:$0xf]
        %v635 = vld [vmem:[%s5 + $0x3c] sm:$0xf]
        %v640 = vunpack.c.l.b16 %v620
        %v641 = vunpack.c.l.b16 %v621
        %v642 = vunpack.c.l.b16 %v622
        %v643 = vunpack.c.l.b16 %v623
        %v644 = vpack.c.b16 %v641, %v640
        %v645 = vpack.c.b16 %v643, %v642
        %v649 = vsel %vm412, %v382, 0
        %651 = vmatprep.subr.bf16.mxu0 0
        %652 = vmatpush1.bf16.msra.mxu0 %v644
        %653 = vmatprep.subr.bf16.mxu0 0
        %654 = vmatpush1.bf16.msra.mxu0 %v645
        %655 = vmatprep.subr.bf16.mxu0 0
        %656 = vmatpush1.bf16.msra.mxu0 0
        %657 = vmatprep.subr.bf16.mxu0 0
        %658 = vmatpush1.bf16.msra.mxu0 0
        %659 = vmatprep.subr.bf16.mxu0 0
        %660 = vmatpush1.bf16.msra.mxu0 0
        %661 = vmatprep.subr.bf16.mxu0 0
        %662 = vmatpush1.bf16.msra.mxu0 0
        %663 = vmatprep.subr.bf16.mxu0 0
        %664 = vmatpush1.bf16.msra.mxu0 0
        %665 = vmatprep.subr.bf16.mxu0 0
        %666 = vmatpush1.bf16.msra.mxu0 0
        %667 = vmatprep.subr.bf16.mxu0 0
        %668 = vmatpush1.bf16.msra.mxu0 0
        %669 = vmatprep.subr.bf16.mxu0 0
        %670 = vmatpush1.bf16.msra.mxu0 0
        %671 = vmatprep.subr.bf16.mxu0 0
        %672 = vmatpush1.bf16.msra.mxu0 0
        %673 = vmatprep.subr.bf16.mxu0 0
        %674 = vmatpush1.bf16.msra.mxu0 0
        %675 = vmatprep.subr.bf16.mxu0 0
        %676 = vmatpush1.bf16.msra.mxu0 0
        %677 = vmatprep.subr.bf16.mxu0 0
        %678 = vmatpush1.bf16.msra.mxu0 0
        %679 = vmatprep.subr.bf16.mxu0 0
        %680 = vmatpush1.bf16.msra.mxu0 0
        %681 = vmatprep.subr.bf16.mxu0 0
        %682 = vmatpush1.bf16.msra.mxu0 0
        %683 = vmatprep.mubr.bf16.mxu0 0
        %684 = vmatmul.mubr.bf16.gmra.mrb[0].mxu0 %v649
        %v685 = vpop.f32.mrb[0].mxu0
        %v686 = vadd.f32 0.0, %v685
        %v687 = vpop.f32.mrb[0].mxu0
        %v688 = vpop.f32.mrb[0].mxu0
        %v689 = vpop.f32.mrb[0].mxu0
        %690 = vdwg.mxu0
        %v695 = vunpack.c.l.b16 %v624
        %v696 = vunpack.c.l.b16 %v625
        %v697 = vunpack.c.l.b16 %v626
        %v698 = vunpack.c.l.b16 %v627
        %v699 = vpack.c.b16 %v696, %v695
        %v700 = vpack.c.b16 %v698, %v697
        %703 = vmatprep.subr.bf16.mxu0 0
        %704 = vmatpush1.bf16.msra.mxu0 %v699
        %705 = vmatprep.subr.bf16.mxu0 0
        %706 = vmatpush1.bf16.msra.mxu0 %v700
        %707 = vmatprep.subr.bf16.mxu0 0
        %708 = vmatpush1.bf16.msra.mxu0 0
        %709 = vmatprep.subr.bf16.mxu0 0
        %710 = vmatpush1.bf16.msra.mxu0 0
        %711 = vmatprep.subr.bf16.mxu0 0
        %712 = vmatpush1.bf16.msra.mxu0 0
        %713 = vmatprep.subr.bf16.mxu0 0
        %714 = vmatpush1.bf16.msra.mxu0 0
        %715 = vmatprep.subr.bf16.mxu0 0
        %716 = vmatpush1.bf16.msra.mxu0 0
        %717 = vmatprep.subr.bf16.mxu0 0
        %718 = vmatpush1.bf16.msra.mxu0 0
        %719 = vmatprep.subr.bf16.mxu0 0
        %720 = vmatpush1.bf16.msra.mxu0 0
        %721 = vmatprep.subr.bf16.mxu0 0
        %722 = vmatpush1.bf16.msra.mxu0 0
        %723 = vmatprep.subr.bf16.mxu0 0
        %724 = vmatpush1.bf16.msra.mxu0 0
        %725 = vmatprep.subr.bf16.mxu0 0
        %726 = vmatpush1.bf16.msra.mxu0 0
        %727 = vmatprep.subr.bf16.mxu0 0
        %728 = vmatpush1.bf16.msra.mxu0 0
        %729 = vmatprep.subr.bf16.mxu0 0
        %730 = vmatpush1.bf16.msra.mxu0 0
        %731 = vmatprep.subr.bf16.mxu0 0
        %732 = vmatpush1.bf16.msra.mxu0 0
        %733 = vmatprep.subr.bf16.mxu0 0
        %734 = vmatpush1.bf16.msra.mxu0 0
        %735 = vmatprep.mubr.bf16.mxu0 0
        %736 = vmatmul.mubr.bf16.gmra.mrb[0].mxu0 %v649
        %v737 = vpop.f32.mrb[0].mxu0
        %v738 = vadd.f32 0.0, %v737
        %v739 = vpop.f32.mrb[0].mxu0
        %v740 = vpop.f32.mrb[0].mxu0
        %v741 = vpop.f32.mrb[0].mxu0
        %742 = vdwg.mxu0
        %v747 = vunpack.c.l.b16 %v628
        %v748 = vunpack.c.l.b16 %v629
        %v749 = vunpack.c.l.b16 %v630
        %v750 = vunpack.c.l.b16 %v631
        %v751 = vpack.c.b16 %v748, %v747
        %v752 = vpack.c.b16 %v750, %v749
        %755 = vmatprep.subr.bf16.mxu0 0
        %756 = vmatpush1.bf16.msra.mxu0 %v751
        %757 = vmatprep.subr.bf16.mxu0 0
        %758 = vmatpush1.bf16.msra.mxu0 %v752
        %759 = vmatprep.subr.bf16.mxu0 0
        %760 = vmatpush1.bf16.msra.mxu0 0
        %761 = vmatprep.subr.bf16.mxu0 0
        %762 = vmatpush1.bf16.msra.mxu0 0
        %763 = vmatprep.subr.bf16.mxu0 0
        %764 = vmatpush1.bf16.msra.mxu0 0
        %765 = vmatprep.subr.bf16.mxu0 0
        %766 = vmatpush1.bf16.msra.mxu0 0
        %767 = vmatprep.subr.bf16.mxu0 0
        %768 = vmatpush1.bf16.msra.mxu0 0
        %769 = vmatprep.subr.bf16.mxu0 0
        %770 = vmatpush1.bf16.msra.mxu0 0
        %771 = vmatprep.subr.bf16.mxu0 0
        %772 = vmatpush1.bf16.msra.mxu0 0
        %773 = vmatprep.subr.bf16.mxu0 0
        %774 = vmatpush1.bf16.msra.mxu0 0
        %775 = vmatprep.subr.bf16.mxu0 0
        %776 = vmatpush1.bf16.msra.mxu0 0
        %777 = vmatprep.subr.bf16.mxu0 0
        %778 = vmatpush1.bf16.msra.mxu0 0
        %779 = vmatprep.subr.bf16.mxu0 0
        %780 = vmatpush1.bf16.msra.mxu0 0
        %781 = vmatprep.subr.bf16.mxu0 0
        %782 = vmatpush1.bf16.msra.mxu0 0
        %783 = vmatprep.subr.bf16.mxu0 0
        %784 = vmatpush1.bf16.msra.mxu0 0
        %785 = vmatprep.subr.bf16.mxu0 0
        %786 = vmatpush1.bf16.msra.mxu0 0
        %787 = vmatprep.mubr.bf16.mxu0 0
        %788 = vmatmul.mubr.bf16.gmra.mrb[0].mxu0 %v649
        %v789 = vpop.f32.mrb[0].mxu0
        %v790 = vadd.f32 0.0, %v789
        %v791 = vpop.f32.mrb[0].mxu0
        %v792 = vpop.f32.mrb[0].mxu0
        %v793 = vpop.f32.mrb[0].mxu0
        %794 = vdwg.mxu0
        %v799 = vunpack.c.l.b16 %v632
        %v800 = vunpack.c.l.b16 %v633
        %v801 = vunpack.c.l.b16 %v634
        %v802 = vunpack.c.l.b16 %v635
        %v803 = vpack.c.b16 %v800, %v799
        %v804 = vpack.c.b16 %v802, %v801
        %807 = vmatprep.subr.bf16.mxu0 0
        %808 = vmatpush1.bf16.msra.mxu0 %v803
        %809 = vmatprep.subr.bf16.mxu0 0
        %810 = vmatpush1.bf16.msra.mxu0 %v804
        %811 = vmatprep.subr.bf16.mxu0 0
        %812 = vmatpush1.bf16.msra.mxu0 0
        %813 = vmatprep.subr.bf16.mxu0 0
        %814 = vmatpush1.bf16.msra.mxu0 0
        %815 = vmatprep.subr.bf16.mxu0 0
        %816 = vmatpush1.bf16.msra.mxu0 0
        %817 = vmatprep.subr.bf16.mxu0 0
        %818 = vmatpush1.bf16.msra.mxu0 0
        %819 = vmatprep.subr.bf16.mxu0 0
        %820 = vmatpush1.bf16.msra.mxu0 0
        %821 = vmatprep.subr.bf16.mxu0 0
        %822 = vmatpush1.bf16.msra.mxu0 0
        %823 = vmatprep.subr.bf16.mxu0 0
        %824 = vmatpush1.bf16.msra.mxu0 0
        %825 = vmatprep.subr.bf16.mxu0 0
        %826 = vmatpush1.bf16.msra.mxu0 0
        %827 = vmatprep.subr.bf16.mxu0 0
        %828 = vmatpush1.bf16.msra.mxu0 0
        %829 = vmatprep.subr.bf16.mxu0 0
        %830 = vmatpush1.bf16.msra.mxu0 0
        %831 = vmatprep.subr.bf16.mxu0 0
        %832 = vmatpush1.bf16.msra.mxu0 0
        %833 = vmatprep.subr.bf16.mxu0 0
        %834 = vmatpush1.bf16.msra.mxu0 0
        %835 = vmatprep.subr.bf16.mxu0 0
        %836 = vmatpush1.bf16.msra.mxu0 0
        %837 = vmatprep.subr.bf16.mxu0 0
        %838 = vmatpush1.bf16.msra.mxu0 0
        %839 = vmatprep.mubr.bf16.mxu0 0
        %840 = vmatmul.mubr.bf16.gmra.mrb[0].mxu0 %v649
        %v841 = vpop.f32.mrb[0].mxu0
        %v842 = vadd.f32 0.0, %v841
        %v843 = vpop.f32.mrb[0].mxu0
        %v844 = vpop.f32.mrb[0].mxu0
        %v845 = vpop.f32.mrb[0].mxu0
        %846 = vdwg.mxu0
        %v847 = vpack.c.bf16 %v686, %v686
        %v848 = vpack.c.bf16 %v738, %v738
        %v849 = vpack.c.bf16 %v790, %v790
        %v850 = vpack.c.bf16 %v842, %v842
        %v851 = vld [vmem:[%s6] sm:$0xf]
        %v852 = vld [vmem:[%s6 + $0x4] sm:$0xf]
        %v853 = vld [vmem:[%s6 + $0x8] sm:$0xf]
        %v854 = vld [vmem:[%s6 + $0xc] sm:$0xf]
        %v855 = vld [vmem:[%s6 + $0x10] sm:$0xf]
        %v856 = vld [vmem:[%s6 + $0x14] sm:$0xf]
        %v857 = vld [vmem:[%s6 + $0x18] sm:$0xf]
        %v858 = vld [vmem:[%s6 + $0x1c] sm:$0xf]
        %v859 = vld [vmem:[%s6 + $0x20] sm:$0xf]
        %v860 = vld [vmem:[%s6 + $0x24] sm:$0xf]
        %v861 = vld [vmem:[%s6 + $0x28] sm:$0xf]
        %v862 = vld [vmem:[%s6 + $0x2c] sm:$0xf]
        %v863 = vld [vmem:[%s6 + $0x30] sm:$0xf]
        %v864 = vld [vmem:[%s6 + $0x34] sm:$0xf]
        %v865 = vld [vmem:[%s6 + $0x38] sm:$0xf]
        %v866 = vld [vmem:[%s6 + $0x3c] sm:$0xf]
        %v871 = vunpack.c.l.b16 %v851
        %v872 = vunpack.c.l.b16 %v852
        %v873 = vunpack.c.l.b16 %v853
        %v874 = vunpack.c.l.b16 %v854
        %v875 = vpack.c.b16 %v872, %v871
        %v876 = vpack.c.b16 %v874, %v873
        %v880 = vsel %vm412, %v383, 0
        %882 = vmatprep.subr.bf16.mxu0 0
        %883 = vmatpush1.bf16.msra.mxu0 %v875
        %884 = vmatprep.subr.bf16.mxu0 0
        %885 = vmatpush1.bf16.msra.mxu0 %v876
        %886 = vmatprep.subr.bf16.mxu0 0
        %887 = vmatpush1.bf16.msra.mxu0 0
        %888 = vmatprep.subr.bf16.mxu0 0
        %889 = vmatpush1.bf16.msra.mxu0 0
        %890 = vmatprep.subr.bf16.mxu0 0
        %891 = vmatpush1.bf16.msra.mxu0 0
        %892 = vmatprep.subr.bf16.mxu0 0
        %893 = vmatpush1.bf16.msra.mxu0 0
        %894 = vmatprep.subr.bf16.mxu0 0
        %895 = vmatpush1.bf16.msra.mxu0 0
        %896 = vmatprep.subr.bf16.mxu0 0
        %897 = vmatpush1.bf16.msra.mxu0 0
        %898 = vmatprep.subr.bf16.mxu0 0
        %899 = vmatpush1.bf16.msra.mxu0 0
        %900 = vmatprep.subr.bf16.mxu0 0
        %901 = vmatpush1.bf16.msra.mxu0 0
        %902 = vmatprep.subr.bf16.mxu0 0
        %903 = vmatpush1.bf16.msra.mxu0 0
        %904 = vmatprep.subr.bf16.mxu0 0
        %905 = vmatpush1.bf16.msra.mxu0 0
        %906 = vmatprep.subr.bf16.mxu0 0
        %907 = vmatpush1.bf16.msra.mxu0 0
        %908 = vmatprep.subr.bf16.mxu0 0
        %909 = vmatpush1.bf16.msra.mxu0 0
        %910 = vmatprep.subr.bf16.mxu0 0
        %911 = vmatpush1.bf16.msra.mxu0 0
        %912 = vmatprep.subr.bf16.mxu0 0
        %913 = vmatpush1.bf16.msra.mxu0 0
        %914 = vmatprep.mubr.bf16.mxu0 0
        %915 = vmatmul.mubr.bf16.gmra.mrb[0].mxu0 %v880
        %v916 = vpop.f32.mrb[0].mxu0
        %v917 = vadd.f32 0.0, %v916
        %v918 = vpop.f32.mrb[0].mxu0
        %v919 = vpop.f32.mrb[0].mxu0
        %v920 = vpop.f32.mrb[0].mxu0
        %921 = vdwg.mxu0
        %v926 = vunpack.c.l.b16 %v855
        %v927 = vunpack.c.l.b16 %v856
        %v928 = vunpack.c.l.b16 %v857
        %v929 = vunpack.c.l.b16 %v858
        %v930 = vpack.c.b16 %v927, %v926
        %v931 = vpack.c.b16 %v929, %v928
        %934 = vmatprep.subr.bf16.mxu0 0
        %935 = vmatpush1.bf16.msra.mxu0 %v930
        %936 = vmatprep.subr.bf16.mxu0 0
        %937 = vmatpush1.bf16.msra.mxu0 %v931
        %938 = vmatprep.subr.bf16.mxu0 0
        %939 = vmatpush1.bf16.msra.mxu0 0
        %940 = vmatprep.subr.bf16.mxu0 0
        %941 = vmatpush1.bf16.msra.mxu0 0
        %942 = vmatprep.subr.bf16.mxu0 0
        %943 = vmatpush1.bf16.msra.mxu0 0
        %944 = vmatprep.subr.bf16.mxu0 0
        %945 = vmatpush1.bf16.msra.mxu0 0
        %946 = vmatprep.subr.bf16.mxu0 0
        %947 = vmatpush1.bf16.msra.mxu0 0
        %948 = vmatprep.subr.bf16.mxu0 0
        %949 = vmatpush1.bf16.msra.mxu0 0
        %950 = vmatprep.subr.bf16.mxu0 0
        %951 = vmatpush1.bf16.msra.mxu0 0
        %952 = vmatprep.subr.bf16.mxu0 0
        %953 = vmatpush1.bf16.msra.mxu0 0
        %954 = vmatprep.subr.bf16.mxu0 0
        %955 = vmatpush1.bf16.msra.mxu0 0
        %956 = vmatprep.subr.bf16.mxu0 0
        %957 = vmatpush1.bf16.msra.mxu0 0
        %958 = vmatprep.subr.bf16.mxu0 0
        %959 = vmatpush1.bf16.msra.mxu0 0
        %960 = vmatprep.subr.bf16.mxu0 0
        %961 = vmatpush1.bf16.msra.mxu0 0
        %962 = vmatprep.subr.bf16.mxu0 0
        %963 = vmatpush1.bf16.msra.mxu0 0
        %964 = vmatprep.subr.bf16.mxu0 0
        %965 = vmatpush1.bf16.msra.mxu0 0
        %966 = vmatprep.mubr.bf16.mxu0 0
        %967 = vmatmul.mubr.bf16.gmra.mrb[0].mxu0 %v880
        %v968 = vpop.f32.mrb[0].mxu0
        %v969 = vadd.f32 0.0, %v968
        %v970 = vpop.f32.mrb[0].mxu0
        %v971 = vpop.f32.mrb[0].mxu0
        %v972 = vpop.f32.mrb[0].mxu0
        %973 = vdwg.mxu0
        %v978 = vunpack.c.l.b16 %v859
        %v979 = vunpack.c.l.b16 %v860
        %v980 = vunpack.c.l.b16 %v861
        %v981 = vunpack.c.l.b16 %v862
        %v982 = vpack.c.b16 %v979, %v978
        %v983 = vpack.c.b16 %v981, %v980
        %986 = vmatprep.subr.bf16.mxu0 0
        %987 = vmatpush1.bf16.msra.mxu0 %v982
        %988 = vmatprep.subr.bf16.mxu0 0
        %989 = vmatpush1.bf16.msra.mxu0 %v983
        %990 = vmatprep.subr.bf16.mxu0 0
        %991 = vmatpush1.bf16.msra.mxu0 0
        %992 = vmatprep.subr.bf16.mxu0 0
        %993 = vmatpush1.bf16.msra.mxu0 0
        %994 = vmatprep.subr.bf16.mxu0 0
        %995 = vmatpush1.bf16.msra.mxu0 0
        %996 = vmatprep.subr.bf16.mxu0 0
        %997 = vmatpush1.bf16.msra.mxu0 0
        %998 = vmatprep.subr.bf16.mxu0 0
        %999 = vmatpush1.bf16.msra.mxu0 0
        %1000 = vmatprep.subr.bf16.mxu0 0
        %1001 = vmatpush1.bf16.msra.mxu0 0
        %1002 = vmatprep.subr.bf16.mxu0 0
        %1003 = vmatpush1.bf16.msra.mxu0 0
        %1004 = vmatprep.subr.bf16.mxu0 0
        %1005 = vmatpush1.bf16.msra.mxu0 0
        %1006 = vmatprep.subr.bf16.mxu0 0
        %1007 = vmatpush1.bf16.msra.mxu0 0
        %1008 = vmatprep.subr.bf16.mxu0 0
        %1009 = vmatpush1.bf16.msra.mxu0 0
        %1010 = vmatprep.subr.bf16.mxu0 0
        %1011 = vmatpush1.bf16.msra.mxu0 0
        %1012 = vmatprep.subr.bf16.mxu0 0
        %1013 = vmatpush1.bf16.msra.mxu0 0
        %1014 = vmatprep.subr.bf16.mxu0 0
        %1015 = vmatpush1.bf16.msra.mxu0 0
        %1016 = vmatprep.subr.bf16.mxu0 0
        %1017 = vmatpush1.bf16.msra.mxu0 0
        %1018 = vmatprep.mubr.bf16.mxu0 0
        %1019 = vmatmul.mubr.bf16.gmra.mrb[0].mxu0 %v880
        %v1020 = vpop.f32.mrb[0].mxu0
        %v1021 = vadd.f32 0.0, %v1020
        %v1022 = vpop.f32.mrb[0].mxu0
        %v1023 = vpop.f32.mrb[0].mxu0
        %v1024 = vpop.f32.mrb[0].mxu0
        %1025 = vdwg.mxu0
        %v1030 = vunpack.c.l.b16 %v863
        %v1031 = vunpack.c.l.b16 %v864
        %v1032 = vunpack.c.l.b16 %v865
        %v1033 = vunpack.c.l.b16 %v866
        %v1034 = vpack.c.b16 %v1031, %v1030
        %v1035 = vpack.c.b16 %v1033, %v1032
        %1038 = vmatprep.subr.bf16.mxu0 0
        %1039 = vmatpush1.bf16.msra.mxu0 %v1034
        %1040 = vmatprep.subr.bf16.mxu0 0
        %1041 = vmatpush1.bf16.msra.mxu0 %v1035
        %1042 = vmatprep.subr.bf16.mxu0 0
        %1043 = vmatpush1.bf16.msra.mxu0 0
        %1044 = vmatprep.subr.bf16.mxu0 0
        %1045 = vmatpush1.bf16.msra.mxu0 0
        %1046 = vmatprep.subr.bf16.mxu0 0
        %1047 = vmatpush1.bf16.msra.mxu0 0
        %1048 = vmatprep.subr.bf16.mxu0 0
        %1049 = vmatpush1.bf16.msra.mxu0 0
        %1050 = vmatprep.subr.bf16.mxu0 0
        %1051 = vmatpush1.bf16.msra.mxu0 0
        %1052 = vmatprep.subr.bf16.mxu0 0
        %1053 = vmatpush1.bf16.msra.mxu0 0
        %1054 = vmatprep.subr.bf16.mxu0 0
        %1055 = vmatpush1.bf16.msra.mxu0 0
        %1056 = vmatprep.subr.bf16.mxu0 0
        %1057 = vmatpush1.bf16.msra.mxu0 0
        %1058 = vmatprep.subr.bf16.mxu0 0
        %1059 = vmatpush1.bf16.msra.mxu0 0
        %1060 = vmatprep.subr.bf16.mxu0 0
        %1061 = vmatpush1.bf16.msra.mxu0 0
        %1062 = vmatprep.subr.bf16.mxu0 0
        %1063 = vmatpush1.bf16.msra.mxu0 0
        %1064 = vmatprep.subr.bf16.mxu0 0
        %1065 = vmatpush1.bf16.msra.mxu0 0
        %1066 = vmatprep.subr.bf16.mxu0 0
        %1067 = vmatpush1.bf16.msra.mxu0 0
        %1068 = vmatprep.subr.bf16.mxu0 0
        %1069 = vmatpush1.bf16.msra.mxu0 0
        %1070 = vmatprep.mubr.bf16.mxu0 0
        %1071 = vmatmul.mubr.bf16.gmra.mrb[0].mxu0 %v880
        %v1072 = vpop.f32.mrb[0].mxu0
        %v1073 = vadd.f32 0.0, %v1072
        %v1074 = vpop.f32.mrb[0].mxu0
        %v1075 = vpop.f32.mrb[0].mxu0
        %v1076 = vpop.f32.mrb[0].mxu0
        %1077 = vdwg.mxu0
        %v1078 = vpack.c.bf16 %v917, %v917
        %v1079 = vpack.c.bf16 %v969, %v969
        %v1080 = vpack.c.bf16 %v1021, %v1021
        %v1081 = vpack.c.bf16 %v1073, %v1073
        %vm1082 = vcmp.eq.f32.partialorder %v380, 0.0
        %v1083 = vsel %vm1082, -1e+20, 0.0
        %v1085 = vlaneseq
        %v1086 = vshrl.u32 %v1085, 7
        %v1087 = vsub.s32 0, %v1086
        %v1088 = vrot.slane %v1083, %v1087
        %vm1090 = vcmask 64512
        %v1092 = vsel %vm1090, %v616, 0
        %v1095 = vsel %vm1090, %v847, 0
        %1097 = vmatprep.subr.bf16.mxu0 0
        %1098 = vmatpush1.bf16.xpose.msra.mxu0 %v1095
        %1099 = vmatprep.subr.bf16.mxu0 0
        %1100 = vmatpush1.bf16.xpose.msra.mxu0 0
        %1101 = vmatprep.subr.bf16.mxu0 0
        %1102 = vmatpush1.bf16.xpose.msra.mxu0 0
        %1103 = vmatprep.subr.bf16.mxu0 0
        %1104 = vmatpush1.bf16.xpose.msra.mxu0 0
        %1105 = vmatprep.subr.bf16.mxu0 0
        %1106 = vmatpush1.bf16.xpose.msra.mxu0 0
        %1107 = vmatprep.subr.bf16.mxu0 0
        %1108 = vmatpush1.bf16.xpose.msra.mxu0 0
        %1109 = vmatprep.subr.bf16.mxu0 0
        %1110 = vmatpush1.bf16.xpose.msra.mxu0 0
        %1111 = vmatprep.subr.bf16.mxu0 0
        %1112 = vmatpush1.bf16.xpose.msra.mxu0 0
        %1113 = vmatprep.subr.bf16.mxu0 0
        %1114 = vmatpush1.bf16.xpose.msra.mxu0 0
        %1115 = vmatprep.subr.bf16.mxu0 0
        %1116 = vmatpush1.bf16.xpose.msra.mxu0 0
        %1117 = vmatprep.subr.bf16.mxu0 0
        %1118 = vmatpush1.bf16.xpose.msra.mxu0 0
        %1119 = vmatprep.subr.bf16.mxu0 0
        %1120 = vmatpush1.bf16.xpose.msra.mxu0 0
        %1121 = vmatprep.subr.bf16.mxu0 0
        %1122 = vmatpush1.bf16.xpose.msra.mxu0 0
        %1123 = vmatprep.subr.bf16.mxu0 0
        %1124 = vmatpush1.bf16.xpose.msra.mxu0 0
        %1125 = vmatprep.subr.bf16.mxu0 0
        %1126 = vmatpush1.bf16.xpose.msra.mxu0 0
        %1127 = vmatprep.subr.bf16.mxu0 0
        %1128 = vmatpush1.bf16.xpose.msra.mxu0 0
        %1129 = vmatprep.mubr.bf16.mxu0 0
        %1130 = vmatmul.mubr.bf16.gmra.mrb[0].mxu0 %v1092
        %v1131 = vpop.f32.mrb[0].mxu0
        %v1132 = vadd.f32 %v1088, %v1131
        %v1133 = vpop.f32.mrb[0].mxu0
        %v1134 = vpop.f32.mrb[0].mxu0
        %v1135 = vpop.f32.mrb[0].mxu0
        %1136 = vdwg.mxu0
        %v1138 = vsel %vm1090, %v617, 0
        %v1141 = vsel %vm1090, %v848, 0
        %1143 = vmatprep.subr.bf16.mxu0 0
        %1144 = vmatpush1.bf16.xpose.msra.mxu0 %v1141
        %1145 = vmatprep.subr.bf16.mxu0 0
        %1146 = vmatpush1.bf16.xpose.msra.mxu0 0
        %1147 = vmatprep.subr.bf16.mxu0 0
        %1148 = vmatpush1.bf16.xpose.msra.mxu0 0
        %1149 = vmatprep.subr.bf16.mxu0 0
        %1150 = vmatpush1.bf16.xpose.msra.mxu0 0
        %1151 = vmatprep.subr.bf16.mxu0 0
        %1152 = vmatpush1.bf16.xpose.msra.mxu0 0
        %1153 = vmatprep.subr.bf16.mxu0 0
        %1154 = vmatpush1.bf16.xpose.msra.mxu0 0
        %1155 = vmatprep.subr.bf16.mxu0 0
        %1156 = vmatpush1.bf16.xpose.msra.mxu0 0
        %1157 = vmatprep.subr.bf16.mxu0 0
        %1158 = vmatpush1.bf16.xpose.msra.mxu0 0
        %1159 = vmatprep.subr.bf16.mxu0 0
        %1160 = vmatpush1.bf16.xpose.msra.mxu0 0
        %1161 = vmatprep.subr.bf16.mxu0 0
        %1162 = vmatpush1.bf16.xpose.msra.mxu0 0
        %1163 = vmatprep.subr.bf16.mxu0 0
        %1164 = vmatpush1.bf16.xpose.msra.mxu0 0
        %1165 = vmatprep.subr.bf16.mxu0 0
        %1166 = vmatpush1.bf16.xpose.msra.mxu0 0
        %1167 = vmatprep.subr.bf16.mxu0 0
        %1168 = vmatpush1.bf16.xpose.msra.mxu0 0
        %1169 = vmatprep.subr.bf16.mxu0 0
        %1170 = vmatpush1.bf16.xpose.msra.mxu0 0
        %1171 = vmatprep.subr.bf16.mxu0 0
        %1172 = vmatpush1.bf16.xpose.msra.mxu0 0
        %1173 = vmatprep.subr.bf16.mxu0 0
        %1174 = vmatpush1.bf16.xpose.msra.mxu0 0
        %1175 = vmatprep.mubr.bf16.mxu0 0
        %1176 = vmatmul.mubr.bf16.gmra.mrb[0].mxu0 %v1138
        %v1177 = vpop.f32.mrb[0].mxu0
        %v1178 = vadd.f32 %v1088, %v1177
        %v1179 = vpop.f32.mrb[0].mxu0
        %v1180 = vpop.f32.mrb[0].mxu0
        %v1181 = vpop.f32.mrb[0].mxu0
        %1182 = vdwg.mxu0
        %v1184 = vsel %vm1090, %v618, 0
        %v1187 = vsel %vm1090, %v849, 0
        %1189 = vmatprep.subr.bf16.mxu0 0
        %1190 = vmatpush1.bf16.xpose.msra.mxu0 %v1187
        %1191 = vmatprep.subr.bf16.mxu0 0
        %1192 = vmatpush1.bf16.xpose.msra.mxu0 0
        %1193 = vmatprep.subr.bf16.mxu0 0
        %1194 = vmatpush1.bf16.xpose.msra.mxu0 0
        %1195 = vmatprep.subr.bf16.mxu0 0
        %1196 = vmatpush1.bf16.xpose.msra.mxu0 0
        %1197 = vmatprep.subr.bf16.mxu0 0
        %1198 = vmatpush1.bf16.xpose.msra.mxu0 0
        %1199 = vmatprep.subr.bf16.mxu0 0
        %1200 = vmatpush1.bf16.xpose.msra.mxu0 0
        %1201 = vmatprep.subr.bf16.mxu0 0
        %1202 = vmatpush1.bf16.xpose.msra.mxu0 0
        %1203 = vmatprep.subr.bf16.mxu0 0
        %1204 = vmatpush1.bf16.xpose.msra.mxu0 0
        %1205 = vmatprep.subr.bf16.mxu0 0
        %1206 = vmatpush1.bf16.xpose.msra.mxu0 0
        %1207 = vmatprep.subr.bf16.mxu0 0
        %1208 = vmatpush1.bf16.xpose.msra.mxu0 0
        %1209 = vmatprep.subr.bf16.mxu0 0
        %1210 = vmatpush1.bf16.xpose.msra.mxu0 0
        %1211 = vmatprep.subr.bf16.mxu0 0
        %1212 = vmatpush1.bf16.xpose.msra.mxu0 0
        %1213 = vmatprep.subr.bf16.mxu0 0
        %1214 = vmatpush1.bf16.xpose.msra.mxu0 0
        %1215 = vmatprep.subr.bf16.mxu0 0
        %1216 = vmatpush1.bf16.xpose.msra.mxu0 0
        %1217 = vmatprep.subr.bf16.mxu0 0
        %1218 = vmatpush1.bf16.xpose.msra.mxu0 0
        %1219 = vmatprep.subr.bf16.mxu0 0
        %1220 = vmatpush1.bf16.xpose.msra.mxu0 0
        %1221 = vmatprep.mubr.bf16.mxu0 0
        %1222 = vmatmul.mubr.bf16.gmra.mrb[0].mxu0 %v1184
        %v1223 = vpop.f32.mrb[0].mxu0
        %v1224 = vadd.f32 %v1088, %v1223
        %v1225 = vpop.f32.mrb[0].mxu0
        %v1226 = vpop.f32.mrb[0].mxu0
        %v1227 = vpop.f32.mrb[0].mxu0
        %1228 = vdwg.mxu0
        %v1230 = vsel %vm1090, %v619, 0
        %v1233 = vsel %vm1090, %v850, 0
        %1235 = vmatprep.subr.bf16.mxu0 0
        %1236 = vmatpush1.bf16.xpose.msra.mxu0 %v1233
        %1237 = vmatprep.subr.bf16.mxu0 0
        %1238 = vmatpush1.bf16.xpose.msra.mxu0 0
        %1239 = vmatprep.subr.bf16.mxu0 0
        %1240 = vmatpush1.bf16.xpose.msra.mxu0 0
        %1241 = vmatprep.subr.bf16.mxu0 0
        %1242 = vmatpush1.bf16.xpose.msra.mxu0 0
        %1243 = vmatprep.subr.bf16.mxu0 0
        %1244 = vmatpush1.bf16.xpose.msra.mxu0 0
        %1245 = vmatprep.subr.bf16.mxu0 0
        %1246 = vmatpush1.bf16.xpose.msra.mxu0 0
        %1247 = vmatprep.subr.bf16.mxu0 0
        %1248 = vmatpush1.bf16.xpose.msra.mxu0 0
        %1249 = vmatprep.subr.bf16.mxu0 0
        %1250 = vmatpush1.bf16.xpose.msra.mxu0 0
        %1251 = vmatprep.subr.bf16.mxu0 0
        %1252 = vmatpush1.bf16.xpose.msra.mxu0 0
        %1253 = vmatprep.subr.bf16.mxu0 0
        %1254 = vmatpush1.bf16.xpose.msra.mxu0 0
        %1255 = vmatprep.subr.bf16.mxu0 0
        %1256 = vmatpush1.bf16.xpose.msra.mxu0 0
        %1257 = vmatprep.subr.bf16.mxu0 0
        %1258 = vmatpush1.bf16.xpose.msra.mxu0 0
        %1259 = vmatprep.subr.bf16.mxu0 0
        %1260 = vmatpush1.bf16.xpose.msra.mxu0 0
        %1261 = vmatprep.subr.bf16.mxu0 0
        %1262 = vmatpush1.bf16.xpose.msra.mxu0 0
        %1263 = vmatprep.subr.bf16.mxu0 0
        %1264 = vmatpush1.bf16.xpose.msra.mxu0 0
        %1265 = vmatprep.subr.bf16.mxu0 0
        %1266 = vmatpush1.bf16.xpose.msra.mxu0 0
        %1267 = vmatprep.mubr.bf16.mxu0 0
        %1268 = vmatmul.mubr.bf16.gmra.mrb[0].mxu0 %v1230
        %v1269 = vpop.f32.mrb[0].mxu0
        %v1270 = vadd.f32 %v1088, %v1269
        %v1271 = vpop.f32.mrb[0].mxu0
        %v1272 = vpop.f32.mrb[0].mxu0
        %v1273 = vpop.f32.mrb[0].mxu0
        %1274 = vdwg.mxu0
        %v1275 = vsel %vm1090, %v1132, -inf
        %1276 = vmax.xlane.f32.xlu0 %v1275
        %v1277 = vpop.xlane.xlu0 %1276
        %v1278 = vsel %vm1090, %v1178, -inf
        %1279 = vmax.xlane.f32.xlu0 %v1278
        %v1280 = vpop.xlane.xlu0 %1279
        %v1281 = vsel %vm1090, %v1224, -inf
        %1282 = vmax.xlane.f32.xlu0 %v1281
        %v1283 = vpop.xlane.xlu0 %1282
        %v1284 = vsel %vm1090, %v1270, -inf
        %1285 = vmax.xlane.f32.xlu0 %v1284
        %v1286 = vpop.xlane.xlu0 %1285
        %v1287 = vsub.f32 %v1132, %v1277
        %v1288 = vsub.f32 %v1178, %v1280
        %v1289 = vsub.f32 %v1224, %v1283
        %v1290 = vsub.f32 %v1270, %v1286
        %v1291 = vmul.f32 %v1287, 1.442695
        %v1292 = vpow.pop %v1291
        %v1293 = vmul.f32 %v1288, 1.442695
        %v1294 = vpow.pop %v1293
        %v1295 = vmul.f32 %v1289, 1.442695
        %v1296 = vpow.pop %v1295
        %v1297 = vmul.f32 %v1290, 1.442695
        %v1298 = vpow.pop %v1297
        %v1299 = vsel %vm1090, %v1292, 0.0
        %1300 = vadd.xlane.f32.xlu0 %v1299
        %v1301 = vpop.xlane.xlu0 %1300
        %v1302 = vsel %vm1090, %v1294, 0.0
        %1303 = vadd.xlane.f32.xlu0 %v1302
        %v1304 = vpop.xlane.xlu0 %1303
        %v1305 = vsel %vm1090, %v1296, 0.0
        %1306 = vadd.xlane.f32.xlu0 %v1305
        %v1307 = vpop.xlane.xlu0 %1306
        %v1308 = vsel %vm1090, %v1298, 0.0
        %1309 = vadd.xlane.f32.xlu0 %v1308
        %v1310 = vpop.xlane.xlu0 %1309
        %v1311 = vrcp.pop %v1301
        %v1312 = vrcp.pop %v1304
        %v1313 = vrcp.pop %v1307
        %v1314 = vrcp.pop %v1310
        %v1315 = vmul.f32 %v1292, %v1311
        %v1316 = vmul.f32 %v1294, %v1312
        %v1317 = vmul.f32 %v1296, %v1313
        %v1318 = vmul.f32 %v1298, %v1314
        %v1319 = vpack.c.bf16 %v1315, %v1315
        %v1320 = vpack.c.bf16 %v1316, %v1316
        %v1321 = vpack.c.bf16 %v1317, %v1317
        %v1322 = vpack.c.bf16 %v1318, %v1318
        %v1324 = vsel %vm1090, %v1319, 0
        %vm1326 = vcmask 1043456
        %v1328 = vsel %vm1326, %v1078, 0
        %1330 = vmatprep.subr.bf16.mxu0 0
        %1331 = vmatpush1.bf16.msra.mxu0 %v1328
        %1332 = vmatprep.subr.bf16.mxu0 0
        %1333 = vmatpush1.bf16.msra.mxu0 0
        %1334 = vmatprep.subr.bf16.mxu0 0
        %1335 = vmatpush1.bf16.msra.mxu0 0
        %1336 = vmatprep.subr.bf16.mxu0 0
        %1337 = vmatpush1.bf16.msra.mxu0 0
        %1338 = vmatprep.subr.bf16.mxu0 0
        %1339 = vmatpush1.bf16.msra.mxu0 0
        %1340 = vmatprep.subr.bf16.mxu0 0
        %1341 = vmatpush1.bf16.msra.mxu0 0
        %1342 = vmatprep.subr.bf16.mxu0 0
        %1343 = vmatpush1.bf16.msra.mxu0 0
        %1344 = vmatprep.subr.bf16.mxu0 0
        %1345 = vmatpush1.bf16.msra.mxu0 0
        %1346 = vmatprep.subr.bf16.mxu0 0
        %1347 = vmatpush1.bf16.msra.mxu0 0
        %1348 = vmatprep.subr.bf16.mxu0 0
        %1349 = vmatpush1.bf16.msra.mxu0 0
        %1350 = vmatprep.subr.bf16.mxu0 0
        %1351 = vmatpush1.bf16.msra.mxu0 0
        %1352 = vmatprep.subr.bf16.mxu0 0
        %1353 = vmatpush1.bf16.msra.mxu0 0
        %1354 = vmatprep.subr.bf16.mxu0 0
        %1355 = vmatpush1.bf16.msra.mxu0 0
        %1356 = vmatprep.subr.bf16.mxu0 0
        %1357 = vmatpush1.bf16.msra.mxu0 0
        %1358 = vmatprep.subr.bf16.mxu0 0
        %1359 = vmatpush1.bf16.msra.mxu0 0
        %1360 = vmatprep.subr.bf16.mxu0 0
        %1361 = vmatpush1.bf16.msra.mxu0 0
        %1362 = vmatprep.mubr.bf16.mxu0 0
        %1363 = vmatmul.mubr.bf16.gmra.mrb[0].mxu0 %v1324
        %v1364 = vpop.f32.mrb[0].mxu0
        %v1365 = vadd.f32 0.0, %v1364
        %v1366 = vpop.f32.mrb[0].mxu0
        %v1367 = vpop.f32.mrb[0].mxu0
        %v1368 = vpop.f32.mrb[0].mxu0
        %1369 = vdwg.mxu0
        %v1371 = vsel %vm1090, %v1320, 0
        %v1374 = vsel %vm1326, %v1079, 0
        %1376 = vmatprep.subr.bf16.mxu0 0
        %1377 = vmatpush1.bf16.msra.mxu0 %v1374
        %1378 = vmatprep.subr.bf16.mxu0 0
        %1379 = vmatpush1.bf16.msra.mxu0 0
        %1380 = vmatprep.subr.bf16.mxu0 0
        %1381 = vmatpush1.bf16.msra.mxu0 0
        %1382 = vmatprep.subr.bf16.mxu0 0
        %1383 = vmatpush1.bf16.msra.mxu0 0
        %1384 = vmatprep.subr.bf16.mxu0 0
        %1385 = vmatpush1.bf16.msra.mxu0 0
        %1386 = vmatprep.subr.bf16.mxu0 0
        %1387 = vmatpush1.bf16.msra.mxu0 0
        %1388 = vmatprep.subr.bf16.mxu0 0
        %1389 = vmatpush1.bf16.msra.mxu0 0
        %1390 = vmatprep.subr.bf16.mxu0 0
        %1391 = vmatpush1.bf16.msra.mxu0 0
        %1392 = vmatprep.subr.bf16.mxu0 0
        %1393 = vmatpush1.bf16.msra.mxu0 0
        %1394 = vmatprep.subr.bf16.mxu0 0
        %1395 = vmatpush1.bf16.msra.mxu0 0
        %1396 = vmatprep.subr.bf16.mxu0 0
        %1397 = vmatpush1.bf16.msra.mxu0 0
        %1398 = vmatprep.subr.bf16.mxu0 0
        %1399 = vmatpush1.bf16.msra.mxu0 0
        %1400 = vmatprep.subr.bf16.mxu0 0
        %1401 = vmatpush1.bf16.msra.mxu0 0
        %1402 = vmatprep.subr.bf16.mxu0 0
        %1403 = vmatpush1.bf16.msra.mxu0 0
        %1404 = vmatprep.subr.bf16.mxu0 0
        %1405 = vmatpush1.bf16.msra.mxu0 0
        %1406 = vmatprep.subr.bf16.mxu0 0
        %1407 = vmatpush1.bf16.msra.mxu0 0
        %1408 = vmatprep.mubr.bf16.mxu0 0
        %1409 = vmatmul.mubr.bf16.gmra.mrb[0].mxu0 %v1371
        %v1410 = vpop.f32.mrb[0].mxu0
        %v1411 = vadd.f32 0.0, %v1410
        %v1412 = vpop.f32.mrb[0].mxu0
        %v1413 = vpop.f32.mrb[0].mxu0
        %v1414 = vpop.f32.mrb[0].mxu0
        %1415 = vdwg.mxu0
        %v1417 = vsel %vm1090, %v1321, 0
        %v1420 = vsel %vm1326, %v1080, 0
        %1422 = vmatprep.subr.bf16.mxu0 0
        %1423 = vmatpush1.bf16.msra.mxu0 %v1420
        %1424 = vmatprep.subr.bf16.mxu0 0
        %1425 = vmatpush1.bf16.msra.mxu0 0
        %1426 = vmatprep.subr.bf16.mxu0 0
        %1427 = vmatpush1.bf16.msra.mxu0 0
        %1428 = vmatprep.subr.bf16.mxu0 0
        %1429 = vmatpush1.bf16.msra.mxu0 0
        %1430 = vmatprep.subr.bf16.mxu0 0
        %1431 = vmatpush1.bf16.msra.mxu0 0
        %1432 = vmatprep.subr.bf16.mxu0 0
        %1433 = vmatpush1.bf16.msra.mxu0 0
        %1434 = vmatprep.subr.bf16.mxu0 0
        %1435 = vmatpush1.bf16.msra.mxu0 0
        %1436 = vmatprep.subr.bf16.mxu0 0
        %1437 = vmatpush1.bf16.msra.mxu0 0
        %1438 = vmatprep.subr.bf16.mxu0 0
        %1439 = vmatpush1.bf16.msra.mxu0 0
        %1440 = vmatprep.subr.bf16.mxu0 0
        %1441 = vmatpush1.bf16.msra.mxu0 0
        %1442 = vmatprep.subr.bf16.mxu0 0
        %1443 = vmatpush1.bf16.msra.mxu0 0
        %1444 = vmatprep.subr.bf16.mxu0 0
        %1445 = vmatpush1.bf16.msra.mxu0 0
        %1446 = vmatprep.subr.bf16.mxu0 0
        %1447 = vmatpush1.bf16.msra.mxu0 0
        %1448 = vmatprep.subr.bf16.mxu0 0
        %1449 = vmatpush1.bf16.msra.mxu0 0
        %1450 = vmatprep.subr.bf16.mxu0 0
        %1451 = vmatpush1.bf16.msra.mxu0 0
        %1452 = vmatprep.subr.bf16.mxu0 0
        %1453 = vmatpush1.bf16.msra.mxu0 0
        %1454 = vmatprep.mubr.bf16.mxu0 0
        %1455 = vmatmul.mubr.bf16.gmra.mrb[0].mxu0 %v1417
        %v1456 = vpop.f32.mrb[0].mxu0
        %v1457 = vadd.f32 0.0, %v1456
        %v1458 = vpop.f32.mrb[0].mxu0
        %v1459 = vpop.f32.mrb[0].mxu0
        %v1460 = vpop.f32.mrb[0].mxu0
        %1461 = vdwg.mxu0
        %v1463 = vsel %vm1090, %v1322, 0
        %v1466 = vsel %vm1326, %v1081, 0
        %1468 = vmatprep.subr.bf16.mxu0 0
        %1469 = vmatpush1.bf16.msra.mxu0 %v1466
        %1470 = vmatprep.subr.bf16.mxu0 0
        %1471 = vmatpush1.bf16.msra.mxu0 0
        %1472 = vmatprep.subr.bf16.mxu0 0
        %1473 = vmatpush1.bf16.msra.mxu0 0
        %1474 = vmatprep.subr.bf16.mxu0 0
        %1475 = vmatpush1.bf16.msra.mxu0 0
        %1476 = vmatprep.subr.bf16.mxu0 0
        %1477 = vmatpush1.bf16.msra.mxu0 0
        %1478 = vmatprep.subr.bf16.mxu0 0
        %1479 = vmatpush1.bf16.msra.mxu0 0
        %1480 = vmatprep.subr.bf16.mxu0 0
        %1481 = vmatpush1.bf16.msra.mxu0 0
        %1482 = vmatprep.subr.bf16.mxu0 0
        %1483 = vmatpush1.bf16.msra.mxu0 0
        %1484 = vmatprep.subr.bf16.mxu0 0
        %1485 = vmatpush1.bf16.msra.mxu0 0
        %1486 = vmatprep.subr.bf16.mxu0 0
        %1487 = vmatpush1.bf16.msra.mxu0 0
        %1488 = vmatprep.subr.bf16.mxu0 0
        %1489 = vmatpush1.bf16.msra.mxu0 0
        %1490 = vmatprep.subr.bf16.mxu0 0
        %1491 = vmatpush1.bf16.msra.mxu0 0
        %1492 = vmatprep.subr.bf16.mxu0 0
        %1493 = vmatpush1.bf16.msra.mxu0 0
        %1494 = vmatprep.subr.bf16.mxu0 0
        %1495 = vmatpush1.bf16.msra.mxu0 0
        %1496 = vmatprep.subr.bf16.mxu0 0
        %1497 = vmatpush1.bf16.msra.mxu0 0
        %1498 = vmatprep.subr.bf16.mxu0 0
        %1499 = vmatpush1.bf16.msra.mxu0 0
        %1500 = vmatprep.mubr.bf16.mxu0 0
        %1501 = vmatmul.mubr.bf16.gmra.mrb[0].mxu0 %v1463
        %v1502 = vpop.f32.mrb[0].mxu0
        %v1503 = vadd.f32 0.0, %v1502
        %v1504 = vpop.f32.mrb[0].mxu0
        %v1505 = vpop.f32.mrb[0].mxu0
        %v1506 = vpop.f32.mrb[0].mxu0
        %1507 = vdwg.mxu0
        %v1508 = vpack.c.bf16 %v1365, %v1365
        %v1509 = vpack.c.bf16 %v1411, %v1411
        %v1510 = vpack.c.bf16 %v1457, %v1457
        %v1511 = vpack.c.bf16 %v1503, %v1503
        %v1512 = vld [vmem:[%s7] sm:$0xf]
        %v1513 = vld [vmem:[%s7 + $0x4] sm:$0xf]
        %v1514 = vld [vmem:[%s7 + $0x8] sm:$0xf]
        %v1515 = vld [vmem:[%s7 + $0xc] sm:$0xf]
        %v1517 = vsel %vm1090, %v1508, 0
        %v1520 = vsel %vm1326, %v1512, 0
        %1522 = vmatprep.subr.bf16.mxu0 0
        %1523 = vmatpush1.bf16.msra.mxu0 %v1520
        %1524 = vmatprep.subr.bf16.mxu0 0
        %1525 = vmatpush1.bf16.msra.mxu0 0
        %1526 = vmatprep.subr.bf16.mxu0 0
        %1527 = vmatpush1.bf16.msra.mxu0 0
        %1528 = vmatprep.subr.bf16.mxu0 0
        %1529 = vmatpush1.bf16.msra.mxu0 0
        %1530 = vmatprep.subr.bf16.mxu0 0
        %1531 = vmatpush1.bf16.msra.mxu0 0
        %1532 = vmatprep.subr.bf16.mxu0 0
        %1533 = vmatpush1.bf16.msra.mxu0 0
        %1534 = vmatprep.subr.bf16.mxu0 0
        %1535 = vmatpush1.bf16.msra.mxu0 0
        %1536 = vmatprep.subr.bf16.mxu0 0
        %1537 = vmatpush1.bf16.msra.mxu0 0
        %1538 = vmatprep.subr.bf16.mxu0 0
        %1539 = vmatpush1.bf16.msra.mxu0 0
        %1540 = vmatprep.subr.bf16.mxu0 0
        %1541 = vmatpush1.bf16.msra.mxu0 0
        %1542 = vmatprep.subr.bf16.mxu0 0
        %1543 = vmatpush1.bf16.msra.mxu0 0
        %1544 = vmatprep.subr.bf16.mxu0 0
        %1545 = vmatpush1.bf16.msra.mxu0 0
        %1546 = vmatprep.subr.bf16.mxu0 0
        %1547 = vmatpush1.bf16.msra.mxu0 0
        %1548 = vmatprep.subr.bf16.mxu0 0
        %1549 = vmatpush1.bf16.msra.mxu0 0
        %1550 = vmatprep.subr.bf16.mxu0 0
        %1551 = vmatpush1.bf16.msra.mxu0 0
        %1552 = vmatprep.subr.bf16.mxu0 0
        %1553 = vmatpush1.bf16.msra.mxu0 0
        %1554 = vmatprep.mubr.bf16.mxu0 0
        %1555 = vmatmul.mubr.bf16.gmra.mrb[0].mxu0 %v1517
        %v1556 = vpop.f32.mrb[0].mxu0
        %v1557 = vadd.f32 0.0, %v1556
        %v1558 = vpop.f32.mrb[0].mxu0
        %v1559 = vpop.f32.mrb[0].mxu0
        %v1560 = vpop.f32.mrb[0].mxu0
        %1561 = vdwg.mxu0
        %v1563 = vsel %vm1090, %v1509, 0
        %v1566 = vsel %vm1326, %v1513, 0
        %1568 = vmatprep.subr.bf16.mxu0 0
        %1569 = vmatpush1.bf16.msra.mxu0 %v1566
        %1570 = vmatprep.subr.bf16.mxu0 0
        %1571 = vmatpush1.bf16.msra.mxu0 0
        %1572 = vmatprep.subr.bf16.mxu0 0
        %1573 = vmatpush1.bf16.msra.mxu0 0
        %1574 = vmatprep.subr.bf16.mxu0 0
        %1575 = vmatpush1.bf16.msra.mxu0 0
        %1576 = vmatprep.subr.bf16.mxu0 0
        %1577 = vmatpush1.bf16.msra.mxu0 0
        %1578 = vmatprep.subr.bf16.mxu0 0
        %1579 = vmatpush1.bf16.msra.mxu0 0
        %1580 = vmatprep.subr.bf16.mxu0 0
        %1581 = vmatpush1.bf16.msra.mxu0 0
        %1582 = vmatprep.subr.bf16.mxu0 0
        %1583 = vmatpush1.bf16.msra.mxu0 0
        %1584 = vmatprep.subr.bf16.mxu0 0
        %1585 = vmatpush1.bf16.msra.mxu0 0
        %1586 = vmatprep.subr.bf16.mxu0 0
        %1587 = vmatpush1.bf16.msra.mxu0 0
        %1588 = vmatprep.subr.bf16.mxu0 0
        %1589 = vmatpush1.bf16.msra.mxu0 0
        %1590 = vmatprep.subr.bf16.mxu0 0
        %1591 = vmatpush1.bf16.msra.mxu0 0
        %1592 = vmatprep.subr.bf16.mxu0 0
        %1593 = vmatpush1.bf16.msra.mxu0 0
        %1594 = vmatprep.subr.bf16.mxu0 0
        %1595 = vmatpush1.bf16.msra.mxu0 0
        %1596 = vmatprep.subr.bf16.mxu0 0
        %1597 = vmatpush1.bf16.msra.mxu0 0
        %1598 = vmatprep.subr.bf16.mxu0 0
        %1599 = vmatpush1.bf16.msra.mxu0 0
        %1600 = vmatprep.mubr.bf16.mxu0 0
        %1601 = vmatmul.mubr.bf16.gmra.mrb[0].mxu0 %v1563
        %v1602 = vpop.f32.mrb[0].mxu0
        %v1603 = vadd.f32 0.0, %v1602
        %v1604 = vpop.f32.mrb[0].mxu0
        %v1605 = vpop.f32.mrb[0].mxu0
        %v1606 = vpop.f32.mrb[0].mxu0
        %1607 = vdwg.mxu0
        %v1609 = vsel %vm1090, %v1510, 0
        %v1612 = vsel %vm1326, %v1514, 0
        %1614 = vmatprep.subr.bf16.mxu0 0
        %1615 = vmatpush1.bf16.msra.mxu0 %v1612
        %1616 = vmatprep.subr.bf16.mxu0 0
        %1617 = vmatpush1.bf16.msra.mxu0 0
        %1618 = vmatprep.subr.bf16.mxu0 0
        %1619 = vmatpush1.bf16.msra.mxu0 0
        %1620 = vmatprep.subr.bf16.mxu0 0
        %1621 = vmatpush1.bf16.msra.mxu0 0
        %1622 = vmatprep.subr.bf16.mxu0 0
        %1623 = vmatpush1.bf16.msra.mxu0 0
        %1624 = vmatprep.subr.bf16.mxu0 0
        %1625 = vmatpush1.bf16.msra.mxu0 0
        %1626 = vmatprep.subr.bf16.mxu0 0
        %1627 = vmatpush1.bf16.msra.mxu0 0
        %1628 = vmatprep.subr.bf16.mxu0 0
        %1629 = vmatpush1.bf16.msra.mxu0 0
        %1630 = vmatprep.subr.bf16.mxu0 0
        %1631 = vmatpush1.bf16.msra.mxu0 0
        %1632 = vmatprep.subr.bf16.mxu0 0
        %1633 = vmatpush1.bf16.msra.mxu0 0
        %1634 = vmatprep.subr.bf16.mxu0 0
        %1635 = vmatpush1.bf16.msra.mxu0 0
        %1636 = vmatprep.subr.bf16.mxu0 0
        %1637 = vmatpush1.bf16.msra.mxu0 0
        %1638 = vmatprep.subr.bf16.mxu0 0
        %1639 = vmatpush1.bf16.msra.mxu0 0
        %1640 = vmatprep.subr.bf16.mxu0 0
        %1641 = vmatpush1.bf16.msra.mxu0 0
        %1642 = vmatprep.subr.bf16.mxu0 0
        %1643 = vmatpush1.bf16.msra.mxu0 0
        %1644 = vmatprep.subr.bf16.mxu0 0
        %1645 = vmatpush1.bf16.msra.mxu0 0
        %1646 = vmatprep.mubr.bf16.mxu0 0
        %1647 = vmatmul.mubr.bf16.gmra.mrb[0].mxu0 %v1609
        %v1648 = vpop.f32.mrb[0].mxu0
        %v1649 = vadd.f32 0.0, %v1648
        %v1650 = vpop.f32.mrb[0].mxu0
        %v1651 = vpop.f32.mrb[0].mxu0
        %v1652 = vpop.f32.mrb[0].mxu0
        %1653 = vdwg.mxu0
        %v1655 = vsel %vm1090, %v1511, 0
        %v1658 = vsel %vm1326, %v1515, 0
        %1660 = vmatprep.subr.bf16.mxu0 0
        %1661 = vmatpush1.bf16.msra.mxu0 %v1658
        %1662 = vmatprep.subr.bf16.mxu0 0
        %1663 = vmatpush1.bf16.msra.mxu0 0
        %1664 = vmatprep.subr.bf16.mxu0 0
        %1665 = vmatpush1.bf16.msra.mxu0 0
        %1666 = vmatprep.subr.bf16.mxu0 0
        %1667 = vmatpush1.bf16.msra.mxu0 0
        %1668 = vmatprep.subr.bf16.mxu0 0
        %1669 = vmatpush1.bf16.msra.mxu0 0
        %1670 = vmatprep.subr.bf16.mxu0 0
        %1671 = vmatpush1.bf16.msra.mxu0 0
        %1672 = vmatprep.subr.bf16.mxu0 0
        %1673 = vmatpush1.bf16.msra.mxu0 0
        %1674 = vmatprep.subr.bf16.mxu0 0
        %1675 = vmatpush1.bf16.msra.mxu0 0
        %1676 = vmatprep.subr.bf16.mxu0 0
        %1677 = vmatpush1.bf16.msra.mxu0 0
        %1678 = vmatprep.subr.bf16.mxu0 0
        %1679 = vmatpush1.bf16.msra.mxu0 0
        %1680 = vmatprep.subr.bf16.mxu0 0
        %1681 = vmatpush1.bf16.msra.mxu0 0
        %1682 = vmatprep.subr.bf16.mxu0 0
        %1683 = vmatpush1.bf16.msra.mxu0 0
        %1684 = vmatprep.subr.bf16.mxu0 0
        %1685 = vmatpush1.bf16.msra.mxu0 0
        %1686 = vmatprep.subr.bf16.mxu0 0
        %1687 = vmatpush1.bf16.msra.mxu0 0
        %1688 = vmatprep.subr.bf16.mxu0 0
        %1689 = vmatpush1.bf16.msra.mxu0 0
        %1690 = vmatprep.subr.bf16.mxu0 0
        %1691 = vmatpush1.bf16.msra.mxu0 0
        %1692 = vmatprep.mubr.bf16.mxu0 0
        %1693 = vmatmul.mubr.bf16.gmra.mrb[0].mxu0 %v1655
        %v1694 = vpop.f32.mrb[0].mxu0
        %v1695 = vadd.f32 0.0, %v1694
        %v1696 = vpop.f32.mrb[0].mxu0
        %v1697 = vpop.f32.mrb[0].mxu0
        %v1698 = vpop.f32.mrb[0].mxu0
        %1699 = vdwg.mxu0
        %v1700 = vsel %vm412, %v1557, 0.0
        %v1701 = vsel %vm412, %v1603, 0.0
        %v1702 = vadd.f32 %v1700, %v1701
        %v1703 = vsel %vm412, %v1649, 0.0
        %v1704 = vadd.f32 %v1702, %v1703
        %v1705 = vsel %vm412, %v1695, 0.0
        %v1706 = vadd.f32 %v1704, %v1705
        %v1707 = vld [vmem:[%s8] sm:$0x1]
        %v1709 = vlaneseq
        %v1710 = vshrl.u32 %v1709, 7
        %v1711 = vsub.s32 0, %v1710
        %v1712 = vrot.slane %v1707, %v1711
        %v1714 = vadd.f32 %v1706, %v1712
        %1715 = vst.msk [vmem:[%s360] sm:$0xff] %vm412, %v1714
        %s1716 = sand.u32 %s240, 1
        %s1717 = scalar_lea.sflag [#allocation3], %s1716
        %s1718 = sand.u32 %s240, 1
        %s1719 = smul.addr %s1718, 8
        %s1720 = scalar_lea.vmem [#allocation2], %s1719
        // Predicated region
        $region57: #{tpu_custom_call.1} parent=55 // pred_check
          %p1721 = pneg %p250
        $region58: #{tpu_custom_call.1} parent=55 // pred_check_branch
          %1723 = sbr.rel (%p1721) target = $region60
        $region59: #{tpu_custom_call.1} parent=55 // pred_region
          %s1725 = ssub.s32 128, 128
          %1726 = vsyncadd %s1717, %s1725
          %s1727 = smul.addr %s23, 128
          %s1728 = scalar_lea.hbm %s9, %s1727
          %s1730 = sshll.u32 %s1720, 4
          %s1731 = int_to_ptr.vmem [resolvable:$true] %s1730
          %1733 = dma.vmem_to_hbm [thread:$0]  %s1731, 128, %s1728, %s1717
        $region60: #{tpu_custom_call.1} parent=55 // pred_fallthru
          _
      $region56: #{tpu_custom_call.1} parent=5 // pred_fallthru
        _
      %p1734 = scmp.le.s32.totalorder 2, %s18
      // Predicated region
      $region61: #{tpu_custom_call.1} parent=5 // pred_check
        %p1735 = pneg %p1734
      $region62: #{tpu_custom_call.1} parent=5 // pred_check_branch
        %1737 = sbr.rel (%p1735) target = $region64
      $region63: #{tpu_custom_call.1} parent=5 // pred_region
        %s1738 = ssub.s32 %s18, 2
        // Predicated region
        $region65: #{tpu_custom_call.1} parent=63 // pred_check
          %p1739 = pneg %p256
        $region66: #{tpu_custom_call.1} parent=63 // pred_check_branch
          %1741 = sbr.rel (%p1739) target = $region68
        $region67: #{tpu_custom_call.1} parent=63 // pred_region
          %s1742 = sand.u32 %s241, 1
          %s1743 = scalar_lea.sflag [#allocation3], %s1742
          %s1744 = sand.u32 %s241, 1
          %s1745 = smul.addr %s1744, 8
          %s1746 = scalar_lea.vmem [#allocation2], %s1745
          %1747 = dma.done %s1743, 128
        $region68: #{tpu_custom_call.1} parent=63 // pred_fallthru
          _
      $region64: #{tpu_custom_call.1} parent=5 // pred_fallthru
        _
    $region6: #{tpu_custom_call.1} parent=1 // loop_footer
      %s22 = sadd.s32 1, %s18
    $region7: #{tpu_custom_call.1} parent=1 // loop_footer_branch
      %17 = sbr.rel target = $region3
    $region8: #{tpu_custom_call.1} parent=1 // loop_exit
      _
    %1748 = vsyncpa [#allocation3], 1
    %s1749 = scalar_lea.sflag [#allocation3], 1
    %1750 = vsyncpa %s1749, 1

</llo_original>
